<compile_context>
chip_gen: v6e
topology: v6e:2x2x1
jax: 0.10.0
libtpu: 0.0.40
codegen_flags: <defaults>
</compile_context>

<pallas_src>
import functools

import jax
import jax.numpy as jnp
import numpy as np
from jax.experimental import pallas as pl
from jax.experimental.pallas import tpu as pltpu


def _pick_time_block(seq_len, max_block=16):
    """Largest divisor of seq_len that is <= max_block."""
    for cand in range(min(seq_len, max_block), 0, -1):
        if seq_len % cand == 0:
            return cand
    return 1


# ----------------------------------------------------------------------------
# Pallas kernels
# ----------------------------------------------------------------------------
def _bilstm_layer_kernel(x_ref, w_ref, b_ref, out_ref, h_sc, c_sc, *,
                         t_block, hidden, feat):
    """Both directions of one bidirectional LSTM layer.

    Grid = (direction, time_block):
      direction ("parallel"): 0 = forward, 1 = backward.
      time      ("arbitrary"): sequential; h/c persist in VMEM scratch across
                               time blocks, re-initialized when time block == 0.

    Refs (per grid step):
      x_ref  : (ND, T, B, F)       input time block (ND=1 embeddings, ND=2
                                   fwd/bwd halves of previous layer's output)
      w_ref  : (1, ND*F + H, 4H)   fused [W_x(parts...); W_h] for this
                                   direction, bf16, rows partitioned statically
      b_ref  : (1, 1, 4H)          combined bias b_ih + b_hh, f32
      out_ref: (1, T, B, H)        this direction's hidden outputs for the block
      h_sc, c_sc : (B, H) f32 scratch.

    PyTorch gate order: i, f, g, o.  Matmuls run in bf16 on the MXU with f32
    accumulation; gate nonlinearities / recurrence stay in f32.
    """
    d = pl.program_id(0)
    tb = pl.program_id(1)
    H = hidden
    F = feat
    nd = x_ref.shape[0]

    @pl.when(tb == 0)
    def _():
        h_sc[...] = jnp.zeros_like(h_sc)
        c_sc[...] = jnp.zeros_like(c_sc)

    # Hoist weight loads out of the per-step loop (static row partitions of the
    # fused weight; offsets are multiples of the bf16 sublane tile).
    w_x = [w_ref[0, k * F:(k + 1) * F, :] for k in range(nd)]   # each (F, 4H) bf16
    w_h = w_ref[0, nd * F:nd * F + H, :]                        # (H, 4H) bf16
    b = b_ref[0]                                                # (1, 4H) f32

    def step(i, carry):
        # Forward walks the block 0..T-1; backward walks it T-1..0.
        li = i + d * (t_block - 1 - 2 * i)
        h = h_sc[...]
        # Accumulate all gate matmuls into one f32 buffer (single add chain).
        g = jnp.dot(h.astype(jnp.bfloat16), w_h,
                    preferred_element_type=jnp.float32)
        for k in range(nd):
            g = g + jnp.dot(x_ref[k, li].astype(jnp.bfloat16), w_x[k],
                            preferred_element_type=jnp.float32)
        gates = g + b                                           # (B, 4H) f32

        i_g = jax.nn.sigmoid(gates[:, 0 * H:1 * H])
        f_g = jax.nn.sigmoid(gates[:, 1 * H:2 * H])
        g_g = jnp.tanh(gates[:, 2 * H:3 * H])
        o_g = jax.nn.sigmoid(gates[:, 3 * H:4 * H])

        c_new = f_g * c_sc[...] + i_g * g_g
        h_new = o_g * jnp.tanh(c_new)

        h_sc[...] = h_new
        c_sc[...] = c_new
        out_ref[0, li] = h_new
        return carry

    jax.lax.fori_loop(0, t_block, step, 0, unroll=True)


def bilstm_layer_pallas(x_nd, w, b):
    """Run one bidirectional LSTM layer.

    x_nd: (ND, S, B, F) f32   (ND = 1 for embeddings, 2 for previous layer)
    w   : (2, ND*F + H, 4H) bf16   fused per-direction weights
    b   : (2, 1, 4H) f32           combined per-direction biases
    Returns out: (2, S, B, H) f32  (dir 0 = forward, dir 1 = backward).
    """
    ND, S, B, F = x_nd.shape
    H = b.shape[-1] // 4
    K = w.shape[1]
    T = _pick_time_block(S)
    nb = S // T

    def x_map(d, tb):
        # forward reads time block tb; backward reads block nb-1-tb
        # (time reversal handled entirely by DMA addressing).
        return (0, tb + d * (nb - 1 - 2 * tb), 0, 0)

    def w_map(d, tb):
        return (d, 0, 0)

    def out_map(d, tb):
        return (d, tb + d * (nb - 1 - 2 * tb), 0, 0)

    kernel = functools.partial(_bilstm_layer_kernel,
                               t_block=T, hidden=H, feat=F)
    return pl.pallas_call(
        kernel,
        out_shape=jax.ShapeDtypeStruct((2, S, B, H), jnp.float32),
        grid_spec=pltpu.PrefetchScalarGridSpec(
            num_scalar_prefetch=0,
            grid=(2, nb),
            in_specs=[
                pl.BlockSpec((ND, T, B, F), x_map),
                pl.BlockSpec((1, K, 4 * H), w_map),
                pl.BlockSpec((1, 1, 4 * H), w_map),
            ],
            out_specs=pl.BlockSpec((1, T, B, H), out_map),
            scratch_shapes=[
                pltpu.VMEM((B, H), jnp.float32),   # h
                pltpu.VMEM((B, H), jnp.float32),   # c
            ],
        ),
        compiler_params=pltpu.CompilerParams(
            # direction axis is independent -> can shard across TensorCores;
            # time axis carries the recurrence -> must stay "arbitrary".
            dimension_semantics=("parallel", "arbitrary"),
            # Raise the default scoped-VMEM limit (16 MiB v5e / 32 MiB v6e);
            # kept <= 64 MiB so the setting is also valid on v7x.
            vmem_limit_bytes=32 * 1024 * 1024,
        ),
    )(x_nd, w, b)


def _fc_kernel(h_ref, w_ref, b_ref, y_ref):
    y_ref[...] = (
        jnp.dot(h_ref[...].astype(jnp.bfloat16), w_ref[...],
                preferred_element_type=jnp.float32)
        + b_ref[...]
    )


def fc_pallas(h, w_t, b):
    B = h.shape[0]
    O = w_t.shape[1]
    return pl.pallas_call(
        _fc_kernel,
        out_shape=jax.ShapeDtypeStruct((B, O), jnp.float32),
    )(h, w_t, b)


# ----------------------------------------------------------------------------
# Full RNN forward (embedding + multi-layer bidirectional LSTM + linear head)
# ----------------------------------------------------------------------------
def rnn_forward(x, params, n_layers):
    """x: (S, B) int32 token ids. Returns (B, output_dim)."""
    emb = params["embedding"][x]            # (S, B, E)  gather stays in plain JAX
    # TODO(synk): dropout is identity here (eval-mode forward).
    h_nd = emb[None]                        # (1, S, B, E)
    for layer in range(n_layers):
        lw = params["lstm"][layer]
        h_nd = bilstm_layer_pallas(h_nd, lw["w"], lw["b"])   # (2, S, B, H)

    # Final hidden states of the last layer: forward at t=S-1, backward at t=0
    # (equivalent to torch.cat((hidden[-2], hidden[-1]), dim=1)).
    hidden = jnp.concatenate([h_nd[0, -1], h_nd[1, 0]], axis=-1)   # (B, 2H)
    return fc_pallas(hidden, params["fc_w_t"], params["fc_b"])     # (B, O)


# ----------------------------------------------------------------------------
# Pure-JAX reference (same bf16 matmul precision) for verification
# ----------------------------------------------------------------------------
def _bilstm_layer_ref(x_nd, w, b):
    ND, S, B, F = x_nd.shape
    H = b.shape[-1] // 4

    def run_dir(d):
        w_d = w[d]
        w_h = w_d[ND * F:ND * F + H]
        b_d = b[d]
        xs = jnp.moveaxis(x_nd, 1, 0)       # (S, ND, B, F)
        if d == 1:
            xs = xs[::-1]

        def step(carry, x_t):
            h, c = carry
            g = jnp.dot(h.astype(jnp.bfloat16), w_h,
                        preferred_element_type=jnp.float32)
            for k in range(ND):
                g = g + jnp.dot(x_t[k].astype(jnp.bfloat16),
                                w_d[k * F:(k + 1) * F],
                                preferred_element_type=jnp.float32)
            gates = g + b_d
            i_g = jax.nn.sigmoid(gates[:, :H])
            f_g = jax.nn.sigmoid(gates[:, H:2 * H])
            g_g = jnp.tanh(gates[:, 2 * H:3 * H])
            o_g = jax.nn.sigmoid(gates[:, 3 * H:])
            c = f_g * c + i_g * g_g
            h = o_g * jnp.tanh(c)
            return (h, c), h

        init = (jnp.zeros((B, H), jnp.float32), jnp.zeros((B, H), jnp.float32))
        _, outs = jax.lax.scan(step, init, xs)
        if d == 1:
            outs = outs[::-1]
        return outs                         # (S, B, H)

    return jnp.stack([run_dir(0), run_dir(1)], axis=0)


def rnn_forward_ref(x, params, n_layers):
    h_nd = params["embedding"][x][None]
    for layer in range(n_layers):
        lw = params["lstm"][layer]
        h_nd = _bilstm_layer_ref(h_nd, lw["w"], lw["b"])
    hidden = jnp.concatenate([h_nd[0, -1], h_nd[1, 0]], axis=-1)
    return (jnp.dot(hidden.astype(jnp.bfloat16), params["fc_w_t"],
                    preferred_element_type=jnp.float32) + params["fc_b"])


# ----------------------------------------------------------------------------
# Deterministic parameter init (shapes per RNN.__init__, uniform +-1/sqrt(H))
# ----------------------------------------------------------------------------
def init_params(key, vocab_size, embedding_dim, hidden_dim, output_dim, n_layers):
    H = hidden_dim
    keys = jax.random.split(key, 2 + n_layers)
    params = {
        "embedding": jax.random.normal(keys[0], (vocab_size, embedding_dim),
                                       jnp.float32) * 0.1,
        "lstm": [],
    }
    scale = 1.0 / np.sqrt(H)

    def u(k, shape):
        return jax.random.uniform(k, shape, jnp.float32, -scale, scale)

    for layer in range(n_layers):
        in_dim = embedding_dim if layer == 0 else 2 * H
        lk = jax.random.split(keys[1 + layer], 6)
        # Fused per-direction weight: rows = [W_ih(in_dim); W_hh(H)], cols = 4H (i,f,g,o).
        w = jnp.stack([u(lk[0], (in_dim + H, 4 * H)),
                       u(lk[1], (in_dim + H, 4 * H))])
        b = jnp.stack([u(lk[2], (1, 4 * H)) + u(lk[3], (1, 4 * H)),
                       u(lk[4], (1, 4 * H)) + u(lk[5], (1, 4 * H))])
        params["lstm"].append({"w": w.astype(jnp.bfloat16), "b": b})

    fk = jax.random.split(keys[-1], 2)
    fc_scale = 1.0 / np.sqrt(2 * H)
    params["fc_w_t"] = jax.random.uniform(fk[0], (2 * H, output_dim), jnp.float32,
                                          -fc_scale, fc_scale).astype(jnp.bfloat16)
    params["fc_b"] = jax.random.uniform(fk[1], (1, output_dim), jnp.float32,
                                        -fc_scale, fc_scale)
    return params


if __name__ == "__main__":
    VOCAB = 50
    EMB = 16
    HID = 32
    OUT = 4
    N_LAYERS = 2
    SEQ = 8
    BATCH = 2

    key = jax.random.PRNGKey(0)
    pkey, xkey = jax.random.split(key)
    params = init_params(pkey, VOCAB, EMB, HID, OUT, N_LAYERS)
    x = jax.random.randint(xkey, (SEQ, BATCH), 0, VOCAB, dtype=jnp.int32)

    fwd = jax.jit(functools.partial(rnn_forward, n_layers=N_LAYERS))
    y = fwd(x, params)
    jax.block_until_ready(y)

    y_ref = rnn_forward_ref(x, params, N_LAYERS)
    np.testing.assert_allclose(np.asarray(y), np.asarray(y_ref),
                               rtol=1e-2, atol=1e-2)

    assert y.shape == (BATCH, OUT)
    print("KERNEL_OK")
</pallas_src>

<mosaic_0001>
module attributes {stable_mosaic.version = 11 : i64} {
  func.func @_fc_kernel(%arg0: memref<2x64xf32, #tpu.memory_space<vmem>>, %arg1: memref<64x4xbf16, #tpu.memory_space<vmem>>, %arg2: memref<1x4xf32, #tpu.memory_space<vmem>>, %arg3: memref<2x4xf32, #tpu.memory_space<vmem>>) attributes {dimension_semantics = [], scalar_prefetch = 0 : i64, scratch_operands = 0 : i64, tpu.core_type = #tpu.core_type<tc>} {
    %c0 = arith.constant 0 : index
    %c0_0 = arith.constant 0 : index
    %0 = vector.load %arg0[%c0, %c0_0] : memref<2x64xf32, #tpu.memory_space<vmem>>, vector<2x64xf32>
    %1 = arith.truncf %0 : vector<2x64xf32> to vector<2x64xbf16>
    %c0_1 = arith.constant 0 : index
    %c0_2 = arith.constant 0 : index
    %2 = vector.load %arg1[%c0_1, %c0_2] : memref<64x4xbf16, #tpu.memory_space<vmem>>, vector<64x4xbf16>
    %cst = arith.constant dense<0.000000e+00> : vector<2x4xf32>
    %3 = tpu.matmul %1, %2, %cst {dimension_numbers = #tpu.dot_dimension_numbers<[1], [0], [0], [1], [0, 0, 1, 1], [], []>} : vector<2x64xbf16>, vector<64x4xbf16>, vector<2x4xf32> -> vector<2x4xf32>
    %c0_3 = arith.constant 0 : index
    %c0_4 = arith.constant 0 : index
    %4 = vector.load %arg2[%c0_3, %c0_4] : memref<1x4xf32, #tpu.memory_space<vmem>>, vector<1x4xf32>
    %5 = vector.broadcast %4 : vector<1x4xf32> to vector<2x4xf32>
    %6 = arith.addf %3, %5 : vector<2x4xf32>
    %c0_5 = arith.constant 0 : index
    %c0_6 = arith.constant 0 : index
    %7 = vector.load %arg3[%c0_5, %c0_6] : memref<2x4xf32, #tpu.memory_space<vmem>>, vector<2x4xf32>
    tpu.vector_store %arg3[%c0_5, %c0_6], %6 {strides = array<i32>} : memref<2x4xf32, #tpu.memory_space<vmem>>, vector<2x4xf32>,
    return
  }
}

module attributes {stable_mosaic.version = 11 : i64} {
  func.func @_bilstm_layer_kernel(%arg0: i32, %arg1: i32, %arg2: memref<2x8x2x32xf32, #tpu.memory_space<vmem>>, %arg3: memref<1x96x128xbf16, #tpu.memory_space<vmem>>, %arg4: memref<1x1x128xf32, #tpu.memory_space<vmem>>, %arg5: memref<1x8x2x32xf32, #tpu.memory_space<vmem>>, %arg6: memref<2x32xf32, #tpu.memory_space<vmem>>, %arg7: memref<2x32xf32, #tpu.memory_space<vmem>>) attributes {dimension_semantics = [#tpu.dimension_semantics<parallel>, #tpu.dimension_semantics<arbitrary>], iteration_bounds = array<i64: 2, 1>, scalar_prefetch = 0 : i64, scratch_operands = 2 : i64, tpu.core_type = #tpu.core_type<tc>, window_params = [{transform_indices = @transform_0, window_bounds = array<i64: 2, 8, 2, 32>}, {transform_indices = @transform_1, window_bounds = array<i64: 1, 96, 128>}, {transform_indices = @transform_2, window_bounds = array<i64: 1, 1, 128>}, {transform_indices = @transform_3, window_bounds = array<i64: 1, 8, 2, 32>}]} {
    %c0_i32 = arith.constant 0 : i32
    %0 = arith.cmpi eq, %arg1, %c0_i32 : i32
    %1 = arith.extui %0 : i1 to i32
    %c0_i32_0 = arith.constant 0 : i32
    %2 = arith.cmpi ne, %1, %c0_i32_0 : i32
    scf.if %2 {
      %cst_209 = arith.constant 0.000000e+00 : f32
      %435 = vector.broadcast %cst_209 : f32 to vector<2x32xf32>
      %c0_210 = arith.constant 0 : index
      %c0_211 = arith.constant 0 : index
      %436 = vector.load %arg6[%c0_210, %c0_211] : memref<2x32xf32, #tpu.memory_space<vmem>>, vector<2x32xf32>
      tpu.vector_store %arg6[%c0_210, %c0_211], %435 {strides = array<i32>} : memref<2x32xf32, #tpu.memory_space<vmem>>, vector<2x32xf32>,
      %cst_212 = arith.constant 0.000000e+00 : f32
      %437 = vector.broadcast %cst_212 : f32 to vector<2x32xf32>
      %c0_213 = arith.constant 0 : index
      %c0_214 = arith.constant 0 : index
      %438 = vector.load %arg7[%c0_213, %c0_214] : memref<2x32xf32, #tpu.memory_space<vmem>>, vector<2x32xf32>
      tpu.vector_store %arg7[%c0_213, %c0_214], %437 {strides = array<i32>} : memref<2x32xf32, #tpu.memory_space<vmem>>, vector<2x32xf32>,
    } else {
    }
    %c0 = arith.constant 0 : index
    %c0_1 = arith.constant 0 : index
    %c0_2 = arith.constant 0 : index
    %3 = vector.load %arg3[%c0, %c0_1, %c0_2] : memref<1x96x128xbf16, #tpu.memory_space<vmem>>, vector<1x32x128xbf16>
    %4 = vector.shape_cast %3 : vector<1x32x128xbf16> to vector<32x128xbf16>
    %c0_3 = arith.constant 0 : index
    %c32 = arith.constant 32 : index
    %c0_4 = arith.constant 0 : index
    %5 = vector.load %arg3[%c0_3, %c32, %c0_4] : memref<1x96x128xbf16, #tpu.memory_space<vmem>>, vector<1x32x128xbf16>
    %6 = vector.shape_cast %5 : vector<1x32x128xbf16> to vector<32x128xbf16>
    %c0_5 = arith.constant 0 : index
    %c64 = arith.constant 64 : index
    %c0_6 = arith.constant 0 : index
    %7 = vector.load %arg3[%c0_5, %c64, %c0_6] : memref<1x96x128xbf16, #tpu.memory_space<vmem>>, vector<1x32x128xbf16>
    %8 = vector.shape_cast %7 : vector<1x32x128xbf16> to vector<32x128xbf16>
    %c0_7 = arith.constant 0 : index
    %c0_8 = arith.constant 0 : index
    %c0_9 = arith.constant 0 : index
    %9 = vector.load %arg4[%c0_7, %c0_8, %c0_9] : memref<1x1x128xf32, #tpu.memory_space<vmem>>, vector<1x1x128xf32>
    %10 = vector.shape_cast %9 : vector<1x1x128xf32> to vector<1x128xf32>
    %c0_i32_10 = arith.constant 0 : i32
    %c2_i32 = arith.constant 2 : i32
    %11 = arith.muli %c2_i32, %c0_i32_10 : i32
    %c7_i32 = arith.constant 7 : i32
    %12 = arith.subi %c7_i32, %11 : i32
    %13 = arith.muli %arg0, %12 : i32
    %14 = arith.addi %c0_i32_10, %13 : i32
    %c0_11 = arith.constant 0 : index
    %c0_12 = arith.constant 0 : index
    %15 = vector.load %arg6[%c0_11, %c0_12] : memref<2x32xf32, #tpu.memory_space<vmem>>, vector<2x32xf32>
    %16 = arith.truncf %15 : vector<2x32xf32> to vector<2x32xbf16>
    %cst = arith.constant dense<0.000000e+00> : vector<2x128xf32>
    %17 = tpu.matmul %16, %8, %cst {dimension_numbers = #tpu.dot_dimension_numbers<[1], [0], [0], [1], [0, 0, 1, 1], [], []>} : vector<2x32xbf16>, vector<32x128xbf16>, vector<2x128xf32> -> vector<2x128xf32>
    %c0_13 = arith.constant 0 : index
    %18 = arith.index_cast %14 : i32 to index
    %c0_14 = arith.constant 0 : index
    %c0_15 = arith.constant 0 : index
    %19 = vector.load %arg2[%c0_13, %18, %c0_14, %c0_15] : memref<2x8x2x32xf32, #tpu.memory_space<vmem>>, vector<1x1x2x32xf32>
    %20 = vector.shape_cast %19 : vector<1x1x2x32xf32> to vector<2x32xf32>
    %21 = arith.truncf %20 : vector<2x32xf32> to vector<2x32xbf16>
    %cst_16 = arith.constant dense<0.000000e+00> : vector<2x128xf32>
    %22 = tpu.matmul %21, %4, %cst_16 {dimension_numbers = #tpu.dot_dimension_numbers<[1], [0], [0], [1], [0, 0, 1, 1], [], []>} : vector<2x32xbf16>, vector<32x128xbf16>, vector<2x128xf32> -> vector<2x128xf32>
    %23 = arith.addf %17, %22 : vector<2x128xf32>
    %c1 = arith.constant 1 : index
    %24 = arith.index_cast %14 : i32 to index
    %c0_17 = arith.constant 0 : index
    %c0_18 = arith.constant 0 : index
    %25 = vector.load %arg2[%c1, %24, %c0_17, %c0_18] : memref<2x8x2x32xf32, #tpu.memory_space<vmem>>, vector<1x1x2x32xf32>
    %26 = vector.shape_cast %25 : vector<1x1x2x32xf32> to vector<2x32xf32>
    %27 = arith.truncf %26 : vector<2x32xf32> to vector<2x32xbf16>
    %cst_19 = arith.constant dense<0.000000e+00> : vector<2x128xf32>
    %28 = tpu.matmul %27, %6, %cst_19 {dimension_numbers = #tpu.dot_dimension_numbers<[1], [0], [0], [1], [0, 0, 1, 1], [], []>} : vector<2x32xbf16>, vector<32x128xbf16>, vector<2x128xf32> -> vector<2x128xf32>
    %29 = arith.addf %23, %28 : vector<2x128xf32>
    %30 = vector.broadcast %10 : vector<1x128xf32> to vector<2x128xf32>
    %31 = arith.addf %29, %30 : vector<2x128xf32>
    %32 = vector.extract_strided_slice %31 {offsets = [0, 0], sizes = [2, 32], strides = [1, 1]} : vector<2x128xf32> to vector<2x32xf32>
    %33 = arith.negf %32 : vector<2x32xf32>
    %34 = math.exp %33 : vector<2x32xf32>
    %cst_20 = arith.constant 1.000000e+00 : f32
    %35 = vector.broadcast %cst_20 : f32 to vector<2x32xf32>
    %36 = arith.addf %35, %34 : vector<2x32xf32>
    %37 = arith.divf %35, %36 : vector<2x32xf32>
    %38 = vector.extract_strided_slice %31 {offsets = [0, 32], sizes = [2, 32], strides = [1, 1]} : vector<2x128xf32> to vector<2x32xf32>
    %39 = arith.negf %38 : vector<2x32xf32>
    %40 = math.exp %39 : vector<2x32xf32>
    %cst_21 = arith.constant 1.000000e+00 : f32
    %41 = vector.broadcast %cst_21 : f32 to vector<2x32xf32>
    %42 = arith.addf %41, %40 : vector<2x32xf32>
    %43 = arith.divf %41, %42 : vector<2x32xf32>
    %44 = vector.extract_strided_slice %31 {offsets = [0, 64], sizes = [2, 32], strides = [1, 1]} : vector<2x128xf32> to vector<2x32xf32>
    %45 = math.tanh %44 : vector<2x32xf32>
    %46 = vector.extract_strided_slice %31 {offsets = [0, 96], sizes = [2, 32], strides = [1, 1]} : vector<2x128xf32> to vector<2x32xf32>
    %47 = arith.negf %46 : vector<2x32xf32>
    %48 = math.exp %47 : vector<2x32xf32>
    %cst_22 = arith.constant 1.000000e+00 : f32
    %49 = vector.broadcast %cst_22 : f32 to vector<2x32xf32>
    %50 = arith.addf %49, %48 : vector<2x32xf32>
    %51 = arith.divf %49, %50 : vector<2x32xf32>
    %c0_23 = arith.constant 0 : index
    %c0_24 = arith.constant 0 : index
    %52 = vector.load %arg7[%c0_23, %c0_24] : memref<2x32xf32, #tpu.memory_space<vmem>>, vector<2x32xf32>
    %53 = arith.mulf %43, %52 : vector<2x32xf32>
    %54 = arith.mulf %37, %45 : vector<2x32xf32>
    %55 = arith.addf %53, %54 : vector<2x32xf32>
    %56 = math.tanh %55 : vector<2x32xf32>
    %57 = arith.mulf %51, %56 : vector<2x32xf32>
    %c0_25 = arith.constant 0 : index
    %c0_26 = arith.constant 0 : index
    %58 = vector.load %arg6[%c0_25, %c0_26] : memref<2x32xf32, #tpu.memory_space<vmem>>, vector<2x32xf32>
    tpu.vector_store %arg6[%c0_25, %c0_26], %57 {strides = array<i32>} : memref<2x32xf32, #tpu.memory_space<vmem>>, vector<2x32xf32>,
    %c0_27 = arith.constant 0 : index
    %c0_28 = arith.constant 0 : index
    %59 = vector.load %arg7[%c0_27, %c0_28] : memref<2x32xf32, #tpu.memory_space<vmem>>, vector<2x32xf32>
    tpu.vector_store %arg7[%c0_27, %c0_28], %55 {strides = array<i32>} : memref<2x32xf32, #tpu.memory_space<vmem>>, vector<2x32xf32>,
    %c0_29 = arith.constant 0 : index
    %60 = arith.index_cast %14 : i32 to index
    %c0_30 = arith.constant 0 : index
    %c0_31 = arith.constant 0 : index
    %61 = vector.load %arg5[%c0_29, %60, %c0_30, %c0_31] : memref<1x8x2x32xf32, #tpu.memory_space<vmem>>, vector<1x1x2x32xf32>
    %62 = vector.shape_cast %61 : vector<1x1x2x32xf32> to vector<2x32xf32>
    %63 = vector.shape_cast %57 : vector<2x32xf32> to vector<1x1x2x32xf32>
    tpu.vector_store %arg5[%c0_29, %60, %c0_30, %c0_31], %63 {strides = array<i32>} : memref<1x8x2x32xf32, #tpu.memory_space<vmem>>, vector<1x1x2x32xf32>,
    %c1_i32 = arith.constant 1 : i32
    %c2_i32_32 = arith.constant 2 : i32
    %64 = arith.muli %c2_i32_32, %c1_i32 : i32
    %c7_i32_33 = arith.constant 7 : i32
    %65 = arith.subi %c7_i32_33, %64 : i32
    %66 = arith.muli %arg0, %65 : i32
    %67 = arith.addi %c1_i32, %66 : i32
    %c0_34 = arith.constant 0 : index
    %c0_35 = arith.constant 0 : index
    %68 = vector.load %arg6[%c0_34, %c0_35] : memref<2x32xf32, #tpu.memory_space<vmem>>, vector<2x32xf32>
    %69 = arith.truncf %68 : vector<2x32xf32> to vector<2x32xbf16>
    %cst_36 = arith.constant dense<0.000000e+00> : vector<2x128xf32>
    %70 = tpu.matmul %69, %8, %cst_36 {dimension_numbers = #tpu.dot_dimension_numbers<[1], [0], [0], [1], [0, 0, 1, 1], [], []>} : vector<2x32xbf16>, vector<32x128xbf16>, vector<2x128xf32> -> vector<2x128xf32>
    %c0_37 = arith.constant 0 : index
    %71 = arith.index_cast %67 : i32 to index
    %c0_38 = arith.constant 0 : index
    %c0_39 = arith.constant 0 : index
    %72 = vector.load %arg2[%c0_37, %71, %c0_38, %c0_39] : memref<2x8x2x32xf32, #tpu.memory_space<vmem>>, vector<1x1x2x32xf32>
    %73 = vector.shape_cast %72 : vector<1x1x2x32xf32> to vector<2x32xf32>
    %74 = arith.truncf %73 : vector<2x32xf32> to vector<2x32xbf16>
    %cst_40 = arith.constant dense<0.000000e+00> : vector<2x128xf32>
    %75 = tpu.matmul %74, %4, %cst_40 {dimension_numbers = #tpu.dot_dimension_numbers<[1], [0], [0], [1], [0, 0, 1, 1], [], []>} : vector<2x32xbf16>, vector<32x128xbf16>, vector<2x128xf32> -> vector<2x128xf32>
    %76 = arith.addf %70, %75 : vector<2x128xf32>
    %c1_41 = arith.constant 1 : index
    %77 = arith.index_cast %67 : i32 to index
    %c0_42 = arith.constant 0 : index
    %c0_43 = arith.constant 0 : index
    %78 = vector.load %arg2[%c1_41, %77, %c0_42, %c0_43] : memref<2x8x2x32xf32, #tpu.memory_space<vmem>>, vector<1x1x2x32xf32>
    %79 = vector.shape_cast %78 : vector<1x1x2x32xf32> to vector<2x32xf32>
    %80 = arith.truncf %79 : vector<2x32xf32> to vector<2x32xbf16>
    %cst_44 = arith.constant dense<0.000000e+00> : vector<2x128xf32>
    %81 = tpu.matmul %80, %6, %cst_44 {dimension_numbers = #tpu.dot_dimension_numbers<[1], [0], [0], [1], [0, 0, 1, 1], [], []>} : vector<2x32xbf16>, vector<32x128xbf16>, vector<2x128xf32> -> vector<2x128xf32>
    %82 = arith.addf %76, %81 : vector<2x128xf32>
    %83 = vector.broadcast %10 : vector<1x128xf32> to vector<2x128xf32>
    %84 = arith.addf %82, %83 : vector<2x128xf32>
    %85 = vector.extract_strided_slice %84 {offsets = [0, 0], sizes = [2, 32], strides = [1, 1]} : vector<2x128xf32> to vector<2x32xf32>
    %86 = arith.negf %85 : vector<2x32xf32>
    %87 = math.exp %86 : vector<2x32xf32>
    %cst_45 = arith.constant 1.000000e+00 : f32
    %88 = vector.broadcast %cst_45 : f32 to vector<2x32xf32>
    %89 = arith.addf %88, %87 : vector<2x32xf32>
    %90 = arith.divf %88, %89 : vector<2x32xf32>
    %91 = vector.extract_strided_slice %84 {offsets = [0, 32], sizes = [2, 32], strides = [1, 1]} : vector<2x128xf32> to vector<2x32xf32>
    %92 = arith.negf %91 : vector<2x32xf32>
    %93 = math.exp %92 : vector<2x32xf32>
    %cst_46 = arith.constant 1.000000e+00 : f32
    %94 = vector.broadcast %cst_46 : f32 to vector<2x32xf32>
    %95 = arith.addf %94, %93 : vector<2x32xf32>
    %96 = arith.divf %94, %95 : vector<2x32xf32>
    %97 = vector.extract_strided_slice %84 {offsets = [0, 64], sizes = [2, 32], strides = [1, 1]} : vector<2x128xf32> to vector<2x32xf32>
    %98 = math.tanh %97 : vector<2x32xf32>
    %99 = vector.extract_strided_slice %84 {offsets = [0, 96], sizes = [2, 32], strides = [1, 1]} : vector<2x128xf32> to vector<2x32xf32>
    %100 = arith.negf %99 : vector<2x32xf32>
    %101 = math.exp %100 : vector<2x32xf32>
    %cst_47 = arith.constant 1.000000e+00 : f32
    %102 = vector.broadcast %cst_47 : f32 to vector<2x32xf32>
    %103 = arith.addf %102, %101 : vector<2x32xf32>
    %104 = arith.divf %102, %103 : vector<2x32xf32>
    %c0_48 = arith.constant 0 : index
    %c0_49 = arith.constant 0 : index
    %105 = vector.load %arg7[%c0_48, %c0_49] : memref<2x32xf32, #tpu.memory_space<vmem>>, vector<2x32xf32>
    %106 = arith.mulf %96, %105 : vector<2x32xf32>
    %107 = arith.mulf %90, %98 : vector<2x32xf32>
    %108 = arith.addf %106, %107 : vector<2x32xf32>
    %109 = math.tanh %108 : vector<2x32xf32>
    %110 = arith.mulf %104, %109 : vector<2x32xf32>
    %c0_50 = arith.constant 0 : index
    %c0_51 = arith.constant 0 : index
    %111 = vector.load %arg6[%c0_50, %c0_51] : memref<2x32xf32, #tpu.memory_space<vmem>>, vector<2x32xf32>
    tpu.vector_store %arg6[%c0_50, %c0_51], %110 {strides = array<i32>} : memref<2x32xf32, #tpu.memory_space<vmem>>, vector<2x32xf32>,
    %c0_52 = arith.constant 0 : index
    %c0_53 = arith.constant 0 : index
    %112 = vector.load %arg7[%c0_52, %c0_53] : memref<2x32xf32, #tpu.memory_space<vmem>>, vector<2x32xf32>
    tpu.vector_store %arg7[%c0_52, %c0_53], %108 {strides = array<i32>} : memref<2x32xf32, #tpu.memory_space<vmem>>, vector<2x32xf32>,
    %c0_54 = arith.constant 0 : index
    %113 = arith.index_cast %67 : i32 to index
    %c0_55 = arith.constant 0 : index
    %c0_56 = arith.constant 0 : index
    %114 = vector.load %arg5[%c0_54, %113, %c0_55, %c0_56] : memref<1x8x2x32xf32, #tpu.memory_space<vmem>>, vector<1x1x2x32xf32>
    %115 = vector.shape_cast %114 : vector<1x1x2x32xf32> to vector<2x32xf32>
    %116 = vector.shape_cast %110 : vector<2x32xf32> to vector<1x1x2x32xf32>
    tpu.vector_store %arg5[%c0_54, %113, %c0_55, %c0_56], %116 {strides = array<i32>} : memref<1x8x2x32xf32, #tpu.memory_space<vmem>>, vector<1x1x2x32xf32>,
    %c2_i32_57 = arith.constant 2 : i32
    %c2_i32_58 = arith.constant 2 : i32
    %117 = arith.muli %c2_i32_58, %c2_i32_57 : i32
    %c7_i32_59 = arith.constant 7 : i32
    %118 = arith.subi %c7_i32_59, %117 : i32
    %119 = arith.muli %arg0, %118 : i32
    %120 = arith.addi %c2_i32_57, %119 : i32
    %c0_60 = arith.constant 0 : index
    %c0_61 = arith.constant 0 : index
    %121 = vector.load %arg6[%c0_60, %c0_61] : memref<2x32xf32, #tpu.memory_space<vmem>>, vector<2x32xf32>
    %122 = arith.truncf %121 : vector<2x32xf32> to vector<2x32xbf16>
    %cst_62 = arith.constant dense<0.000000e+00> : vector<2x128xf32>
    %123 = tpu.matmul %122, %8, %cst_62 {dimension_numbers = #tpu.dot_dimension_numbers<[1], [0], [0], [1], [0, 0, 1, 1], [], []>} : vector<2x32xbf16>, vector<32x128xbf16>, vector<2x128xf32> -> vector<2x128xf32>
    %c0_63 = arith.constant 0 : index
    %124 = arith.index_cast %120 : i32 to index
    %c0_64 = arith.constant 0 : index
    %c0_65 = arith.constant 0 : index
    %125 = vector.load %arg2[%c0_63, %124, %c0_64, %c0_65] : memref<2x8x2x32xf32, #tpu.memory_space<vmem>>, vector<1x1x2x32xf32>
    %126 = vector.shape_cast %125 : vector<1x1x2x32xf32> to vector<2x32xf32>
    %127 = arith.truncf %126 : vector<2x32xf32> to vector<2x32xbf16>
    %cst_66 = arith.constant dense<0.000000e+00> : vector<2x128xf32>
    %128 = tpu.matmul %127, %4, %cst_66 {dimension_numbers = #tpu.dot_dimension_numbers<[1], [0], [0], [1], [0, 0, 1, 1], [], []>} : vector<2x32xbf16>, vector<32x128xbf16>, vector<2x128xf32> -> vector<2x128xf32>
    %129 = arith.addf %123, %128 : vector<2x128xf32>
    %c1_67 = arith.constant 1 : index
    %130 = arith.index_cast %120 : i32 to index
    %c0_68 = arith.constant 0 : index
    %c0_69 = arith.constant 0 : index
    %131 = vector.load %arg2[%c1_67, %130, %c0_68, %c0_69] : memref<2x8x2x32xf32, #tpu.memory_space<vmem>>, vector<1x1x2x32xf32>
    %132 = vector.shape_cast %131 : vector<1x1x2x32xf32> to vector<2x32xf32>
    %133 = arith.truncf %132 : vector<2x32xf32> to vector<2x32xbf16>
    %cst_70 = arith.constant dense<0.000000e+00> : vector<2x128xf32>
    %134 = tpu.matmul %133, %6, %cst_70 {dimension_numbers = #tpu.dot_dimension_numbers<[1], [0], [0], [1], [0, 0, 1, 1], [], []>} : vector<2x32xbf16>, vector<32x128xbf16>, vector<2x128xf32> -> vector<2x128xf32>
    %135 = arith.addf %129, %134 : vector<2x128xf32>
    %136 = vector.broadcast %10 : vector<1x128xf32> to vector<2x128xf32>
    %137 = arith.addf %135, %136 : vector<2x128xf32>
    %138 = vector.extract_strided_slice %137 {offsets = [0, 0], sizes = [2, 32], strides = [1, 1]} : vector<2x128xf32> to vector<2x32xf32>
    %139 = arith.negf %138 : vector<2x32xf32>
    %140 = math.exp %139 : vector<2x32xf32>
    %cst_71 = arith.constant 1.000000e+00 : f32
    %141 = vector.broadcast %cst_71 : f32 to vector<2x32xf32>
    %142 = arith.addf %141, %140 : vector<2x32xf32>
    %143 = arith.divf %141, %142 : vector<2x32xf32>
    %144 = vector.extract_strided_slice %137 {offsets = [0, 32], sizes = [2, 32], strides = [1, 1]} : vector<2x128xf32> to vector<2x32xf32>
    %145 = arith.negf %144 : vector<2x32xf32>
    %146 = math.exp %145 : vector<2x32xf32>
    %cst_72 = arith.constant 1.000000e+00 : f32
    %147 = vector.broadcast %cst_72 : f32 to vector<2x32xf32>
    %148 = arith.addf %147, %146 : vector<2x32xf32>
    %149 = arith.divf %147, %148 : vector<2x32xf32>
    %150 = vector.extract_strided_slice %137 {offsets = [0, 64], sizes = [2, 32], strides = [1, 1]} : vector<2x128xf32> to vector<2x32xf32>
    %151 = math.tanh %150 : vector<2x32xf32>
    %152 = vector.extract_strided_slice %137 {offsets = [0, 96], sizes = [2, 32], strides = [1, 1]} : vector<2x128xf32> to vector<2x32xf32>
    %153 = arith.negf %152 : vector<2x32xf32>
    %154 = math.exp %153 : vector<2x32xf32>
    %cst_73 = arith.constant 1.000000e+00 : f32
    %155 = vector.broadcast %cst_73 : f32 to vector<2x32xf32>
    %156 = arith.addf %155, %154 : vector<2x32xf32>
    %157 = arith.divf %155, %156 : vector<2x32xf32>
    %c0_74 = arith.constant 0 : index
    %c0_75 = arith.constant 0 : index
    %158 = vector.load %arg7[%c0_74, %c0_75] : memref<2x32xf32, #tpu.memory_space<vmem>>, vector<2x32xf32>
    %159 = arith.mulf %149, %158 : vector<2x32xf32>
    %160 = arith.mulf %143, %151 : vector<2x32xf32>
    %161 = arith.addf %159, %160 : vector<2x32xf32>
    %162 = math.tanh %161 : vector<2x32xf32>
    %163 = arith.mulf %157, %162 : vector<2x32xf32>
    %c0_76 = arith.constant 0 : index
    %c0_77 = arith.constant 0 : index
    %164 = vector.load %arg6[%c0_76, %c0_77] : memref<2x32xf32, #tpu.memory_space<vmem>>, vector<2x32xf32>
    tpu.vector_store %arg6[%c0_76, %c0_77], %163 {strides = array<i32>} : memref<2x32xf32, #tpu.memory_space<vmem>>, vector<2x32xf32>,
    %c0_78 = arith.constant 0 : index
    %c0_79 = arith.constant 0 : index
    %165 = vector.load %arg7[%c0_78, %c0_79] : memref<2x32xf32, #tpu.memory_space<vmem>>, vector<2x32xf32>
    tpu.vector_store %arg7[%c0_78, %c0_79], %161 {strides = array<i32>} : memref<2x32xf32, #tpu.memory_space<vmem>>, vector<2x32xf32>,
    %c0_80 = arith.constant 0 : index
    %166 = arith.index_cast %120 : i32 to index
    %c0_81 = arith.constant 0 : index
    %c0_82 = arith.constant 0 : index
    %167 = vector.load %arg5[%c0_80, %166, %c0_81, %c0_82] : memref<1x8x2x32xf32, #tpu.memory_space<vmem>>, vector<1x1x2x32xf32>
    %168 = vector.shape_cast %167 : vector<1x1x2x32xf32> to vector<2x32xf32>
    %169 = vector.shape_cast %163 : vector<2x32xf32> to vector<1x1x2x32xf32>
    tpu.vector_store %arg5[%c0_80, %166, %c0_81, %c0_82], %169 {strides = array<i32>} : memref<1x8x2x32xf32, #tpu.memory_space<vmem>>, vector<1x1x2x32xf32>,
    %c3_i32 = arith.constant 3 : i32
    %c2_i32_83 = arith.constant 2 : i32
    %170 = arith.muli %c2_i32_83, %c3_i32 : i32
    %c7_i32_84 = arith.constant 7 : i32
    %171 = arith.subi %c7_i32_84, %170 : i32
    %172 = arith.muli %arg0, %171 : i32
    %173 = arith.addi %c3_i32, %172 : i32
    %c0_85 = arith.constant 0 : index
    %c0_86 = arith.constant 0 : index
    %174 = vector.load %arg6[%c0_85, %c0_86] : memref<2x32xf32, #tpu.memory_space<vmem>>, vector<2x32xf32>
    %175 = arith.truncf %174 : vector<2x32xf32> to vector<2x32xbf16>
    %cst_87 = arith.constant dense<0.000000e+00> : vector<2x128xf32>
    %176 = tpu.matmul %175, %8, %cst_87 {dimension_numbers = #tpu.dot_dimension_numbers<[1], [0], [0], [1], [0, 0, 1, 1], [], []>} : vector<2x32xbf16>, vector<32x128xbf16>, vector<2x128xf32> -> vector<2x128xf32>
    %c0_88 = arith.constant 0 : index
    %177 = arith.index_cast %173 : i32 to index
    %c0_89 = arith.constant 0 : index
    %c0_90 = arith.constant 0 : index
    %178 = vector.load %arg2[%c0_88, %177, %c0_89, %c0_90] : memref<2x8x2x32xf32, #tpu.memory_space<vmem>>, vector<1x1x2x32xf32>
    %179 = vector.shape_cast %178 : vector<1x1x2x32xf32> to vector<2x32xf32>
    %180 = arith.truncf %179 : vector<2x32xf32> to vector<2x32xbf16>
    %cst_91 = arith.constant dense<0.000000e+00> : vector<2x128xf32>
    %181 = tpu.matmul %180, %4, %cst_91 {dimension_numbers = #tpu.dot_dimension_numbers<[1], [0], [0], [1], [0, 0, 1, 1], [], []>} : vector<2x32xbf16>, vector<32x128xbf16>, vector<2x128xf32> -> vector<2x128xf32>
    %182 = arith.addf %176, %181 : vector<2x128xf32>
    %c1_92 = arith.constant 1 : index
    %183 = arith.index_cast %173 : i32 to index
    %c0_93 = arith.constant 0 : index
    %c0_94 = arith.constant 0 : index
    %184 = vector.load %arg2[%c1_92, %183, %c0_93, %c0_94] : memref<2x8x2x32xf32, #tpu.memory_space<vmem>>, vector<1x1x2x32xf32>
    %185 = vector.shape_cast %184 : vector<1x1x2x32xf32> to vector<2x32xf32>
    %186 = arith.truncf %185 : vector<2x32xf32> to vector<2x32xbf16>
    %cst_95 = arith.constant dense<0.000000e+00> : vector<2x128xf32>
    %187 = tpu.matmul %186, %6, %cst_95 {dimension_numbers = #tpu.dot_dimension_numbers<[1], [0], [0], [1], [0, 0, 1, 1], [], []>} : vector<2x32xbf16>, vector<32x128xbf16>, vector<2x128xf32> -> vector<2x128xf32>
    %188 = arith.addf %182, %187 : vector<2x128xf32>
    %189 = vector.broadcast %10 : vector<1x128xf32> to vector<2x128xf32>
    %190 = arith.addf %188, %189 : vector<2x128xf32>
    %191 = vector.extract_strided_slice %190 {offsets = [0, 0], sizes = [2, 32], strides = [1, 1]} : vector<2x128xf32> to vector<2x32xf32>
    %192 = arith.negf %191 : vector<2x32xf32>
    %193 = math.exp %192 : vector<2x32xf32>
    %cst_96 = arith.constant 1.000000e+00 : f32
    %194 = vector.broadcast %cst_96 : f32 to vector<2x32xf32>
    %195 = arith.addf %194, %193 : vector<2x32xf32>
    %196 = arith.divf %194, %195 : vector<2x32xf32>
    %197 = vector.extract_strided_slice %190 {offsets = [0, 32], sizes = [2, 32], strides = [1, 1]} : vector<2x128xf32> to vector<2x32xf32>
    %198 = arith.negf %197 : vector<2x32xf32>
    %199 = math.exp %198 : vector<2x32xf32>
    %cst_97 = arith.constant 1.000000e+00 : f32
    %200 = vector.broadcast %cst_97 : f32 to vector<2x32xf32>
    %201 = arith.addf %200, %199 : vector<2x32xf32>
    %202 = arith.divf %200, %201 : vector<2x32xf32>
    %203 = vector.extract_strided_slice %190 {offsets = [0, 64], sizes = [2, 32], strides = [1, 1]} : vector<2x128xf32> to vector<2x32xf32>
    %204 = math.tanh %203 : vector<2x32xf32>
    %205 = vector.extract_strided_slice %190 {offsets = [0, 96], sizes = [2, 32], strides = [1, 1]} : vector<2x128xf32> to vector<2x32xf32>
    %206 = arith.negf %205 : vector<2x32xf32>
    %207 = math.exp %206 : vector<2x32xf32>
    %cst_98 = arith.constant 1.000000e+00 : f32
    %208 = vector.broadcast %cst_98 : f32 to vector<2x32xf32>
    %209 = arith.addf %208, %207 : vector<2x32xf32>
    %210 = arith.divf %208, %209 : vector<2x32xf32>
    %c0_99 = arith.constant 0 : index
    %c0_100 = arith.constant 0 : index
    %211 = vector.load %arg7[%c0_99, %c0_100] : memref<2x32xf32, #tpu.memory_space<vmem>>, vector<2x32xf32>
    %212 = arith.mulf %202, %211 : vector<2x32xf32>
    %213 = arith.mulf %196, %204 : vector<2x32xf32>
    %214 = arith.addf %212, %213 : vector<2x32xf32>
    %215 = math.tanh %214 : vector<2x32xf32>
    %216 = arith.mulf %210, %215 : vector<2x32xf32>
    %c0_101 = arith.constant 0 : index
    %c0_102 = arith.constant 0 : index
    %217 = vector.load %arg6[%c0_101, %c0_102] : memref<2x32xf32, #tpu.memory_space<vmem>>, vector<2x32xf32>
    tpu.vector_store %arg6[%c0_101, %c0_102], %216 {strides = array<i32>} : memref<2x32xf32, #tpu.memory_space<vmem>>, vector<2x32xf32>,
    %c0_103 = arith.constant 0 : index
    %c0_104 = arith.constant 0 : index
    %218 = vector.load %arg7[%c0_103, %c0_104] : memref<2x32xf32, #tpu.memory_space<vmem>>, vector<2x32xf32>
    tpu.vector_store %arg7[%c0_103, %c0_104], %214 {strides = array<i32>} : memref<2x32xf32, #tpu.memory_space<vmem>>, vector<2x32xf32>,
    %c0_105 = arith.constant 0 : index
    %219 = arith.index_cast %173 : i32 to index
    %c0_106 = arith.constant 0 : index
    %c0_107 = arith.constant 0 : index
    %220 = vector.load %arg5[%c0_105, %219, %c0_106, %c0_107] : memref<1x8x2x32xf32, #tpu.memory_space<vmem>>, vector<1x1x2x32xf32>
    %221 = vector.shape_cast %220 : vector<1x1x2x32xf32> to vector<2x32xf32>
    %222 = vector.shape_cast %216 : vector<2x32xf32> to vector<1x1x2x32xf32>
    tpu.vector_store %arg5[%c0_105, %219, %c0_106, %c0_107], %222 {strides = array<i32>} : memref<1x8x2x32xf32, #tpu.memory_space<vmem>>, vector<1x1x2x32xf32>,
    %c4_i32 = arith.constant 4 : i32
    %c2_i32_108 = arith.constant 2 : i32
    %223 = arith.muli %c2_i32_108, %c4_i32 : i32
    %c7_i32_109 = arith.constant 7 : i32
    %224 = arith.subi %c7_i32_109, %223 : i32
    %225 = arith.muli %arg0, %224 : i32
    %226 = arith.addi %c4_i32, %225 : i32
    %c0_110 = arith.constant 0 : index
    %c0_111 = arith.constant 0 : index
    %227 = vector.load %arg6[%c0_110, %c0_111] : memref<2x32xf32, #tpu.memory_space<vmem>>, vector<2x32xf32>
    %228 = arith.truncf %227 : vector<2x32xf32> to vector<2x32xbf16>
    %cst_112 = arith.constant dense<0.000000e+00> : vector<2x128xf32>
    %229 = tpu.matmul %228, %8, %cst_112 {dimension_numbers = #tpu.dot_dimension_numbers<[1], [0], [0], [1], [0, 0, 1, 1], [], []>} : vector<2x32xbf16>, vector<32x128xbf16>, vector<2x128xf32> -> vector<2x128xf32>
    %c0_113 = arith.constant 0 : index
    %230 = arith.index_cast %226 : i32 to index
    %c0_114 = arith.constant 0 : index
    %c0_115 = arith.constant 0 : index
    %231 = vector.load %arg2[%c0_113, %230, %c0_114, %c0_115] : memref<2x8x2x32xf32, #tpu.memory_space<vmem>>, vector<1x1x2x32xf32>
    %232 = vector.shape_cast %231 : vector<1x1x2x32xf32> to vector<2x32xf32>
    %233 = arith.truncf %232 : vector<2x32xf32> to vector<2x32xbf16>
    %cst_116 = arith.constant dense<0.000000e+00> : vector<2x128xf32>
    %234 = tpu.matmul %233, %4, %cst_116 {dimension_numbers = #tpu.dot_dimension_numbers<[1], [0], [0], [1], [0, 0, 1, 1], [], []>} : vector<2x32xbf16>, vector<32x128xbf16>, vector<2x128xf32> -> vector<2x128xf32>
    %235 = arith.addf %229, %234 : vector<2x128xf32>
    %c1_117 = arith.constant 1 : index
    %236 = arith.index_cast %226 : i32 to index
    %c0_118 = arith.constant 0 : index
    %c0_119 = arith.constant 0 : index
    %237 = vector.load %arg2[%c1_117, %236, %c0_118, %c0_119] : memref<2x8x2x32xf32, #tpu.memory_space<vmem>>, vector<1x1x2x32xf32>
    %238 = vector.shape_cast %237 : vector<1x1x2x32xf32> to vector<2x32xf32>
    %239 = arith.truncf %238 : vector<2x32xf32> to vector<2x32xbf16>
    %cst_120 = arith.constant dense<0.000000e+00> : vector<2x128xf32>
    %240 = tpu.matmul %239, %6, %cst_120 {dimension_numbers = #tpu.dot_dimension_numbers<[1], [0], [0], [1], [0, 0, 1, 1], [], []>} : vector<2x32xbf16>, vector<32x128xbf16>, vector<2x128xf32> -> vector<2x128xf32>
    %241 = arith.addf %235, %240 : vector<2x128xf32>
    %242 = vector.broadcast %10 : vector<1x128xf32> to vector<2x128xf32>
    %243 = arith.addf %241, %242 : vector<2x128xf32>
    %244 = vector.extract_strided_slice %243 {offsets = [0, 0], sizes = [2, 32], strides = [1, 1]} : vector<2x128xf32> to vector<2x32xf32>
    %245 = arith.negf %244 : vector<2x32xf32>
    %246 = math.exp %245 : vector<2x32xf32>
    %cst_121 = arith.constant 1.000000e+00 : f32
    %247 = vector.broadcast %cst_121 : f32 to vector<2x32xf32>
    %248 = arith.addf %247, %246 : vector<2x32xf32>
    %249 = arith.divf %247, %248 : vector<2x32xf32>
    %250 = vector.extract_strided_slice %243 {offsets = [0, 32], sizes = [2, 32], strides = [1, 1]} : vector<2x128xf32> to vector<2x32xf32>
    %251 = arith.negf %250 : vector<2x32xf32>
    %252 = math.exp %251 : vector<2x32xf32>
    %cst_122 = arith.constant 1.000000e+00 : f32
    %253 = vector.broadcast %cst_122 : f32 to vector<2x32xf32>
    %254 = arith.addf %253, %252 : vector<2x32xf32>
    %255 = arith.divf %253, %254 : vector<2x32xf32>
    %256 = vector.extract_strided_slice %243 {offsets = [0, 64], sizes = [2, 32], strides = [1, 1]} : vector<2x128xf32> to vector<2x32xf32>
    %257 = math.tanh %256 : vector<2x32xf32>
    %258 = vector.extract_strided_slice %243 {offsets = [0, 96], sizes = [2, 32], strides = [1, 1]} : vector<2x128xf32> to vector<2x32xf32>
    %259 = arith.negf %258 : vector<2x32xf32>
    %260 = math.exp %259 : vector<2x32xf32>
    %cst_123 = arith.constant 1.000000e+00 : f32
    %261 = vector.broadcast %cst_123 : f32 to vector<2x32xf32>
    %262 = arith.addf %261, %260 : vector<2x32xf32>
    %263 = arith.divf %261, %262 : vector<2x32xf32>
    %c0_124 = arith.constant 0 : index
    %c0_125 = arith.constant 0 : index
    %264 = vector.load %arg7[%c0_124, %c0_125] : memref<2x32xf32, #tpu.memory_space<vmem>>, vector<2x32xf32>
    %265 = arith.mulf %255, %264 : vector<2x32xf32>
    %266 = arith.mulf %249, %257 : vector<2x32xf32>
    %267 = arith.addf %265, %266 : vector<2x32xf32>
    %268 = math.tanh %267 : vector<2x32xf32>
    %269 = arith.mulf %263, %268 : vector<2x32xf32>
    %c0_126 = arith.constant 0 : index
    %c0_127 = arith.constant 0 : index
    %270 = vector.load %arg6[%c0_126, %c0_127] : memref<2x32xf32, #tpu.memory_space<vmem>>, vector<2x32xf32>
    tpu.vector_store %arg6[%c0_126, %c0_127], %269 {strides = array<i32>} : memref<2x32xf32, #tpu.memory_space<vmem>>, vector<2x32xf32>,
    %c0_128 = arith.constant 0 : index
    %c0_129 = arith.constant 0 : index
    %271 = vector.load %arg7[%c0_128, %c0_129] : memref<2x32xf32, #tpu.memory_space<vmem>>, vector<2x32xf32>
    tpu.vector_store %arg7[%c0_128, %c0_129], %267 {strides = array<i32>} : memref<2x32xf32, #tpu.memory_space<vmem>>, vector<2x32xf32>,
    %c0_130 = arith.constant 0 : index
    %272 = arith.index_cast %226 : i32 to index
    %c0_131 = arith.constant 0 : index
    %c0_132 = arith.constant 0 : index
    %273 = vector.load %arg5[%c0_130, %272, %c0_131, %c0_132] : memref<1x8x2x32xf32, #tpu.memory_space<vmem>>, vector<1x1x2x32xf32>
    %274 = vector.shape_cast %273 : vector<1x1x2x32xf32> to vector<2x32xf32>
    %275 = vector.shape_cast %269 : vector<2x32xf32> to vector<1x1x2x32xf32>
    tpu.vector_store %arg5[%c0_130, %272, %c0_131, %c0_132], %275 {strides = array<i32>} : memref<1x8x2x32xf32, #tpu.memory_space<vmem>>, vector<1x1x2x32xf32>,
    %c5_i32 = arith.constant 5 : i32
    %c2_i32_133 = arith.constant 2 : i32
    %276 = arith.muli %c2_i32_133, %c5_i32 : i32
    %c7_i32_134 = arith.constant 7 : i32
    %277 = arith.subi %c7_i32_134, %276 : i32
    %278 = arith.muli %arg0, %277 : i32
    %279 = arith.addi %c5_i32, %278 : i32
    %c0_135 = arith.constant 0 : index
    %c0_136 = arith.constant 0 : index
    %280 = vector.load %arg6[%c0_135, %c0_136] : memref<2x32xf32, #tpu.memory_space<vmem>>, vector<2x32xf32>
    %281 = arith.truncf %280 : vector<2x32xf32> to vector<2x32xbf16>
    %cst_137 = arith.constant dense<0.000000e+00> : vector<2x128xf32>
    %282 = tpu.matmul %281, %8, %cst_137 {dimension_numbers = #tpu.dot_dimension_numbers<[1], [0], [0], [1], [0, 0, 1, 1], [], []>} : vector<2x32xbf16>, vector<32x128xbf16>, vector<2x128xf32> -> vector<2x128xf32>
    %c0_138 = arith.constant 0 : index
    %283 = arith.index_cast %279 : i32 to index
    %c0_139 = arith.constant 0 : index
    %c0_140 = arith.constant 0 : index
    %284 = vector.load %arg2[%c0_138, %283, %c0_139, %c0_140] : memref<2x8x2x32xf32, #tpu.memory_space<vmem>>, vector<1x1x2x32xf32>
    %285 = vector.shape_cast %284 : vector<1x1x2x32xf32> to vector<2x32xf32>
    %286 = arith.truncf %285 : vector<2x32xf32> to vector<2x32xbf16>
    %cst_141 = arith.constant dense<0.000000e+00> : vector<2x128xf32>
    %287 = tpu.matmul %286, %4, %cst_141 {dimension_numbers = #tpu.dot_dimension_numbers<[1], [0], [0], [1], [0, 0, 1, 1], [], []>} : vector<2x32xbf16>, vector<32x128xbf16>, vector<2x128xf32> -> vector<2x128xf32>
    %288 = arith.addf %282, %287 : vector<2x128xf32>
    %c1_142 = arith.constant 1 : index
    %289 = arith.index_cast %279 : i32 to index
    %c0_143 = arith.constant 0 : index
    %c0_144 = arith.constant 0 : index
    %290 = vector.load %arg2[%c1_142, %289, %c0_143, %c0_144] : memref<2x8x2x32xf32, #tpu.memory_space<vmem>>, vector<1x1x2x32xf32>
    %291 = vector.shape_cast %290 : vector<1x1x2x32xf32> to vector<2x32xf32>
    %292 = arith.truncf %291 : vector<2x32xf32> to vector<2x32xbf16>
    %cst_145 = arith.constant dense<0.000000e+00> : vector<2x128xf32>
    %293 = tpu.matmul %292, %6, %cst_145 {dimension_numbers = #tpu.dot_dimension_numbers<[1], [0], [0], [1], [0, 0, 1, 1], [], []>} : vector<2x32xbf16>, vector<32x128xbf16>, vector<2x128xf32> -> vector<2x128xf32>
    %294 = arith.addf %288, %293 : vector<2x128xf32>
    %295 = vector.broadcast %10 : vector<1x128xf32> to vector<2x128xf32>
    %296 = arith.addf %294, %295 : vector<2x128xf32>
    %297 = vector.extract_strided_slice %296 {offsets = [0, 0], sizes = [2, 32], strides = [1, 1]} : vector<2x128xf32> to vector<2x32xf32>
    %298 = arith.negf %297 : vector<2x32xf32>
    %299 = math.exp %298 : vector<2x32xf32>
    %cst_146 = arith.constant 1.000000e+00 : f32
    %300 = vector.broadcast %cst_146 : f32 to vector<2x32xf32>
    %301 = arith.addf %300, %299 : vector<2x32xf32>
    %302 = arith.divf %300, %301 : vector<2x32xf32>
    %303 = vector.extract_strided_slice %296 {offsets = [0, 32], sizes = [2, 32], strides = [1, 1]} : vector<2x128xf32> to vector<2x32xf32>
    %304 = arith.negf %303 : vector<2x32xf32>
    %305 = math.exp %304 : vector<2x32xf32>
    %cst_147 = arith.constant 1.000000e+00 : f32
    %306 = vector.broadcast %cst_147 : f32 to vector<2x32xf32>
    %307 = arith.addf %306, %305 : vector<2x32xf32>
    %308 = arith.divf %306, %307 : vector<2x32xf32>
    %309 = vector.extract_strided_slice %296 {offsets = [0, 64], sizes = [2, 32], strides = [1, 1]} : vector<2x128xf32> to vector<2x32xf32>
    %310 = math.tanh %309 : vector<2x32xf32>
    %311 = vector.extract_strided_slice %296 {offsets = [0, 96], sizes = [2, 32], strides = [1, 1]} : vector<2x128xf32> to vector<2x32xf32>
    %312 = arith.negf %311 : vector<2x32xf32>
    %313 = math.exp %312 : vector<2x32xf32>
    %cst_148 = arith.constant 1.000000e+00 : f32
    %314 = vector.broadcast %cst_148 : f32 to vector<2x32xf32>
    %315 = arith.addf %314, %313 : vector<2x32xf32>
    %316 = arith.divf %314, %315 : vector<2x32xf32>
    %c0_149 = arith.constant 0 : index
    %c0_150 = arith.constant 0 : index
    %317 = vector.load %arg7[%c0_149, %c0_150] : memref<2x32xf32, #tpu.memory_space<vmem>>, vector<2x32xf32>
    %318 = arith.mulf %308, %317 : vector<2x32xf32>
    %319 = arith.mulf %302, %310 : vector<2x32xf32>
    %320 = arith.addf %318, %319 : vector<2x32xf32>
    %321 = math.tanh %320 : vector<2x32xf32>
    %322 = arith.mulf %316, %321 : vector<2x32xf32>
    %c0_151 = arith.constant 0 : index
    %c0_152 = arith.constant 0 : index
    %323 = vector.load %arg6[%c0_151, %c0_152] : memref<2x32xf32, #tpu.memory_space<vmem>>, vector<2x32xf32>
    tpu.vector_store %arg6[%c0_151, %c0_152], %322 {strides = array<i32>} : memref<2x32xf32, #tpu.memory_space<vmem>>, vector<2x32xf32>,
    %c0_153 = arith.constant 0 : index
    %c0_154 = arith.constant 0 : index
    %324 = vector.load %arg7[%c0_153, %c0_154] : memref<2x32xf32, #tpu.memory_space<vmem>>, vector<2x32xf32>
    tpu.vector_store %arg7[%c0_153, %c0_154], %320 {strides = array<i32>} : memref<2x32xf32, #tpu.memory_space<vmem>>, vector<2x32xf32>,
    %c0_155 = arith.constant 0 : index
    %325 = arith.index_cast %279 : i32 to index
    %c0_156 = arith.constant 0 : index
    %c0_157 = arith.constant 0 : index
    %326 = vector.load %arg5[%c0_155, %325, %c0_156, %c0_157] : memref<1x8x2x32xf32, #tpu.memory_space<vmem>>, vector<1x1x2x32xf32>
    %327 = vector.shape_cast %326 : vector<1x1x2x32xf32> to vector<2x32xf32>
    %328 = vector.shape_cast %322 : vector<2x32xf32> to vector<1x1x2x32xf32>
    tpu.vector_store %arg5[%c0_155, %325, %c0_156, %c0_157], %328 {strides = array<i32>} : memref<1x8x2x32xf32, #tpu.memory_space<vmem>>, vector<1x1x2x32xf32>,
    %c6_i32 = arith.constant 6 : i32
    %c2_i32_158 = arith.constant 2 : i32
    %329 = arith.muli %c2_i32_158, %c6_i32 : i32
    %c7_i32_159 = arith.constant 7 : i32
    %330 = arith.subi %c7_i32_159, %329 : i32
    %331 = arith.muli %arg0, %330 : i32
    %332 = arith.addi %c6_i32, %331 : i32
    %c0_160 = arith.constant 0 : index
    %c0_161 = arith.constant 0 : index
    %333 = vector.load %arg6[%c0_160, %c0_161] : memref<2x32xf32, #tpu.memory_space<vmem>>, vector<2x32xf32>
    %334 = arith.truncf %333 : vector<2x32xf32> to vector<2x32xbf16>
    %cst_162 = arith.constant dense<0.000000e+00> : vector<2x128xf32>
    %335 = tpu.matmul %334, %8, %cst_162 {dimension_numbers = #tpu.dot_dimension_numbers<[1], [0], [0], [1], [0, 0, 1, 1], [], []>} : vector<2x32xbf16>, vector<32x128xbf16>, vector<2x128xf32> -> vector<2x128xf32>
    %c0_163 = arith.constant 0 : index
    %336 = arith.index_cast %332 : i32 to index
    %c0_164 = arith.constant 0 : index
    %c0_165 = arith.constant 0 : index
    %337 = vector.load %arg2[%c0_163, %336, %c0_164, %c0_165] : memref<2x8x2x32xf32, #tpu.memory_space<vmem>>, vector<1x1x2x32xf32>
    %338 = vector.shape_cast %337 : vector<1x1x2x32xf32> to vector<2x32xf32>
    %339 = arith.truncf %338 : vector<2x32xf32> to vector<2x32xbf16>
    %cst_166 = arith.constant dense<0.000000e+00> : vector<2x128xf32>
    %340 = tpu.matmul %339, %4, %cst_166 {dimension_numbers = #tpu.dot_dimension_numbers<[1], [0], [0], [1], [0, 0, 1, 1], [], []>} : vector<2x32xbf16>, vector<32x128xbf16>, vector<2x128xf32> -> vector<2x128xf32>
    %341 = arith.addf %335, %340 : vector<2x128xf32>
    %c1_167 = arith.constant 1 : index
    %342 = arith.index_cast %332 : i32 to index
    %c0_168 = arith.constant 0 : index
    %c0_169 = arith.constant 0 : index
    %343 = vector.load %arg2[%c1_167, %342, %c0_168, %c0_169] : memref<2x8x2x32xf32, #tpu.memory_space<vmem>>, vector<1x1x2x32xf32>
    %344 = vector.shape_cast %343 : vector<1x1x2x32xf32> to vector<2x32xf32>
    %345 = arith.truncf %344 : vector<2x32xf32> to vector<2x32xbf16>
    %cst_170 = arith.constant dense<0.000000e+00> : vector<2x128xf32>
    %346 = tpu.matmul %345, %6, %cst_170 {dimension_numbers = #tpu.dot_dimension_numbers<[1], [0], [0], [1], [0, 0, 1, 1], [], []>} : vector<2x32xbf16>, vector<32x128xbf16>, vector<2x128xf32> -> vector<2x128xf32>
    %347 = arith.addf %341, %346 : vector<2x128xf32>
    %348 = vector.broadcast %10 : vector<1x128xf32> to vector<2x128xf32>
    %349 = arith.addf %347, %348 : vector<2x128xf32>
    %350 = vector.extract_strided_slice %349 {offsets = [0, 0], sizes = [2, 32], strides = [1, 1]} : vector<2x128xf32> to vector<2x32xf32>
    %351 = arith.negf %350 : vector<2x32xf32>
    %352 = math.exp %351 : vector<2x32xf32>
    %cst_171 = arith.constant 1.000000e+00 : f32
    %353 = vector.broadcast %cst_171 : f32 to vector<2x32xf32>
    %354 = arith.addf %353, %352 : vector<2x32xf32>
    %355 = arith.divf %353, %354 : vector<2x32xf32>
    %356 = vector.extract_strided_slice %349 {offsets = [0, 32], sizes = [2, 32], strides = [1, 1]} : vector<2x128xf32> to vector<2x32xf32>
    %357 = arith.negf %356 : vector<2x32xf32>
    %358 = math.exp %357 : vector<2x32xf32>
    %cst_172 = arith.constant 1.000000e+00 : f32
    %359 = vector.broadcast %cst_172 : f32 to vector<2x32xf32>
    %360 = arith.addf %359, %358 : vector<2x32xf32>
    %361 = arith.divf %359, %360 : vector<2x32xf32>
    %362 = vector.extract_strided_slice %349 {offsets = [0, 64], sizes = [2, 32], strides = [1, 1]} : vector<2x128xf32> to vector<2x32xf32>
    %363 = math.tanh %362 : vector<2x32xf32>
    %364 = vector.extract_strided_slice %349 {offsets = [0, 96], sizes = [2, 32], strides = [1, 1]} : vector<2x128xf32> to vector<2x32xf32>
    %365 = arith.negf %364 : vector<2x32xf32>
    %366 = math.exp %365 : vector<2x32xf32>
    %cst_173 = arith.constant 1.000000e+00 : f32
    %367 = vector.broadcast %cst_173 : f32 to vector<2x32xf32>
    %368 = arith.addf %367, %366 : vector<2x32xf32>
    %369 = arith.divf %367, %368 : vector<2x32xf32>
    %c0_174 = arith.constant 0 : index
    %c0_175 = arith.constant 0 : index
    %370 = vector.load %arg7[%c0_174, %c0_175] : memref<2x32xf32, #tpu.memory_space<vmem>>, vector<2x32xf32>
    %371 = arith.mulf %361, %370 : vector<2x32xf32>
    %372 = arith.mulf %355, %363 : vector<2x32xf32>
    %373 = arith.addf %371, %372 : vector<2x32xf32>
    %374 = math.tanh %373 : vector<2x32xf32>
    %375 = arith.mulf %369, %374 : vector<2x32xf32>
    %c0_176 = arith.constant 0 : index
    %c0_177 = arith.constant 0 : index
    %376 = vector.load %arg6[%c0_176, %c0_177] : memref<2x32xf32, #tpu.memory_space<vmem>>, vector<2x32xf32>
    tpu.vector_store %arg6[%c0_176, %c0_177], %375 {strides = array<i32>} : memref<2x32xf32, #tpu.memory_space<vmem>>, vector<2x32xf32>,
    %c0_178 = arith.constant 0 : index
    %c0_179 = arith.constant 0 : index
    %377 = vector.load %arg7[%c0_178, %c0_179] : memref<2x32xf32, #tpu.memory_space<vmem>>, vector<2x32xf32>
    tpu.vector_store %arg7[%c0_178, %c0_179], %373 {strides = array<i32>} : memref<2x32xf32, #tpu.memory_space<vmem>>, vector<2x32xf32>,
    %c0_180 = arith.constant 0 : index
    %378 = arith.index_cast %332 : i32 to index
    %c0_181 = arith.constant 0 : index
    %c0_182 = arith.constant 0 : index
    %379 = vector.load %arg5[%c0_180, %378, %c0_181, %c0_182] : memref<1x8x2x32xf32, #tpu.memory_space<vmem>>, vector<1x1x2x32xf32>
    %380 = vector.shape_cast %379 : vector<1x1x2x32xf32> to vector<2x32xf32>
    %381 = vector.shape_cast %375 : vector<2x32xf32> to vector<1x1x2x32xf32>
    tpu.vector_store %arg5[%c0_180, %378, %c0_181, %c0_182], %381 {strides = array<i32>} : memref<1x8x2x32xf32, #tpu.memory_space<vmem>>, vector<1x1x2x32xf32>,
    %c7_i32_183 = arith.constant 7 : i32
    %c2_i32_184 = arith.constant 2 : i32
    %382 = arith.muli %c2_i32_184, %c7_i32_183 : i32
    %c7_i32_185 = arith.constant 7 : i32
    %383 = arith.subi %c7_i32_185, %382 : i32
    %384 = arith.muli %arg0, %383 : i32
    %385 = arith.addi %c7_i32_183, %384 : i32
    %c0_186 = arith.constant 0 : index
    %c0_187 = arith.constant 0 : index
    %386 = vector.load %arg6[%c0_186, %c0_187] : memref<2x32xf32, #tpu.memory_space<vmem>>, vector<2x32xf32>
    %387 = arith.truncf %386 : vector<2x32xf32> to vector<2x32xbf16>
    %cst_188 = arith.constant dense<0.000000e+00> : vector<2x128xf32>
    %388 = tpu.matmul %387, %8, %cst_188 {dimension_numbers = #tpu.dot_dimension_numbers<[1], [0], [0], [1], [0, 0, 1, 1], [], []>} : vector<2x32xbf16>, vector<32x128xbf16>, vector<2x128xf32> -> vector<2x128xf32>
    %c0_189 = arith.constant 0 : index
    %389 = arith.index_cast %385 : i32 to index
    %c0_190 = arith.constant 0 : index
    %c0_191 = arith.constant 0 : index
    %390 = vector.load %arg2[%c0_189, %389, %c0_190, %c0_191] : memref<2x8x2x32xf32, #tpu.memory_space<vmem>>, vector<1x1x2x32xf32>
    %391 = vector.shape_cast %390 : vector<1x1x2x32xf32> to vector<2x32xf32>
    %392 = arith.truncf %391 : vector<2x32xf32> to vector<2x32xbf16>
    %cst_192 = arith.constant dense<0.000000e+00> : vector<2x128xf32>
    %393 = tpu.matmul %392, %4, %cst_192 {dimension_numbers = #tpu.dot_dimension_numbers<[1], [0], [0], [1], [0, 0, 1, 1], [], []>} : vector<2x32xbf16>, vector<32x128xbf16>, vector<2x128xf32> -> vector<2x128xf32>
    %394 = arith.addf %388, %393 : vector<2x128xf32>
    %c1_193 = arith.constant 1 : index
    %395 = arith.index_cast %385 : i32 to index
    %c0_194 = arith.constant 0 : index
    %c0_195 = arith.constant 0 : index
    %396 = vector.load %arg2[%c1_193, %395, %c0_194, %c0_195] : memref<2x8x2x32xf32, #tpu.memory_space<vmem>>, vector<1x1x2x32xf32>
    %397 = vector.shape_cast %396 : vector<1x1x2x32xf32> to vector<2x32xf32>
    %398 = arith.truncf %397 : vector<2x32xf32> to vector<2x32xbf16>
    %cst_196 = arith.constant dense<0.000000e+00> : vector<2x128xf32>
    %399 = tpu.matmul %398, %6, %cst_196 {dimension_numbers = #tpu.dot_dimension_numbers<[1], [0], [0], [1], [0, 0, 1, 1], [], []>} : vector<2x32xbf16>, vector<32x128xbf16>, vector<2x128xf32> -> vector<2x128xf32>
    %400 = arith.addf %394, %399 : vector<2x128xf32>
    %401 = vector.broadcast %10 : vector<1x128xf32> to vector<2x128xf32>
    %402 = arith.addf %400, %401 : vector<2x128xf32>
    %403 = vector.extract_strided_slice %402 {offsets = [0, 0], sizes = [2, 32], strides = [1, 1]} : vector<2x128xf32> to vector<2x32xf32>
    %404 = arith.negf %403 : vector<2x32xf32>
    %405 = math.exp %404 : vector<2x32xf32>
    %cst_197 = arith.constant 1.000000e+00 : f32
    %406 = vector.broadcast %cst_197 : f32 to vector<2x32xf32>
    %407 = arith.addf %406, %405 : vector<2x32xf32>
    %408 = arith.divf %406, %407 : vector<2x32xf32>
    %409 = vector.extract_strided_slice %402 {offsets = [0, 32], sizes = [2, 32], strides = [1, 1]} : vector<2x128xf32> to vector<2x32xf32>
    %410 = arith.negf %409 : vector<2x32xf32>
    %411 = math.exp %410 : vector<2x32xf32>
    %cst_198 = arith.constant 1.000000e+00 : f32
    %412 = vector.broadcast %cst_198 : f32 to vector<2x32xf32>
    %413 = arith.addf %412, %411 : vector<2x32xf32>
    %414 = arith.divf %412, %413 : vector<2x32xf32>
    %415 = vector.extract_strided_slice %402 {offsets = [0, 64], sizes = [2, 32], strides = [1, 1]} : vector<2x128xf32> to vector<2x32xf32>
    %416 = math.tanh %415 : vector<2x32xf32>
    %417 = vector.extract_strided_slice %402 {offsets = [0, 96], sizes = [2, 32], strides = [1, 1]} : vector<2x128xf32> to vector<2x32xf32>
    %418 = arith.negf %417 : vector<2x32xf32>
    %419 = math.exp %418 : vector<2x32xf32>
    %cst_199 = arith.constant 1.000000e+00 : f32
    %420 = vector.broadcast %cst_199 : f32 to vector<2x32xf32>
    %421 = arith.addf %420, %419 : vector<2x32xf32>
    %422 = arith.divf %420, %421 : vector<2x32xf32>
    %c0_200 = arith.constant 0 : index
    %c0_201 = arith.constant 0 : index
    %423 = vector.load %arg7[%c0_200, %c0_201] : memref<2x32xf32, #tpu.memory_space<vmem>>, vector<2x32xf32>
    %424 = arith.mulf %414, %423 : vector<2x32xf32>
    %425 = arith.mulf %408, %416 : vector<2x32xf32>
    %426 = arith.addf %424, %425 : vector<2x32xf32>
    %427 = math.tanh %426 : vector<2x32xf32>
    %428 = arith.mulf %422, %427 : vector<2x32xf32>
    %c0_202 = arith.constant 0 : index
    %c0_203 = arith.constant 0 : index
    %429 = vector.load %arg6[%c0_202, %c0_203] : memref<2x32xf32, #tpu.memory_space<vmem>>, vector<2x32xf32>
    tpu.vector_store %arg6[%c0_202, %c0_203], %428 {strides = array<i32>} : memref<2x32xf32, #tpu.memory_space<vmem>>, vector<2x32xf32>,
    %c0_204 = arith.constant 0 : index
    %c0_205 = arith.constant 0 : index
    %430 = vector.load %arg7[%c0_204, %c0_205] : memref<2x32xf32, #tpu.memory_space<vmem>>, vector<2x32xf32>
    tpu.vector_store %arg7[%c0_204, %c0_205], %426 {strides = array<i32>} : memref<2x32xf32, #tpu.memory_space<vmem>>, vector<2x32xf32>,
    %c0_206 = arith.constant 0 : index
    %431 = arith.index_cast %385 : i32 to index
    %c0_207 = arith.constant 0 : index
    %c0_208 = arith.constant 0 : index
    %432 = vector.load %arg5[%c0_206, %431, %c0_207, %c0_208] : memref<1x8x2x32xf32, #tpu.memory_space<vmem>>, vector<1x1x2x32xf32>
    %433 = vector.shape_cast %432 : vector<1x1x2x32xf32> to vector<2x32xf32>
    %434 = vector.shape_cast %428 : vector<2x32xf32> to vector<1x1x2x32xf32>
    tpu.vector_store %arg5[%c0_206, %431, %c0_207, %c0_208], %434 {strides = array<i32>} : memref<1x8x2x32xf32, #tpu.memory_space<vmem>>, vector<1x1x2x32xf32>,
    %c8_i32 = arith.constant 8 : i32
    return
  }
  func.func @transform_0(%arg0: i32, %arg1: i32) -> (i32, i32, i32, i32) {
    %c2_i32 = arith.constant 2 : i32
    %0 = arith.muli %c2_i32, %arg1 : i32
    %c0_i32 = arith.constant 0 : i32
    %1 = arith.subi %c0_i32, %0 : i32
    %2 = arith.muli %arg0, %1 : i32
    %3 = arith.addi %arg1, %2 : i32
    %c0_i32_0 = arith.constant 0 : i32
    %c0_i32_1 = arith.constant 0 : i32
    %c0_i32_2 = arith.constant 0 : i32
    %c0_i32_3 = arith.constant 0 : i32
    return %c0_i32_0, %3, %c0_i32_1, %c0_i32_2 : i32, i32, i32, i32
  }
  func.func @transform_1(%arg0: i32, %arg1: i32) -> (i32, i32, i32) {
    %c0_i32 = arith.constant 0 : i32
    %c0_i32_0 = arith.constant 0 : i32
    %c0_i32_1 = arith.constant 0 : i32
    return %arg0, %c0_i32, %c0_i32_0 : i32, i32, i32
  }
  func.func @transform_2(%arg0: i32, %arg1: i32) -> (i32, i32, i32) {
    %c0_i32 = arith.constant 0 : i32
    %c0_i32_0 = arith.constant 0 : i32
    %c0_i32_1 = arith.constant 0 : i32
    return %arg0, %c0_i32, %c0_i32_0 : i32, i32, i32
  }
  func.func @transform_3(%arg0: i32, %arg1: i32) -> (i32, i32, i32, i32) {
    %c2_i32 = arith.constant 2 : i32
    %0 = arith.muli %c2_i32, %arg1 : i32
    %c0_i32 = arith.constant 0 : i32
    %1 = arith.subi %c0_i32, %0 : i32
    %2 = arith.muli %arg0, %1 : i32
    %3 = arith.addi %arg1, %2 : i32
    %c0_i32_0 = arith.constant 0 : i32
    %c0_i32_1 = arith.constant 0 : i32
    %c0_i32_2 = arith.constant 0 : i32
    return %arg0, %3, %c0_i32_0, %c0_i32_1 : i32, i32, i32, i32
  }
}

module attributes {stable_mosaic.version = 11 : i64} {
  func.func @_bilstm_layer_kernel(%arg0: i32, %arg1: i32, %arg2: memref<1x8x2x16xf32, #tpu.memory_space<vmem>>, %arg3: memref<1x48x128xbf16, #tpu.memory_space<vmem>>, %arg4: memref<1x1x128xf32, #tpu.memory_space<vmem>>, %arg5: memref<1x8x2x32xf32, #tpu.memory_space<vmem>>, %arg6: memref<2x32xf32, #tpu.memory_space<vmem>>, %arg7: memref<2x32xf32, #tpu.memory_space<vmem>>) attributes {dimension_semantics = [#tpu.dimension_semantics<parallel>, #tpu.dimension_semantics<arbitrary>], iteration_bounds = array<i64: 2, 1>, scalar_prefetch = 0 : i64, scratch_operands = 2 : i64, tpu.core_type = #tpu.core_type<tc>, window_params = [{transform_indices = @transform_0, window_bounds = array<i64: 1, 8, 2, 16>}, {transform_indices = @transform_1, window_bounds = array<i64: 1, 48, 128>}, {transform_indices = @transform_2, window_bounds = array<i64: 1, 1, 128>}, {transform_indices = @transform_3, window_bounds = array<i64: 1, 8, 2, 32>}]} {
    %c0_i32 = arith.constant 0 : i32
    %0 = arith.cmpi eq, %arg1, %c0_i32 : i32
    %1 = arith.extui %0 : i1 to i32
    %c0_i32_0 = arith.constant 0 : i32
    %2 = arith.cmpi ne, %1, %c0_i32_0 : i32
    scf.if %2 {
      %cst_176 = arith.constant 0.000000e+00 : f32
      %385 = vector.broadcast %cst_176 : f32 to vector<2x32xf32>
      %c0_177 = arith.constant 0 : index
      %c0_178 = arith.constant 0 : index
      %386 = vector.load %arg6[%c0_177, %c0_178] : memref<2x32xf32, #tpu.memory_space<vmem>>, vector<2x32xf32>
      tpu.vector_store %arg6[%c0_177, %c0_178], %385 {strides = array<i32>} : memref<2x32xf32, #tpu.memory_space<vmem>>, vector<2x32xf32>,
      %cst_179 = arith.constant 0.000000e+00 : f32
      %387 = vector.broadcast %cst_179 : f32 to vector<2x32xf32>
      %c0_180 = arith.constant 0 : index
      %c0_181 = arith.constant 0 : index
      %388 = vector.load %arg7[%c0_180, %c0_181] : memref<2x32xf32, #tpu.memory_space<vmem>>, vector<2x32xf32>
      tpu.vector_store %arg7[%c0_180, %c0_181], %387 {strides = array<i32>} : memref<2x32xf32, #tpu.memory_space<vmem>>, vector<2x32xf32>,
    } else {
    }
    %c0 = arith.constant 0 : index
    %c0_1 = arith.constant 0 : index
    %c0_2 = arith.constant 0 : index
    %3 = vector.load %arg3[%c0, %c0_1, %c0_2] : memref<1x48x128xbf16, #tpu.memory_space<vmem>>, vector<1x16x128xbf16>
    %4 = vector.shape_cast %3 : vector<1x16x128xbf16> to vector<16x128xbf16>
    %c0_3 = arith.constant 0 : index
    %c16 = arith.constant 16 : index
    %c0_4 = arith.constant 0 : index
    %5 = vector.load %arg3[%c0_3, %c16, %c0_4] : memref<1x48x128xbf16, #tpu.memory_space<vmem>>, vector<1x32x128xbf16>
    %6 = vector.shape_cast %5 : vector<1x32x128xbf16> to vector<32x128xbf16>
    %c0_5 = arith.constant 0 : index
    %c0_6 = arith.constant 0 : index
    %c0_7 = arith.constant 0 : index
    %7 = vector.load %arg4[%c0_5, %c0_6, %c0_7] : memref<1x1x128xf32, #tpu.memory_space<vmem>>, vector<1x1x128xf32>
    %8 = vector.shape_cast %7 : vector<1x1x128xf32> to vector<1x128xf32>
    %c0_i32_8 = arith.constant 0 : i32
    %c2_i32 = arith.constant 2 : i32
    %9 = arith.muli %c2_i32, %c0_i32_8 : i32
    %c7_i32 = arith.constant 7 : i32
    %10 = arith.subi %c7_i32, %9 : i32
    %11 = arith.muli %arg0, %10 : i32
    %12 = arith.addi %c0_i32_8, %11 : i32
    %c0_9 = arith.constant 0 : index
    %c0_10 = arith.constant 0 : index
    %13 = vector.load %arg6[%c0_9, %c0_10] : memref<2x32xf32, #tpu.memory_space<vmem>>, vector<2x32xf32>
    %14 = arith.truncf %13 : vector<2x32xf32> to vector<2x32xbf16>
    %cst = arith.constant dense<0.000000e+00> : vector<2x128xf32>
    %15 = tpu.matmul %14, %6, %cst {dimension_numbers = #tpu.dot_dimension_numbers<[1], [0], [0], [1], [0, 0, 1, 1], [], []>} : vector<2x32xbf16>, vector<32x128xbf16>, vector<2x128xf32> -> vector<2x128xf32>
    %c0_11 = arith.constant 0 : index
    %16 = arith.index_cast %12 : i32 to index
    %c0_12 = arith.constant 0 : index
    %c0_13 = arith.constant 0 : index
    %17 = vector.load %arg2[%c0_11, %16, %c0_12, %c0_13] : memref<1x8x2x16xf32, #tpu.memory_space<vmem>>, vector<1x1x2x16xf32>
    %18 = vector.shape_cast %17 : vector<1x1x2x16xf32> to vector<2x16xf32>
    %19 = arith.truncf %18 : vector<2x16xf32> to vector<2x16xbf16>
    %cst_14 = arith.constant dense<0.000000e+00> : vector<2x128xf32>
    %20 = tpu.matmul %19, %4, %cst_14 {dimension_numbers = #tpu.dot_dimension_numbers<[1], [0], [0], [1], [0, 0, 1, 1], [], []>} : vector<2x16xbf16>, vector<16x128xbf16>, vector<2x128xf32> -> vector<2x128xf32>
    %21 = arith.addf %15, %20 : vector<2x128xf32>
    %22 = vector.broadcast %8 : vector<1x128xf32> to vector<2x128xf32>
    %23 = arith.addf %21, %22 : vector<2x128xf32>
    %24 = vector.extract_strided_slice %23 {offsets = [0, 0], sizes = [2, 32], strides = [1, 1]} : vector<2x128xf32> to vector<2x32xf32>
    %25 = arith.negf %24 : vector<2x32xf32>
    %26 = math.exp %25 : vector<2x32xf32>
    %cst_15 = arith.constant 1.000000e+00 : f32
    %27 = vector.broadcast %cst_15 : f32 to vector<2x32xf32>
    %28 = arith.addf %27, %26 : vector<2x32xf32>
    %29 = arith.divf %27, %28 : vector<2x32xf32>
    %30 = vector.extract_strided_slice %23 {offsets = [0, 32], sizes = [2, 32], strides = [1, 1]} : vector<2x128xf32> to vector<2x32xf32>
    %31 = arith.negf %30 : vector<2x32xf32>
    %32 = math.exp %31 : vector<2x32xf32>
    %cst_16 = arith.constant 1.000000e+00 : f32
    %33 = vector.broadcast %cst_16 : f32 to vector<2x32xf32>
    %34 = arith.addf %33, %32 : vector<2x32xf32>
    %35 = arith.divf %33, %34 : vector<2x32xf32>
    %36 = vector.extract_strided_slice %23 {offsets = [0, 64], sizes = [2, 32], strides = [1, 1]} : vector<2x128xf32> to vector<2x32xf32>
    %37 = math.tanh %36 : vector<2x32xf32>
    %38 = vector.extract_strided_slice %23 {offsets = [0, 96], sizes = [2, 32], strides = [1, 1]} : vector<2x128xf32> to vector<2x32xf32>
    %39 = arith.negf %38 : vector<2x32xf32>
    %40 = math.exp %39 : vector<2x32xf32>
    %cst_17 = arith.constant 1.000000e+00 : f32
    %41 = vector.broadcast %cst_17 : f32 to vector<2x32xf32>
    %42 = arith.addf %41, %40 : vector<2x32xf32>
    %43 = arith.divf %41, %42 : vector<2x32xf32>
    %c0_18 = arith.constant 0 : index
    %c0_19 = arith.constant 0 : index
    %44 = vector.load %arg7[%c0_18, %c0_19] : memref<2x32xf32, #tpu.memory_space<vmem>>, vector<2x32xf32>
    %45 = arith.mulf %35, %44 : vector<2x32xf32>
    %46 = arith.mulf %29, %37 : vector<2x32xf32>
    %47 = arith.addf %45, %46 : vector<2x32xf32>
    %48 = math.tanh %47 : vector<2x32xf32>
    %49 = arith.mulf %43, %48 : vector<2x32xf32>
    %c0_20 = arith.constant 0 : index
    %c0_21 = arith.constant 0 : index
    %50 = vector.load %arg6[%c0_20, %c0_21] : memref<2x32xf32, #tpu.memory_space<vmem>>, vector<2x32xf32>
    tpu.vector_store %arg6[%c0_20, %c0_21], %49 {strides = array<i32>} : memref<2x32xf32, #tpu.memory_space<vmem>>, vector<2x32xf32>,
    %c0_22 = arith.constant 0 : index
    %c0_23 = arith.constant 0 : index
    %51 = vector.load %arg7[%c0_22, %c0_23] : memref<2x32xf32, #tpu.memory_space<vmem>>, vector<2x32xf32>
    tpu.vector_store %arg7[%c0_22, %c0_23], %47 {strides = array<i32>} : memref<2x32xf32, #tpu.memory_space<vmem>>, vector<2x32xf32>,
    %c0_24 = arith.constant 0 : index
    %52 = arith.index_cast %12 : i32 to index
    %c0_25 = arith.constant 0 : index
    %c0_26 = arith.constant 0 : index
    %53 = vector.load %arg5[%c0_24, %52, %c0_25, %c0_26] : memref<1x8x2x32xf32, #tpu.memory_space<vmem>>, vector<1x1x2x32xf32>
    %54 = vector.shape_cast %53 : vector<1x1x2x32xf32> to vector<2x32xf32>
    %55 = vector.shape_cast %49 : vector<2x32xf32> to vector<1x1x2x32xf32>
    tpu.vector_store %arg5[%c0_24, %52, %c0_25, %c0_26], %55 {strides = array<i32>} : memref<1x8x2x32xf32, #tpu.memory_space<vmem>>, vector<1x1x2x32xf32>,
    %c1_i32 = arith.constant 1 : i32
    %c2_i32_27 = arith.constant 2 : i32
    %56 = arith.muli %c2_i32_27, %c1_i32 : i32
    %c7_i32_28 = arith.constant 7 : i32
    %57 = arith.subi %c7_i32_28, %56 : i32
    %58 = arith.muli %arg0, %57 : i32
    %59 = arith.addi %c1_i32, %58 : i32
    %c0_29 = arith.constant 0 : index
    %c0_30 = arith.constant 0 : index
    %60 = vector.load %arg6[%c0_29, %c0_30] : memref<2x32xf32, #tpu.memory_space<vmem>>, vector<2x32xf32>
    %61 = arith.truncf %60 : vector<2x32xf32> to vector<2x32xbf16>
    %cst_31 = arith.constant dense<0.000000e+00> : vector<2x128xf32>
    %62 = tpu.matmul %61, %6, %cst_31 {dimension_numbers = #tpu.dot_dimension_numbers<[1], [0], [0], [1], [0, 0, 1, 1], [], []>} : vector<2x32xbf16>, vector<32x128xbf16>, vector<2x128xf32> -> vector<2x128xf32>
    %c0_32 = arith.constant 0 : index
    %63 = arith.index_cast %59 : i32 to index
    %c0_33 = arith.constant 0 : index
    %c0_34 = arith.constant 0 : index
    %64 = vector.load %arg2[%c0_32, %63, %c0_33, %c0_34] : memref<1x8x2x16xf32, #tpu.memory_space<vmem>>, vector<1x1x2x16xf32>
    %65 = vector.shape_cast %64 : vector<1x1x2x16xf32> to vector<2x16xf32>
    %66 = arith.truncf %65 : vector<2x16xf32> to vector<2x16xbf16>
    %cst_35 = arith.constant dense<0.000000e+00> : vector<2x128xf32>
    %67 = tpu.matmul %66, %4, %cst_35 {dimension_numbers = #tpu.dot_dimension_numbers<[1], [0], [0], [1], [0, 0, 1, 1], [], []>} : vector<2x16xbf16>, vector<16x128xbf16>, vector<2x128xf32> -> vector<2x128xf32>
    %68 = arith.addf %62, %67 : vector<2x128xf32>
    %69 = vector.broadcast %8 : vector<1x128xf32> to vector<2x128xf32>
    %70 = arith.addf %68, %69 : vector<2x128xf32>
    %71 = vector.extract_strided_slice %70 {offsets = [0, 0], sizes = [2, 32], strides = [1, 1]} : vector<2x128xf32> to vector<2x32xf32>
    %72 = arith.negf %71 : vector<2x32xf32>
    %73 = math.exp %72 : vector<2x32xf32>
    %cst_36 = arith.constant 1.000000e+00 : f32
    %74 = vector.broadcast %cst_36 : f32 to vector<2x32xf32>
    %75 = arith.addf %74, %73 : vector<2x32xf32>
    %76 = arith.divf %74, %75 : vector<2x32xf32>
    %77 = vector.extract_strided_slice %70 {offsets = [0, 32], sizes = [2, 32], strides = [1, 1]} : vector<2x128xf32> to vector<2x32xf32>
    %78 = arith.negf %77 : vector<2x32xf32>
    %79 = math.exp %78 : vector<2x32xf32>
    %cst_37 = arith.constant 1.000000e+00 : f32
    %80 = vector.broadcast %cst_37 : f32 to vector<2x32xf32>
    %81 = arith.addf %80, %79 : vector<2x32xf32>
    %82 = arith.divf %80, %81 : vector<2x32xf32>
    %83 = vector.extract_strided_slice %70 {offsets = [0, 64], sizes = [2, 32], strides = [1, 1]} : vector<2x128xf32> to vector<2x32xf32>
    %84 = math.tanh %83 : vector<2x32xf32>
    %85 = vector.extract_strided_slice %70 {offsets = [0, 96], sizes = [2, 32], strides = [1, 1]} : vector<2x128xf32> to vector<2x32xf32>
    %86 = arith.negf %85 : vector<2x32xf32>
    %87 = math.exp %86 : vector<2x32xf32>
    %cst_38 = arith.constant 1.000000e+00 : f32
    %88 = vector.broadcast %cst_38 : f32 to vector<2x32xf32>
    %89 = arith.addf %88, %87 : vector<2x32xf32>
    %90 = arith.divf %88, %89 : vector<2x32xf32>
    %c0_39 = arith.constant 0 : index
    %c0_40 = arith.constant 0 : index
    %91 = vector.load %arg7[%c0_39, %c0_40] : memref<2x32xf32, #tpu.memory_space<vmem>>, vector<2x32xf32>
    %92 = arith.mulf %82, %91 : vector<2x32xf32>
    %93 = arith.mulf %76, %84 : vector<2x32xf32>
    %94 = arith.addf %92, %93 : vector<2x32xf32>
    %95 = math.tanh %94 : vector<2x32xf32>
    %96 = arith.mulf %90, %95 : vector<2x32xf32>
    %c0_41 = arith.constant 0 : index
    %c0_42 = arith.constant 0 : index
    %97 = vector.load %arg6[%c0_41, %c0_42] : memref<2x32xf32, #tpu.memory_space<vmem>>, vector<2x32xf32>
    tpu.vector_store %arg6[%c0_41, %c0_42], %96 {strides = array<i32>} : memref<2x32xf32, #tpu.memory_space<vmem>>, vector<2x32xf32>,
    %c0_43 = arith.constant 0 : index
    %c0_44 = arith.constant 0 : index
    %98 = vector.load %arg7[%c0_43, %c0_44] : memref<2x32xf32, #tpu.memory_space<vmem>>, vector<2x32xf32>
    tpu.vector_store %arg7[%c0_43, %c0_44], %94 {strides = array<i32>} : memref<2x32xf32, #tpu.memory_space<vmem>>, vector<2x32xf32>,
    %c0_45 = arith.constant 0 : index
    %99 = arith.index_cast %59 : i32 to index
    %c0_46 = arith.constant 0 : index
    %c0_47 = arith.constant 0 : index
    %100 = vector.load %arg5[%c0_45, %99, %c0_46, %c0_47] : memref<1x8x2x32xf32, #tpu.memory_space<vmem>>, vector<1x1x2x32xf32>
    %101 = vector.shape_cast %100 : vector<1x1x2x32xf32> to vector<2x32xf32>
    %102 = vector.shape_cast %96 : vector<2x32xf32> to vector<1x1x2x32xf32>
    tpu.vector_store %arg5[%c0_45, %99, %c0_46, %c0_47], %102 {strides = array<i32>} : memref<1x8x2x32xf32, #tpu.memory_space<vmem>>, vector<1x1x2x32xf32>,
    %c2_i32_48 = arith.constant 2 : i32
    %c2_i32_49 = arith.constant 2 : i32
    %103 = arith.muli %c2_i32_49, %c2_i32_48 : i32
    %c7_i32_50 = arith.constant 7 : i32
    %104 = arith.subi %c7_i32_50, %103 : i32
    %105 = arith.muli %arg0, %104 : i32
    %106 = arith.addi %c2_i32_48, %105 : i32
    %c0_51 = arith.constant 0 : index
    %c0_52 = arith.constant 0 : index
    %107 = vector.load %arg6[%c0_51, %c0_52] : memref<2x32xf32, #tpu.memory_space<vmem>>, vector<2x32xf32>
    %108 = arith.truncf %107 : vector<2x32xf32> to vector<2x32xbf16>
    %cst_53 = arith.constant dense<0.000000e+00> : vector<2x128xf32>
    %109 = tpu.matmul %108, %6, %cst_53 {dimension_numbers = #tpu.dot_dimension_numbers<[1], [0], [0], [1], [0, 0, 1, 1], [], []>} : vector<2x32xbf16>, vector<32x128xbf16>, vector<2x128xf32> -> vector<2x128xf32>
    %c0_54 = arith.constant 0 : index
    %110 = arith.index_cast %106 : i32 to index
    %c0_55 = arith.constant 0 : index
    %c0_56 = arith.constant 0 : index
    %111 = vector.load %arg2[%c0_54, %110, %c0_55, %c0_56] : memref<1x8x2x16xf32, #tpu.memory_space<vmem>>, vector<1x1x2x16xf32>
    %112 = vector.shape_cast %111 : vector<1x1x2x16xf32> to vector<2x16xf32>
    %113 = arith.truncf %112 : vector<2x16xf32> to vector<2x16xbf16>
    %cst_57 = arith.constant dense<0.000000e+00> : vector<2x128xf32>
    %114 = tpu.matmul %113, %4, %cst_57 {dimension_numbers = #tpu.dot_dimension_numbers<[1], [0], [0], [1], [0, 0, 1, 1], [], []>} : vector<2x16xbf16>, vector<16x128xbf16>, vector<2x128xf32> -> vector<2x128xf32>
    %115 = arith.addf %109, %114 : vector<2x128xf32>
    %116 = vector.broadcast %8 : vector<1x128xf32> to vector<2x128xf32>
    %117 = arith.addf %115, %116 : vector<2x128xf32>
    %118 = vector.extract_strided_slice %117 {offsets = [0, 0], sizes = [2, 32], strides = [1, 1]} : vector<2x128xf32> to vector<2x32xf32>
    %119 = arith.negf %118 : vector<2x32xf32>
    %120 = math.exp %119 : vector<2x32xf32>
    %cst_58 = arith.constant 1.000000e+00 : f32
    %121 = vector.broadcast %cst_58 : f32 to vector<2x32xf32>
    %122 = arith.addf %121, %120 : vector<2x32xf32>
    %123 = arith.divf %121, %122 : vector<2x32xf32>
    %124 = vector.extract_strided_slice %117 {offsets = [0, 32], sizes = [2, 32], strides = [1, 1]} : vector<2x128xf32> to vector<2x32xf32>
    %125 = arith.negf %124 : vector<2x32xf32>
    %126 = math.exp %125 : vector<2x32xf32>
    %cst_59 = arith.constant 1.000000e+00 : f32
    %127 = vector.broadcast %cst_59 : f32 to vector<2x32xf32>
    %128 = arith.addf %127, %126 : vector<2x32xf32>
    %129 = arith.divf %127, %128 : vector<2x32xf32>
    %130 = vector.extract_strided_slice %117 {offsets = [0, 64], sizes = [2, 32], strides = [1, 1]} : vector<2x128xf32> to vector<2x32xf32>
    %131 = math.tanh %130 : vector<2x32xf32>
    %132 = vector.extract_strided_slice %117 {offsets = [0, 96], sizes = [2, 32], strides = [1, 1]} : vector<2x128xf32> to vector<2x32xf32>
    %133 = arith.negf %132 : vector<2x32xf32>
    %134 = math.exp %133 : vector<2x32xf32>
    %cst_60 = arith.constant 1.000000e+00 : f32
    %135 = vector.broadcast %cst_60 : f32 to vector<2x32xf32>
    %136 = arith.addf %135, %134 : vector<2x32xf32>
    %137 = arith.divf %135, %136 : vector<2x32xf32>
    %c0_61 = arith.constant 0 : index
    %c0_62 = arith.constant 0 : index
    %138 = vector.load %arg7[%c0_61, %c0_62] : memref<2x32xf32, #tpu.memory_space<vmem>>, vector<2x32xf32>
    %139 = arith.mulf %129, %138 : vector<2x32xf32>
    %140 = arith.mulf %123, %131 : vector<2x32xf32>
    %141 = arith.addf %139, %140 : vector<2x32xf32>
    %142 = math.tanh %141 : vector<2x32xf32>
    %143 = arith.mulf %137, %142 : vector<2x32xf32>
    %c0_63 = arith.constant 0 : index
    %c0_64 = arith.constant 0 : index
    %144 = vector.load %arg6[%c0_63, %c0_64] : memref<2x32xf32, #tpu.memory_space<vmem>>, vector<2x32xf32>
    tpu.vector_store %arg6[%c0_63, %c0_64], %143 {strides = array<i32>} : memref<2x32xf32, #tpu.memory_space<vmem>>, vector<2x32xf32>,
    %c0_65 = arith.constant 0 : index
    %c0_66 = arith.constant 0 : index
    %145 = vector.load %arg7[%c0_65, %c0_66] : memref<2x32xf32, #tpu.memory_space<vmem>>, vector<2x32xf32>
    tpu.vector_store %arg7[%c0_65, %c0_66], %141 {strides = array<i32>} : memref<2x32xf32, #tpu.memory_space<vmem>>, vector<2x32xf32>,
    %c0_67 = arith.constant 0 : index
    %146 = arith.index_cast %106 : i32 to index
    %c0_68 = arith.constant 0 : index
    %c0_69 = arith.constant 0 : index
    %147 = vector.load %arg5[%c0_67, %146, %c0_68, %c0_69] : memref<1x8x2x32xf32, #tpu.memory_space<vmem>>, vector<1x1x2x32xf32>
    %148 = vector.shape_cast %147 : vector<1x1x2x32xf32> to vector<2x32xf32>
    %149 = vector.shape_cast %143 : vector<2x32xf32> to vector<1x1x2x32xf32>
    tpu.vector_store %arg5[%c0_67, %146, %c0_68, %c0_69], %149 {strides = array<i32>} : memref<1x8x2x32xf32, #tpu.memory_space<vmem>>, vector<1x1x2x32xf32>,
    %c3_i32 = arith.constant 3 : i32
    %c2_i32_70 = arith.constant 2 : i32
    %150 = arith.muli %c2_i32_70, %c3_i32 : i32
    %c7_i32_71 = arith.constant 7 : i32
    %151 = arith.subi %c7_i32_71, %150 : i32
    %152 = arith.muli %arg0, %151 : i32
    %153 = arith.addi %c3_i32, %152 : i32
    %c0_72 = arith.constant 0 : index
    %c0_73 = arith.constant 0 : index
    %154 = vector.load %arg6[%c0_72, %c0_73] : memref<2x32xf32, #tpu.memory_space<vmem>>, vector<2x32xf32>
    %155 = arith.truncf %154 : vector<2x32xf32> to vector<2x32xbf16>
    %cst_74 = arith.constant dense<0.000000e+00> : vector<2x128xf32>
    %156 = tpu.matmul %155, %6, %cst_74 {dimension_numbers = #tpu.dot_dimension_numbers<[1], [0], [0], [1], [0, 0, 1, 1], [], []>} : vector<2x32xbf16>, vector<32x128xbf16>, vector<2x128xf32> -> vector<2x128xf32>
    %c0_75 = arith.constant 0 : index
    %157 = arith.index_cast %153 : i32 to index
    %c0_76 = arith.constant 0 : index
    %c0_77 = arith.constant 0 : index
    %158 = vector.load %arg2[%c0_75, %157, %c0_76, %c0_77] : memref<1x8x2x16xf32, #tpu.memory_space<vmem>>, vector<1x1x2x16xf32>
    %159 = vector.shape_cast %158 : vector<1x1x2x16xf32> to vector<2x16xf32>
    %160 = arith.truncf %159 : vector<2x16xf32> to vector<2x16xbf16>
    %cst_78 = arith.constant dense<0.000000e+00> : vector<2x128xf32>
    %161 = tpu.matmul %160, %4, %cst_78 {dimension_numbers = #tpu.dot_dimension_numbers<[1], [0], [0], [1], [0, 0, 1, 1], [], []>} : vector<2x16xbf16>, vector<16x128xbf16>, vector<2x128xf32> -> vector<2x128xf32>
    %162 = arith.addf %156, %161 : vector<2x128xf32>
    %163 = vector.broadcast %8 : vector<1x128xf32> to vector<2x128xf32>
    %164 = arith.addf %162, %163 : vector<2x128xf32>
    %165 = vector.extract_strided_slice %164 {offsets = [0, 0], sizes = [2, 32], strides = [1, 1]} : vector<2x128xf32> to vector<2x32xf32>
    %166 = arith.negf %165 : vector<2x32xf32>
    %167 = math.exp %166 : vector<2x32xf32>
    %cst_79 = arith.constant 1.000000e+00 : f32
    %168 = vector.broadcast %cst_79 : f32 to vector<2x32xf32>
    %169 = arith.addf %168, %167 : vector<2x32xf32>
    %170 = arith.divf %168, %169 : vector<2x32xf32>
    %171 = vector.extract_strided_slice %164 {offsets = [0, 32], sizes = [2, 32], strides = [1, 1]} : vector<2x128xf32> to vector<2x32xf32>
    %172 = arith.negf %171 : vector<2x32xf32>
    %173 = math.exp %172 : vector<2x32xf32>
    %cst_80 = arith.constant 1.000000e+00 : f32
    %174 = vector.broadcast %cst_80 : f32 to vector<2x32xf32>
    %175 = arith.addf %174, %173 : vector<2x32xf32>
    %176 = arith.divf %174, %175 : vector<2x32xf32>
    %177 = vector.extract_strided_slice %164 {offsets = [0, 64], sizes = [2, 32], strides = [1, 1]} : vector<2x128xf32> to vector<2x32xf32>
    %178 = math.tanh %177 : vector<2x32xf32>
    %179 = vector.extract_strided_slice %164 {offsets = [0, 96], sizes = [2, 32], strides = [1, 1]} : vector<2x128xf32> to vector<2x32xf32>
    %180 = arith.negf %179 : vector<2x32xf32>
    %181 = math.exp %180 : vector<2x32xf32>
    %cst_81 = arith.constant 1.000000e+00 : f32
    %182 = vector.broadcast %cst_81 : f32 to vector<2x32xf32>
    %183 = arith.addf %182, %181 : vector<2x32xf32>
    %184 = arith.divf %182, %183 : vector<2x32xf32>
    %c0_82 = arith.constant 0 : index
    %c0_83 = arith.constant 0 : index
    %185 = vector.load %arg7[%c0_82, %c0_83] : memref<2x32xf32, #tpu.memory_space<vmem>>, vector<2x32xf32>
    %186 = arith.mulf %176, %185 : vector<2x32xf32>
    %187 = arith.mulf %170, %178 : vector<2x32xf32>
    %188 = arith.addf %186, %187 : vector<2x32xf32>
    %189 = math.tanh %188 : vector<2x32xf32>
    %190 = arith.mulf %184, %189 : vector<2x32xf32>
    %c0_84 = arith.constant 0 : index
    %c0_85 = arith.constant 0 : index
    %191 = vector.load %arg6[%c0_84, %c0_85] : memref<2x32xf32, #tpu.memory_space<vmem>>, vector<2x32xf32>
    tpu.vector_store %arg6[%c0_84, %c0_85], %190 {strides = array<i32>} : memref<2x32xf32, #tpu.memory_space<vmem>>, vector<2x32xf32>,
    %c0_86 = arith.constant 0 : index
    %c0_87 = arith.constant 0 : index
    %192 = vector.load %arg7[%c0_86, %c0_87] : memref<2x32xf32, #tpu.memory_space<vmem>>, vector<2x32xf32>
    tpu.vector_store %arg7[%c0_86, %c0_87], %188 {strides = array<i32>} : memref<2x32xf32, #tpu.memory_space<vmem>>, vector<2x32xf32>,
    %c0_88 = arith.constant 0 : index
    %193 = arith.index_cast %153 : i32 to index
    %c0_89 = arith.constant 0 : index
    %c0_90 = arith.constant 0 : index
    %194 = vector.load %arg5[%c0_88, %193, %c0_89, %c0_90] : memref<1x8x2x32xf32, #tpu.memory_space<vmem>>, vector<1x1x2x32xf32>
    %195 = vector.shape_cast %194 : vector<1x1x2x32xf32> to vector<2x32xf32>
    %196 = vector.shape_cast %190 : vector<2x32xf32> to vector<1x1x2x32xf32>
    tpu.vector_store %arg5[%c0_88, %193, %c0_89, %c0_90], %196 {strides = array<i32>} : memref<1x8x2x32xf32, #tpu.memory_space<vmem>>, vector<1x1x2x32xf32>,
    %c4_i32 = arith.constant 4 : i32
    %c2_i32_91 = arith.constant 2 : i32
    %197 = arith.muli %c2_i32_91, %c4_i32 : i32
    %c7_i32_92 = arith.constant 7 : i32
    %198 = arith.subi %c7_i32_92, %197 : i32
    %199 = arith.muli %arg0, %198 : i32
    %200 = arith.addi %c4_i32, %199 : i32
    %c0_93 = arith.constant 0 : index
    %c0_94 = arith.constant 0 : index
    %201 = vector.load %arg6[%c0_93, %c0_94] : memref<2x32xf32, #tpu.memory_space<vmem>>, vector<2x32xf32>
    %202 = arith.truncf %201 : vector<2x32xf32> to vector<2x32xbf16>
    %cst_95 = arith.constant dense<0.000000e+00> : vector<2x128xf32>
    %203 = tpu.matmul %202, %6, %cst_95 {dimension_numbers = #tpu.dot_dimension_numbers<[1], [0], [0], [1], [0, 0, 1, 1], [], []>} : vector<2x32xbf16>, vector<32x128xbf16>, vector<2x128xf32> -> vector<2x128xf32>
    %c0_96 = arith.constant 0 : index
    %204 = arith.index_cast %200 : i32 to index
    %c0_97 = arith.constant 0 : index
    %c0_98 = arith.constant 0 : index
    %205 = vector.load %arg2[%c0_96, %204, %c0_97, %c0_98] : memref<1x8x2x16xf32, #tpu.memory_space<vmem>>, vector<1x1x2x16xf32>
    %206 = vector.shape_cast %205 : vector<1x1x2x16xf32> to vector<2x16xf32>
    %207 = arith.truncf %206 : vector<2x16xf32> to vector<2x16xbf16>
    %cst_99 = arith.constant dense<0.000000e+00> : vector<2x128xf32>
    %208 = tpu.matmul %207, %4, %cst_99 {dimension_numbers = #tpu.dot_dimension_numbers<[1], [0], [0], [1], [0, 0, 1, 1], [], []>} : vector<2x16xbf16>, vector<16x128xbf16>, vector<2x128xf32> -> vector<2x128xf32>
    %209 = arith.addf %203, %208 : vector<2x128xf32>
    %210 = vector.broadcast %8 : vector<1x128xf32> to vector<2x128xf32>
    %211 = arith.addf %209, %210 : vector<2x128xf32>
    %212 = vector.extract_strided_slice %211 {offsets = [0, 0], sizes = [2, 32], strides = [1, 1]} : vector<2x128xf32> to vector<2x32xf32>
    %213 = arith.negf %212 : vector<2x32xf32>
    %214 = math.exp %213 : vector<2x32xf32>
    %cst_100 = arith.constant 1.000000e+00 : f32
    %215 = vector.broadcast %cst_100 : f32 to vector<2x32xf32>
    %216 = arith.addf %215, %214 : vector<2x32xf32>
    %217 = arith.divf %215, %216 : vector<2x32xf32>
    %218 = vector.extract_strided_slice %211 {offsets = [0, 32], sizes = [2, 32], strides = [1, 1]} : vector<2x128xf32> to vector<2x32xf32>
    %219 = arith.negf %218 : vector<2x32xf32>
    %220 = math.exp %219 : vector<2x32xf32>
    %cst_101 = arith.constant 1.000000e+00 : f32
    %221 = vector.broadcast %cst_101 : f32 to vector<2x32xf32>
    %222 = arith.addf %221, %220 : vector<2x32xf32>
    %223 = arith.divf %221, %222 : vector<2x32xf32>
    %224 = vector.extract_strided_slice %211 {offsets = [0, 64], sizes = [2, 32], strides = [1, 1]} : vector<2x128xf32> to vector<2x32xf32>
    %225 = math.tanh %224 : vector<2x32xf32>
    %226 = vector.extract_strided_slice %211 {offsets = [0, 96], sizes = [2, 32], strides = [1, 1]} : vector<2x128xf32> to vector<2x32xf32>
    %227 = arith.negf %226 : vector<2x32xf32>
    %228 = math.exp %227 : vector<2x32xf32>
    %cst_102 = arith.constant 1.000000e+00 : f32
    %229 = vector.broadcast %cst_102 : f32 to vector<2x32xf32>
    %230 = arith.addf %229, %228 : vector<2x32xf32>
    %231 = arith.divf %229, %230 : vector<2x32xf32>
    %c0_103 = arith.constant 0 : index
    %c0_104 = arith.constant 0 : index
    %232 = vector.load %arg7[%c0_103, %c0_104] : memref<2x32xf32, #tpu.memory_space<vmem>>, vector<2x32xf32>
    %233 = arith.mulf %223, %232 : vector<2x32xf32>
    %234 = arith.mulf %217, %225 : vector<2x32xf32>
    %235 = arith.addf %233, %234 : vector<2x32xf32>
    %236 = math.tanh %235 : vector<2x32xf32>
    %237 = arith.mulf %231, %236 : vector<2x32xf32>
    %c0_105 = arith.constant 0 : index
    %c0_106 = arith.constant 0 : index
    %238 = vector.load %arg6[%c0_105, %c0_106] : memref<2x32xf32, #tpu.memory_space<vmem>>, vector<2x32xf32>
    tpu.vector_store %arg6[%c0_105, %c0_106], %237 {strides = array<i32>} : memref<2x32xf32, #tpu.memory_space<vmem>>, vector<2x32xf32>,
    %c0_107 = arith.constant 0 : index
    %c0_108 = arith.constant 0 : index
    %239 = vector.load %arg7[%c0_107, %c0_108] : memref<2x32xf32, #tpu.memory_space<vmem>>, vector<2x32xf32>
    tpu.vector_store %arg7[%c0_107, %c0_108], %235 {strides = array<i32>} : memref<2x32xf32, #tpu.memory_space<vmem>>, vector<2x32xf32>,
    %c0_109 = arith.constant 0 : index
    %240 = arith.index_cast %200 : i32 to index
    %c0_110 = arith.constant 0 : index
    %c0_111 = arith.constant 0 : index
    %241 = vector.load %arg5[%c0_109, %240, %c0_110, %c0_111] : memref<1x8x2x32xf32, #tpu.memory_space<vmem>>, vector<1x1x2x32xf32>
    %242 = vector.shape_cast %241 : vector<1x1x2x32xf32> to vector<2x32xf32>
    %243 = vector.shape_cast %237 : vector<2x32xf32> to vector<1x1x2x32xf32>
    tpu.vector_store %arg5[%c0_109, %240, %c0_110, %c0_111], %243 {strides = array<i32>} : memref<1x8x2x32xf32, #tpu.memory_space<vmem>>, vector<1x1x2x32xf32>,
    %c5_i32 = arith.constant 5 : i32
    %c2_i32_112 = arith.constant 2 : i32
    %244 = arith.muli %c2_i32_112, %c5_i32 : i32
    %c7_i32_113 = arith.constant 7 : i32
    %245 = arith.subi %c7_i32_113, %244 : i32
    %246 = arith.muli %arg0, %245 : i32
    %247 = arith.addi %c5_i32, %246 : i32
    %c0_114 = arith.constant 0 : index
    %c0_115 = arith.constant 0 : index
    %248 = vector.load %arg6[%c0_114, %c0_115] : memref<2x32xf32, #tpu.memory_space<vmem>>, vector<2x32xf32>
    %249 = arith.truncf %248 : vector<2x32xf32> to vector<2x32xbf16>
    %cst_116 = arith.constant dense<0.000000e+00> : vector<2x128xf32>
    %250 = tpu.matmul %249, %6, %cst_116 {dimension_numbers = #tpu.dot_dimension_numbers<[1], [0], [0], [1], [0, 0, 1, 1], [], []>} : vector<2x32xbf16>, vector<32x128xbf16>, vector<2x128xf32> -> vector<2x128xf32>
    %c0_117 = arith.constant 0 : index
    %251 = arith.index_cast %247 : i32 to index
    %c0_118 = arith.constant 0 : index
    %c0_119 = arith.constant 0 : index
    %252 = vector.load %arg2[%c0_117, %251, %c0_118, %c0_119] : memref<1x8x2x16xf32, #tpu.memory_space<vmem>>, vector<1x1x2x16xf32>
    %253 = vector.shape_cast %252 : vector<1x1x2x16xf32> to vector<2x16xf32>
    %254 = arith.truncf %253 : vector<2x16xf32> to vector<2x16xbf16>
    %cst_120 = arith.constant dense<0.000000e+00> : vector<2x128xf32>
    %255 = tpu.matmul %254, %4, %cst_120 {dimension_numbers = #tpu.dot_dimension_numbers<[1], [0], [0], [1], [0, 0, 1, 1], [], []>} : vector<2x16xbf16>, vector<16x128xbf16>, vector<2x128xf32> -> vector<2x128xf32>
    %256 = arith.addf %250, %255 : vector<2x128xf32>
    %257 = vector.broadcast %8 : vector<1x128xf32> to vector<2x128xf32>
    %258 = arith.addf %256, %257 : vector<2x128xf32>
    %259 = vector.extract_strided_slice %258 {offsets = [0, 0], sizes = [2, 32], strides = [1, 1]} : vector<2x128xf32> to vector<2x32xf32>
    %260 = arith.negf %259 : vector<2x32xf32>
    %261 = math.exp %260 : vector<2x32xf32>
    %cst_121 = arith.constant 1.000000e+00 : f32
    %262 = vector.broadcast %cst_121 : f32 to vector<2x32xf32>
    %263 = arith.addf %262, %261 : vector<2x32xf32>
    %264 = arith.divf %262, %263 : vector<2x32xf32>
    %265 = vector.extract_strided_slice %258 {offsets = [0, 32], sizes = [2, 32], strides = [1, 1]} : vector<2x128xf32> to vector<2x32xf32>
    %266 = arith.negf %265 : vector<2x32xf32>
    %267 = math.exp %266 : vector<2x32xf32>
    %cst_122 = arith.constant 1.000000e+00 : f32
    %268 = vector.broadcast %cst_122 : f32 to vector<2x32xf32>
    %269 = arith.addf %268, %267 : vector<2x32xf32>
    %270 = arith.divf %268, %269 : vector<2x32xf32>
    %271 = vector.extract_strided_slice %258 {offsets = [0, 64], sizes = [2, 32], strides = [1, 1]} : vector<2x128xf32> to vector<2x32xf32>
    %272 = math.tanh %271 : vector<2x32xf32>
    %273 = vector.extract_strided_slice %258 {offsets = [0, 96], sizes = [2, 32], strides = [1, 1]} : vector<2x128xf32> to vector<2x32xf32>
    %274 = arith.negf %273 : vector<2x32xf32>
    %275 = math.exp %274 : vector<2x32xf32>
    %cst_123 = arith.constant 1.000000e+00 : f32
    %276 = vector.broadcast %cst_123 : f32 to vector<2x32xf32>
    %277 = arith.addf %276, %275 : vector<2x32xf32>
    %278 = arith.divf %276, %277 : vector<2x32xf32>
    %c0_124 = arith.constant 0 : index
    %c0_125 = arith.constant 0 : index
    %279 = vector.load %arg7[%c0_124, %c0_125] : memref<2x32xf32, #tpu.memory_space<vmem>>, vector<2x32xf32>
    %280 = arith.mulf %270, %279 : vector<2x32xf32>
    %281 = arith.mulf %264, %272 : vector<2x32xf32>
    %282 = arith.addf %280, %281 : vector<2x32xf32>
    %283 = math.tanh %282 : vector<2x32xf32>
    %284 = arith.mulf %278, %283 : vector<2x32xf32>
    %c0_126 = arith.constant 0 : index
    %c0_127 = arith.constant 0 : index
    %285 = vector.load %arg6[%c0_126, %c0_127] : memref<2x32xf32, #tpu.memory_space<vmem>>, vector<2x32xf32>
    tpu.vector_store %arg6[%c0_126, %c0_127], %284 {strides = array<i32>} : memref<2x32xf32, #tpu.memory_space<vmem>>, vector<2x32xf32>,
    %c0_128 = arith.constant 0 : index
    %c0_129 = arith.constant 0 : index
    %286 = vector.load %arg7[%c0_128, %c0_129] : memref<2x32xf32, #tpu.memory_space<vmem>>, vector<2x32xf32>
    tpu.vector_store %arg7[%c0_128, %c0_129], %282 {strides = array<i32>} : memref<2x32xf32, #tpu.memory_space<vmem>>, vector<2x32xf32>,
    %c0_130 = arith.constant 0 : index
    %287 = arith.index_cast %247 : i32 to index
    %c0_131 = arith.constant 0 : index
    %c0_132 = arith.constant 0 : index
    %288 = vector.load %arg5[%c0_130, %287, %c0_131, %c0_132] : memref<1x8x2x32xf32, #tpu.memory_space<vmem>>, vector<1x1x2x32xf32>
    %289 = vector.shape_cast %288 : vector<1x1x2x32xf32> to vector<2x32xf32>
    %290 = vector.shape_cast %284 : vector<2x32xf32> to vector<1x1x2x32xf32>
    tpu.vector_store %arg5[%c0_130, %287, %c0_131, %c0_132], %290 {strides = array<i32>} : memref<1x8x2x32xf32, #tpu.memory_space<vmem>>, vector<1x1x2x32xf32>,
    %c6_i32 = arith.constant 6 : i32
    %c2_i32_133 = arith.constant 2 : i32
    %291 = arith.muli %c2_i32_133, %c6_i32 : i32
    %c7_i32_134 = arith.constant 7 : i32
    %292 = arith.subi %c7_i32_134, %291 : i32
    %293 = arith.muli %arg0, %292 : i32
    %294 = arith.addi %c6_i32, %293 : i32
    %c0_135 = arith.constant 0 : index
    %c0_136 = arith.constant 0 : index
    %295 = vector.load %arg6[%c0_135, %c0_136] : memref<2x32xf32, #tpu.memory_space<vmem>>, vector<2x32xf32>
    %296 = arith.truncf %295 : vector<2x32xf32> to vector<2x32xbf16>
    %cst_137 = arith.constant dense<0.000000e+00> : vector<2x128xf32>
    %297 = tpu.matmul %296, %6, %cst_137 {dimension_numbers = #tpu.dot_dimension_numbers<[1], [0], [0], [1], [0, 0, 1, 1], [], []>} : vector<2x32xbf16>, vector<32x128xbf16>, vector<2x128xf32> -> vector<2x128xf32>
    %c0_138 = arith.constant 0 : index
    %298 = arith.index_cast %294 : i32 to index
    %c0_139 = arith.constant 0 : index
    %c0_140 = arith.constant 0 : index
    %299 = vector.load %arg2[%c0_138, %298, %c0_139, %c0_140] : memref<1x8x2x16xf32, #tpu.memory_space<vmem>>, vector<1x1x2x16xf32>
    %300 = vector.shape_cast %299 : vector<1x1x2x16xf32> to vector<2x16xf32>
    %301 = arith.truncf %300 : vector<2x16xf32> to vector<2x16xbf16>
    %cst_141 = arith.constant dense<0.000000e+00> : vector<2x128xf32>
    %302 = tpu.matmul %301, %4, %cst_141 {dimension_numbers = #tpu.dot_dimension_numbers<[1], [0], [0], [1], [0, 0, 1, 1], [], []>} : vector<2x16xbf16>, vector<16x128xbf16>, vector<2x128xf32> -> vector<2x128xf32>
    %303 = arith.addf %297, %302 : vector<2x128xf32>
    %304 = vector.broadcast %8 : vector<1x128xf32> to vector<2x128xf32>
    %305 = arith.addf %303, %304 : vector<2x128xf32>
    %306 = vector.extract_strided_slice %305 {offsets = [0, 0], sizes = [2, 32], strides = [1, 1]} : vector<2x128xf32> to vector<2x32xf32>
    %307 = arith.negf %306 : vector<2x32xf32>
    %308 = math.exp %307 : vector<2x32xf32>
    %cst_142 = arith.constant 1.000000e+00 : f32
    %309 = vector.broadcast %cst_142 : f32 to vector<2x32xf32>
    %310 = arith.addf %309, %308 : vector<2x32xf32>
    %311 = arith.divf %309, %310 : vector<2x32xf32>
    %312 = vector.extract_strided_slice %305 {offsets = [0, 32], sizes = [2, 32], strides = [1, 1]} : vector<2x128xf32> to vector<2x32xf32>
    %313 = arith.negf %312 : vector<2x32xf32>
    %314 = math.exp %313 : vector<2x32xf32>
    %cst_143 = arith.constant 1.000000e+00 : f32
    %315 = vector.broadcast %cst_143 : f32 to vector<2x32xf32>
    %316 = arith.addf %315, %314 : vector<2x32xf32>
    %317 = arith.divf %315, %316 : vector<2x32xf32>
    %318 = vector.extract_strided_slice %305 {offsets = [0, 64], sizes = [2, 32], strides = [1, 1]} : vector<2x128xf32> to vector<2x32xf32>
    %319 = math.tanh %318 : vector<2x32xf32>
    %320 = vector.extract_strided_slice %305 {offsets = [0, 96], sizes = [2, 32], strides = [1, 1]} : vector<2x128xf32> to vector<2x32xf32>
    %321 = arith.negf %320 : vector<2x32xf32>
    %322 = math.exp %321 : vector<2x32xf32>
    %cst_144 = arith.constant 1.000000e+00 : f32
    %323 = vector.broadcast %cst_144 : f32 to vector<2x32xf32>
    %324 = arith.addf %323, %322 : vector<2x32xf32>
    %325 = arith.divf %323, %324 : vector<2x32xf32>
    %c0_145 = arith.constant 0 : index
    %c0_146 = arith.constant 0 : index
    %326 = vector.load %arg7[%c0_145, %c0_146] : memref<2x32xf32, #tpu.memory_space<vmem>>, vector<2x32xf32>
    %327 = arith.mulf %317, %326 : vector<2x32xf32>
    %328 = arith.mulf %311, %319 : vector<2x32xf32>
    %329 = arith.addf %327, %328 : vector<2x32xf32>
    %330 = math.tanh %329 : vector<2x32xf32>
    %331 = arith.mulf %325, %330 : vector<2x32xf32>
    %c0_147 = arith.constant 0 : index
    %c0_148 = arith.constant 0 : index
    %332 = vector.load %arg6[%c0_147, %c0_148] : memref<2x32xf32, #tpu.memory_space<vmem>>, vector<2x32xf32>
    tpu.vector_store %arg6[%c0_147, %c0_148], %331 {strides = array<i32>} : memref<2x32xf32, #tpu.memory_space<vmem>>, vector<2x32xf32>,
    %c0_149 = arith.constant 0 : index
    %c0_150 = arith.constant 0 : index
    %333 = vector.load %arg7[%c0_149, %c0_150] : memref<2x32xf32, #tpu.memory_space<vmem>>, vector<2x32xf32>
    tpu.vector_store %arg7[%c0_149, %c0_150], %329 {strides = array<i32>} : memref<2x32xf32, #tpu.memory_space<vmem>>, vector<2x32xf32>,
    %c0_151 = arith.constant 0 : index
    %334 = arith.index_cast %294 : i32 to index
    %c0_152 = arith.constant 0 : index
    %c0_153 = arith.constant 0 : index
    %335 = vector.load %arg5[%c0_151, %334, %c0_152, %c0_153] : memref<1x8x2x32xf32, #tpu.memory_space<vmem>>, vector<1x1x2x32xf32>
    %336 = vector.shape_cast %335 : vector<1x1x2x32xf32> to vector<2x32xf32>
    %337 = vector.shape_cast %331 : vector<2x32xf32> to vector<1x1x2x32xf32>
    tpu.vector_store %arg5[%c0_151, %334, %c0_152, %c0_153], %337 {strides = array<i32>} : memref<1x8x2x32xf32, #tpu.memory_space<vmem>>, vector<1x1x2x32xf32>,
    %c7_i32_154 = arith.constant 7 : i32
    %c2_i32_155 = arith.constant 2 : i32
    %338 = arith.muli %c2_i32_155, %c7_i32_154 : i32
    %c7_i32_156 = arith.constant 7 : i32
    %339 = arith.subi %c7_i32_156, %338 : i32
    %340 = arith.muli %arg0, %339 : i32
    %341 = arith.addi %c7_i32_154, %340 : i32
    %c0_157 = arith.constant 0 : index
    %c0_158 = arith.constant 0 : index
    %342 = vector.load %arg6[%c0_157, %c0_158] : memref<2x32xf32, #tpu.memory_space<vmem>>, vector<2x32xf32>
    %343 = arith.truncf %342 : vector<2x32xf32> to vector<2x32xbf16>
    %cst_159 = arith.constant dense<0.000000e+00> : vector<2x128xf32>
    %344 = tpu.matmul %343, %6, %cst_159 {dimension_numbers = #tpu.dot_dimension_numbers<[1], [0], [0], [1], [0, 0, 1, 1], [], []>} : vector<2x32xbf16>, vector<32x128xbf16>, vector<2x128xf32> -> vector<2x128xf32>
    %c0_160 = arith.constant 0 : index
    %345 = arith.index_cast %341 : i32 to index
    %c0_161 = arith.constant 0 : index
    %c0_162 = arith.constant 0 : index
    %346 = vector.load %arg2[%c0_160, %345, %c0_161, %c0_162] : memref<1x8x2x16xf32, #tpu.memory_space<vmem>>, vector<1x1x2x16xf32>
    %347 = vector.shape_cast %346 : vector<1x1x2x16xf32> to vector<2x16xf32>
    %348 = arith.truncf %347 : vector<2x16xf32> to vector<2x16xbf16>
    %cst_163 = arith.constant dense<0.000000e+00> : vector<2x128xf32>
    %349 = tpu.matmul %348, %4, %cst_163 {dimension_numbers = #tpu.dot_dimension_numbers<[1], [0], [0], [1], [0, 0, 1, 1], [], []>} : vector<2x16xbf16>, vector<16x128xbf16>, vector<2x128xf32> -> vector<2x128xf32>
    %350 = arith.addf %344, %349 : vector<2x128xf32>
    %351 = vector.broadcast %8 : vector<1x128xf32> to vector<2x128xf32>
    %352 = arith.addf %350, %351 : vector<2x128xf32>
    %353 = vector.extract_strided_slice %352 {offsets = [0, 0], sizes = [2, 32], strides = [1, 1]} : vector<2x128xf32> to vector<2x32xf32>
    %354 = arith.negf %353 : vector<2x32xf32>
    %355 = math.exp %354 : vector<2x32xf32>
    %cst_164 = arith.constant 1.000000e+00 : f32
    %356 = vector.broadcast %cst_164 : f32 to vector<2x32xf32>
    %357 = arith.addf %356, %355 : vector<2x32xf32>
    %358 = arith.divf %356, %357 : vector<2x32xf32>
    %359 = vector.extract_strided_slice %352 {offsets = [0, 32], sizes = [2, 32], strides = [1, 1]} : vector<2x128xf32> to vector<2x32xf32>
    %360 = arith.negf %359 : vector<2x32xf32>
    %361 = math.exp %360 : vector<2x32xf32>
    %cst_165 = arith.constant 1.000000e+00 : f32
    %362 = vector.broadcast %cst_165 : f32 to vector<2x32xf32>
    %363 = arith.addf %362, %361 : vector<2x32xf32>
    %364 = arith.divf %362, %363 : vector<2x32xf32>
    %365 = vector.extract_strided_slice %352 {offsets = [0, 64], sizes = [2, 32], strides = [1, 1]} : vector<2x128xf32> to vector<2x32xf32>
    %366 = math.tanh %365 : vector<2x32xf32>
    %367 = vector.extract_strided_slice %352 {offsets = [0, 96], sizes = [2, 32], strides = [1, 1]} : vector<2x128xf32> to vector<2x32xf32>
    %368 = arith.negf %367 : vector<2x32xf32>
    %369 = math.exp %368 : vector<2x32xf32>
    %cst_166 = arith.constant 1.000000e+00 : f32
    %370 = vector.broadcast %cst_166 : f32 to vector<2x32xf32>
    %371 = arith.addf %370, %369 : vector<2x32xf32>
    %372 = arith.divf %370, %371 : vector<2x32xf32>
    %c0_167 = arith.constant 0 : index
    %c0_168 = arith.constant 0 : index
    %373 = vector.load %arg7[%c0_167, %c0_168] : memref<2x32xf32, #tpu.memory_space<vmem>>, vector<2x32xf32>
    %374 = arith.mulf %364, %373 : vector<2x32xf32>
    %375 = arith.mulf %358, %366 : vector<2x32xf32>
    %376 = arith.addf %374, %375 : vector<2x32xf32>
    %377 = math.tanh %376 : vector<2x32xf32>
    %378 = arith.mulf %372, %377 : vector<2x32xf32>
    %c0_169 = arith.constant 0 : index
    %c0_170 = arith.constant 0 : index
    %379 = vector.load %arg6[%c0_169, %c0_170] : memref<2x32xf32, #tpu.memory_space<vmem>>, vector<2x32xf32>
    tpu.vector_store %arg6[%c0_169, %c0_170], %378 {strides = array<i32>} : memref<2x32xf32, #tpu.memory_space<vmem>>, vector<2x32xf32>,
    %c0_171 = arith.constant 0 : index
    %c0_172 = arith.constant 0 : index
    %380 = vector.load %arg7[%c0_171, %c0_172] : memref<2x32xf32, #tpu.memory_space<vmem>>, vector<2x32xf32>
    tpu.vector_store %arg7[%c0_171, %c0_172], %376 {strides = array<i32>} : memref<2x32xf32, #tpu.memory_space<vmem>>, vector<2x32xf32>,
    %c0_173 = arith.constant 0 : index
    %381 = arith.index_cast %341 : i32 to index
    %c0_174 = arith.constant 0 : index
    %c0_175 = arith.constant 0 : index
    %382 = vector.load %arg5[%c0_173, %381, %c0_174, %c0_175] : memref<1x8x2x32xf32, #tpu.memory_space<vmem>>, vector<1x1x2x32xf32>
    %383 = vector.shape_cast %382 : vector<1x1x2x32xf32> to vector<2x32xf32>
    %384 = vector.shape_cast %378 : vector<2x32xf32> to vector<1x1x2x32xf32>
    tpu.vector_store %arg5[%c0_173, %381, %c0_174, %c0_175], %384 {strides = array<i32>} : memref<1x8x2x32xf32, #tpu.memory_space<vmem>>, vector<1x1x2x32xf32>,
    %c8_i32 = arith.constant 8 : i32
    return
  }
  func.func @transform_0(%arg0: i32, %arg1: i32) -> (i32, i32, i32, i32) {
    %c2_i32 = arith.constant 2 : i32
    %0 = arith.muli %c2_i32, %arg1 : i32
    %c0_i32 = arith.constant 0 : i32
    %1 = arith.subi %c0_i32, %0 : i32
    %2 = arith.muli %arg0, %1 : i32
    %3 = arith.addi %arg1, %2 : i32
    %c0_i32_0 = arith.constant 0 : i32
    %c0_i32_1 = arith.constant 0 : i32
    %c0_i32_2 = arith.constant 0 : i32
    %c0_i32_3 = arith.constant 0 : i32
    return %c0_i32_0, %3, %c0_i32_1, %c0_i32_2 : i32, i32, i32, i32
  }
  func.func @transform_1(%arg0: i32, %arg1: i32) -> (i32, i32, i32) {
    %c0_i32 = arith.constant 0 : i32
    %c0_i32_0 = arith.constant 0 : i32
    %c0_i32_1 = arith.constant 0 : i32
    return %arg0, %c0_i32, %c0_i32_0 : i32, i32, i32
  }
  func.func @transform_2(%arg0: i32, %arg1: i32) -> (i32, i32, i32) {
    %c0_i32 = arith.constant 0 : i32
    %c0_i32_0 = arith.constant 0 : i32
    %c0_i32_1 = arith.constant 0 : i32
    return %arg0, %c0_i32, %c0_i32_0 : i32, i32, i32
  }
  func.func @transform_3(%arg0: i32, %arg1: i32) -> (i32, i32, i32, i32) {
    %c2_i32 = arith.constant 2 : i32
    %0 = arith.muli %c2_i32, %arg1 : i32
    %c0_i32 = arith.constant 0 : i32
    %1 = arith.subi %c0_i32, %0 : i32
    %2 = arith.muli %arg0, %1 : i32
    %3 = arith.addi %arg1, %2 : i32
    %c0_i32_0 = arith.constant 0 : i32
    %c0_i32_1 = arith.constant 0 : i32
    %c0_i32_2 = arith.constant 0 : i32
    return %arg0, %3, %c0_i32_0, %c0_i32_1 : i32, i32, i32, i32
  }
}

</mosaic_0001>

<llo_original>
// kernel: rnn_forward.5
$region0: #{rnn_forward.5}
  #allocation0 [shape = 'u32[]', space=smem, size = 0x4, offset = 0x4, fixed_abs, tag = 'smem constant byte address 0x4 - core index']
  #allocation1 [shape = 'u32[144,128]{1,0:T(1,128)}', space=vmem, size = 0x12000, scoped, tag = 'internal scratch']
  %s0 = inlined_call_operand.vmem [shape: f32[2,64], index: 0, kind: input, shape index: {}]
  %s1 = inlined_call_operand.vmem [shape: bf16[64,4], index: 1, kind: input, shape index: {}]
  %s2 = inlined_call_operand.vmem [shape: f32[1,4], index: 2, kind: input, shape index: {}]
  %s3 = inlined_call_operand.hbm [shape: f32[2,4], index: 3, kind: output, shape index: {}]
  %s4 = sld [smem:[#allocation0]]
  $region22: #{rnn_forward.5} parent=0
    _
  %s6 = ssub.s32 1, %s4
  %s7 = scalar_select 0, %s6, %s4
  $region1: #{rnn_forward.5} parent=0
    #allocation2 [shape = 'u8[1024]{0}', space=vmem, size = 0x400, scoped, tag = 'output window, operand 0, single buffered']
    #allocation3 [shape = 's32[1]{0}', space=sflag, size = 0x4, scoped, tag = 'scoped memory for rnn_forward.5']
    %8 = vsyncpa [#allocation3], 0
    // Predicated region
    $region2: #{rnn_forward.5} parent=1 // pred_check
      _
    $region3: #{rnn_forward.5} parent=1 // pred_check_branch
      %10 = sbr.rel (0) target = $region5
    $region4: #{rnn_forward.5} parent=1 // pred_region
      _
    $region5: #{rnn_forward.5} parent=1 // pred_fallthru
      _
    // Predicated region
    $region6: #{rnn_forward.5} parent=1 // pred_check
      _
    $region7: #{rnn_forward.5} parent=1 // pred_check_branch
      %12 = sbr.rel (0) target = $region9
    $region8: #{rnn_forward.5} parent=1 // pred_region
      _
    $region9: #{rnn_forward.5} parent=1 // pred_fallthru
      _
    // Predicated region
    $region10: #{rnn_forward.5} parent=1 // pred_check
      _
    $region11: #{rnn_forward.5} parent=1 // pred_check_branch
      %14 = sbr.rel (0) target = $region13
    $region12: #{rnn_forward.5} parent=1 // pred_region
      _
    $region13: #{rnn_forward.5} parent=1 // pred_fallthru
      _
    %v16 = vld [vmem:[%s0] sm:$0x3]
    %v17 = vpack.c.bf16 %v16, %v16
    %v18 = vld [vmem:[%s1] sm:$0xf]
    %v19 = vld [vmem:[%s1 + $0x4] sm:$0xf]
    %v20 = vld [vmem:[%s1 + $0x8] sm:$0xf]
    %v21 = vld [vmem:[%s1 + $0xc] sm:$0xf]
    %v22 = vld [vmem:[%s1 + $0x10] sm:$0xf]
    %v23 = vld [vmem:[%s1 + $0x14] sm:$0xf]
    %v24 = vld [vmem:[%s1 + $0x18] sm:$0xf]
    %v25 = vld [vmem:[%s1 + $0x1c] sm:$0xf]
    %v26 = vld [vmem:[%s2] sm:$0x1]
    %v28 = vlaneseq
    %v29 = vshrl.u32 %v28, 7
    %v30 = vsub.s32 0, %v29
    %v31 = vrot.slane %v26, %v30
    %v41 = vunpack.c.l.b16 %v18
    %v42 = vunpack.c.l.b16 %v19
    %v43 = vunpack.c.l.b16 %v20
    %v44 = vunpack.c.l.b16 %v21
    %v45 = vunpack.c.l.b16 %v22
    %v46 = vunpack.c.l.b16 %v23
    %v47 = vunpack.c.l.b16 %v24
    %v48 = vunpack.c.l.b16 %v25
    %v49 = vpack.c.b16 %v42, %v41
    %v50 = vpack.c.b16 %v44, %v43
    %v51 = vpack.c.b16 %v46, %v45
    %v52 = vpack.c.b16 %v48, %v47
    %vm57 = vcmask 523264
    %v59 = vsel %vm57, %v17, 0
    %61 = vmatprep.subr.bf16.mxu0 0
    %62 = vmatpush1.bf16.msra.mxu0 0
    %63 = vmatprep.subr.bf16.mxu0 0
    %64 = vmatpush1.bf16.msra.mxu0 0
    %65 = vmatprep.subr.bf16.mxu0 0
    %66 = vmatpush1.bf16.msra.mxu0 0
    %67 = vmatprep.subr.bf16.mxu0 0
    %68 = vmatpush1.bf16.msra.mxu0 0
    %69 = vmatprep.subr.bf16.mxu0 0
    %70 = vmatpush1.bf16.msra.mxu0 %v52
    %71 = vmatprep.subr.bf16.mxu0 0
    %72 = vmatpush1.bf16.msra.mxu0 %v51
    %73 = vmatprep.subr.bf16.mxu0 0
    %74 = vmatpush1.bf16.msra.mxu0 %v50
    %75 = vmatprep.subr.bf16.mxu0 0
    %76 = vmatpush1.bf16.msra.mxu0 %v49
    %77 = vmatprep.subr.bf16.mxu0 0
    %78 = vmatpush2.bf16.msra.mxu0 0
    %79 = vmatprep.subr.bf16.mxu0 0
    %80 = vmatpush2.bf16.msra.mxu0 0
    %81 = vmatprep.subr.bf16.mxu0 0
    %82 = vmatpush2.bf16.msra.mxu0 0
    %83 = vmatprep.subr.bf16.mxu0 0
    %84 = vmatpush2.bf16.msra.mxu0 0
    %85 = vmatprep.subr.bf16.mxu0 0
    %86 = vmatpush2.bf16.msra.mxu0 0
    %87 = vmatprep.subr.bf16.mxu0 0
    %88 = vmatpush2.bf16.msra.mxu0 0
    %89 = vmatprep.subr.bf16.mxu0 0
    %90 = vmatpush2.bf16.msra.mxu0 0
    %91 = vmatprep.subr.bf16.mxu0 0
    %92 = vmatpush2.bf16.msra.mxu0 0
    %93 = vmatprep.mubr.bf16.mxu0 0
    %94 = vmatmul.mubr.bf16.gmra.mxu0 %v59
    %v95 = vpop.f32.mrf.mxu0
    %v96 = vadd.f32 %v31, %v95
    %v97 = vpop.f32.mrf.mxu0
    %v98 = vpop.f32.mrf.mxu0
    %v99 = vpop.f32.mrf.mxu0
    %100 = vdwg.mxu0
    %vm101 = vcmask 25600
    %102 = vst.msk [vmem:[#allocation2] sm:$0x3] %vm101, %v96
    // Predicated region
    $region14: #{rnn_forward.5} parent=1 // pred_check
      _
    $region15: #{rnn_forward.5} parent=1 // pred_check_branch
      %104 = sbr.rel (0) target = $region17
    $region16: #{rnn_forward.5} parent=1 // pred_region
      %s106 = ssub.s32 32, 32
      %107 = vsyncadd [#allocation3], %s106
      %s109 = sshll.u32 [#allocation2], 4
      %s110 = int_to_ptr.vmem [resolvable:$true] %s109
      %112 = dma.vmem_to_hbm [thread:$0]  %s110, 32, %s3, [#allocation3]
    $region17: #{rnn_forward.5} parent=1 // pred_fallthru
      _
    // Predicated region
    $region18: #{rnn_forward.5} parent=1 // pred_check
      _
    $region19: #{rnn_forward.5} parent=1 // pred_check_branch
      %114 = sbr.rel (0) target = $region21
    $region20: #{rnn_forward.5} parent=1 // pred_region
      %115 = dma.done [#allocation3], 32
    $region21: #{rnn_forward.5} parent=1 // pred_fallthru
      _
    %116 = vsyncpa [#allocation3], 1

// kernel: rnn_forward.4
$region0: #{rnn_forward.4}
  #allocation0 [shape = 'u32[]', space=smem, size = 0x4, offset = 0x4, fixed_abs, tag = 'smem constant byte address 0x4 - core index']
  #allocation1 [shape = 'u32[144,128]{1,0:T(1,128)}', space=vmem, size = 0x12000, scoped, tag = 'internal scratch']
  #allocation2 [shape = 'f32[2,32]{1,0:T(2,128)}', space=vmem, size = 0x400, scoped, tag = 'scratch operand']
  #allocation3 [shape = 'f32[2,32]{1,0:T(2,128)}', space=vmem, size = 0x400, scoped, tag = 'scratch operand']
  %s0 = inlined_call_operand.vmem [shape: f32[2,8,2,32], index: 0, kind: input, shape index: {}]
  %s1 = inlined_call_operand.vmem [shape: bf16[2,96,128], index: 1, kind: input, shape index: {}]
  %s2 = inlined_call_operand.vmem [shape: f32[2,1,128], index: 2, kind: input, shape index: {}]
  %s3 = inlined_call_operand.vmem [shape: f32[2,8,2,32], index: 3, kind: output, shape index: {}]
  %s4 = sld [smem:[#allocation0]]
  $region49: #{rnn_forward.4} parent=0
    _
  %s6 = ssub.s32 1, %s4
  %s7 = scalar_select 0, %s6, %s4
  loop: start=0, step=1, limit=4
  $region2: #{rnn_forward.4} parent=0 // loop_pre_header
    _
  $region3: #{rnn_forward.4} parent=0 // loop_header
    %s9 = sphi 0, %s13
    %p10 = scmp.ge.s32.totalorder %s9, 4
    %s16 = sphi 0, %s28
    %s17 = sphi 0, %s24
    %s18 = sphi 0, %s16
    %s19 = sphi 0, %s17
    %s20 = sphi 0, %s18
    %s21 = sphi 0, %s19
    %s39 = sphi 0, %s41
    %s42 = sphi 0, %s39
    %s43 = sphi 0, %s42
    %s59 = sphi 0, %s43
    %s65 = sphi 0, %s67
    %s68 = sphi 0, %s65
    %s69 = sphi 0, %s68
    %s85 = sphi 0, %s69
    %s91 = sphi 0, %s93
    %s94 = sphi 0, %s91
    %s95 = sphi 0, %s94
    %s111 = sphi 0, %s95
    %s127 = sphi 0, %s129
    %s130 = sphi 0, %s127
    %s131 = sphi 0, %s130
    %s147 = sphi 0, %s131
  $region4: #{rnn_forward.4} parent=0 // loop_header_branch
    %12 = sbr.rel (%p10) target = $region8
  $region5: #{rnn_forward.4} parent=0 // loop_body
    %s14 = ssub.s32 %s9, 1
    %s15 = ssub.s32 %s9, 2
    %s22 = sadd.s32 1, %s17
    %p23 = scmp.ge.s32.totalorder %s22, 1
    %s24 = scalar_select %p23, 0, %s22
    %s25 = sadd.s32 1, %s16
    %s26 = scalar_select %p23, %s25, %s16
    %p27 = scmp.ge.s32.totalorder %s26, 2
    %s28 = scalar_select %p27, 0, %s26
    %s29 = smul.u32 %s17, 2
    %s30 = ssub.s32 0, %s29
    %s31 = smul.u32 %s16, %s30
    %s32 = sadd.s32 %s17, %s31
    %s33 = smul.u32 %s24, 2
    %s34 = ssub.s32 0, %s33
    %s35 = smul.u32 %s28, %s34
    %s36 = sadd.s32 %s24, %s35
    %s37 = ssub.s32 %s32, %s36
    %p38 = scmp.eq.s32.totalorder %s37, 0
    %s40 = sadd.s32 %s39, 1
    %s41 = scalar_select %p38, %s39, %s40
    %p44 = pneg %p38
    %p45 = scmp.eq.s32.totalorder %s9, 1
    %p46 = por %p44, %p45
    %p47 = scmp.ne.s32.totalorder %s39, %s42
    %p48 = scmp.eq.s32.totalorder %s9, 0
    %p49 = por %p47, %p48
    %p50 = scmp.ne.s32.totalorder %s39, %s42
    %p51 = scmp.eq.s32.totalorder %s14, 1
    %p52 = por %p50, %p51
    %p53 = scmp.ne.s32.totalorder %s42, %s43
    %p54 = scmp.eq.s32.totalorder %s14, 0
    %p55 = por %p53, %p54
    %p56 = scmp.ne.s32.totalorder %s42, %s43
    %p57 = scmp.eq.s32.totalorder %s15, 1
    %p58 = por %p56, %p57
    %p60 = scmp.ne.s32.totalorder %s43, %s59
    %p61 = scmp.eq.s32.totalorder %s15, 0
    %p62 = por %p60, %p61
    %s63 = ssub.s32 %s16, %s28
    %p64 = scmp.eq.s32.totalorder %s63, 0
    %s66 = sadd.s32 %s65, 1
    %s67 = scalar_select %p64, %s65, %s66
    %p70 = pneg %p64
    %p71 = scmp.eq.s32.totalorder %s9, 1
    %p72 = por %p70, %p71
    %p73 = scmp.ne.s32.totalorder %s65, %s68
    %p74 = scmp.eq.s32.totalorder %s9, 0
    %p75 = por %p73, %p74
    %p76 = scmp.ne.s32.totalorder %s65, %s68
    %p77 = scmp.eq.s32.totalorder %s14, 1
    %p78 = por %p76, %p77
    %p79 = scmp.ne.s32.totalorder %s68, %s69
    %p80 = scmp.eq.s32.totalorder %s14, 0
    %p81 = por %p79, %p80
    %p82 = scmp.ne.s32.totalorder %s68, %s69
    %p83 = scmp.eq.s32.totalorder %s15, 1
    %p84 = por %p82, %p83
    %p86 = scmp.ne.s32.totalorder %s69, %s85
    %p87 = scmp.eq.s32.totalorder %s15, 0
    %p88 = por %p86, %p87
    %s89 = ssub.s32 %s16, %s28
    %p90 = scmp.eq.s32.totalorder %s89, 0
    %s92 = sadd.s32 %s91, 1
    %s93 = scalar_select %p90, %s91, %s92
    %p96 = pneg %p90
    %p97 = scmp.eq.s32.totalorder %s9, 1
    %p98 = por %p96, %p97
    %p99 = scmp.ne.s32.totalorder %s91, %s94
    %p100 = scmp.eq.s32.totalorder %s9, 0
    %p101 = por %p99, %p100
    %p102 = scmp.ne.s32.totalorder %s91, %s94
    %p103 = scmp.eq.s32.totalorder %s14, 1
    %p104 = por %p102, %p103
    %p105 = scmp.ne.s32.totalorder %s94, %s95
    %p106 = scmp.eq.s32.totalorder %s14, 0
    %p107 = por %p105, %p106
    %p108 = scmp.ne.s32.totalorder %s94, %s95
    %p109 = scmp.eq.s32.totalorder %s15, 1
    %p110 = por %p108, %p109
    %p112 = scmp.ne.s32.totalorder %s95, %s111
    %p113 = scmp.eq.s32.totalorder %s15, 0
    %p114 = por %p112, %p113
    %s115 = smul.u32 %s17, 2
    %s116 = ssub.s32 0, %s115
    %s117 = smul.u32 %s16, %s116
    %s118 = sadd.s32 %s17, %s117
    %s119 = smul.u32 %s24, 2
    %s120 = ssub.s32 0, %s119
    %s121 = smul.u32 %s28, %s120
    %s122 = sadd.s32 %s24, %s121
    %s123 = ssub.s32 %s16, %s28
    %s124 = ssub.s32 %s118, %s122
    %s125 = sor.u32 %s123, %s124
    %p126 = scmp.eq.s32.totalorder %s125, 0
    %s128 = sadd.s32 %s127, 1
    %s129 = scalar_select %p126, %s127, %s128
    %p132 = pneg %p126
    %p133 = scmp.eq.s32.totalorder %s9, 1
    %p134 = por %p132, %p133
    %p135 = scmp.ne.s32.totalorder %s127, %s130
    %p136 = scmp.eq.s32.totalorder %s9, 0
    %p137 = por %p135, %p136
    %p138 = scmp.ne.s32.totalorder %s127, %s130
    %p139 = scmp.eq.s32.totalorder %s14, 1
    %p140 = por %p138, %p139
    %p141 = scmp.ne.s32.totalorder %s130, %s131
    %p142 = scmp.eq.s32.totalorder %s14, 0
    %p143 = por %p141, %p142
    %p144 = scmp.ne.s32.totalorder %s130, %s131
    %p145 = scmp.eq.s32.totalorder %s15, 1
    %p146 = por %p144, %p145
    %p148 = scmp.ne.s32.totalorder %s131, %s147
    %p149 = scmp.eq.s32.totalorder %s15, 0
    %p150 = por %p148, %p149
    %p151 = scmp.le.s32.totalorder 1, %s9
    %p152 = scmp.lt.s32.totalorder %s9, 3
    %p153 = pnand %p151, %p152
    %p154 = pneg %p153
    // Predicated region
    $region9: #{rnn_forward.4} parent=5 // pred_check
      _
    $region10: #{rnn_forward.4} parent=5 // pred_check_branch
      %156 = sbr.rel (%p153) target = $region12
    $region11: #{rnn_forward.4} parent=5 // pred_region
      %s157 = ssub.s32 %s9, 1
    $region12: #{rnn_forward.4} parent=5 // pred_fallthru
      _
    %p158 = scmp.lt.s32.totalorder %s9, 2
    // Predicated region
    $region13: #{rnn_forward.4} parent=5 // pred_check
      %p159 = pneg %p158
    $region14: #{rnn_forward.4} parent=5 // pred_check_branch
      %161 = sbr.rel (%p159) target = $region16
    $region15: #{rnn_forward.4} parent=5 // pred_region
      // Predicated region
      $region17: #{rnn_forward.4} parent=15 // pred_check
        %p162 = pneg %p49
      $region18: #{rnn_forward.4} parent=15 // pred_check_branch
        %164 = sbr.rel (%p162) target = $region20
      $region19: #{rnn_forward.4} parent=15 // pred_region
        %s165 = smul.u32 %s17, 2
        %s166 = ssub.s32 0, %s165
        %s167 = smul.u32 %s16, %s166
        %s168 = sadd.s32 %s17, %s167
        %s169 = smul.u32 8, %s168
        %p170 = scmp.lt.s32.totalorder %s169, 7
        %s171 = scalar_select %p170, %s169, 7
        %s172 = smul.addr %s171, 2
        %s173 = scalar_lea.vmem %s0, %s172
        %s174 = smul.u32 %s17, 2
        %s175 = ssub.s32 0, %s174
        %s176 = smul.u32 %s16, %s175
        %s177 = sadd.s32 %s17, %s176
        %s178 = smul.u32 8, %s177
      $region20: #{rnn_forward.4} parent=15 // pred_fallthru
        _
      // Predicated region
      $region21: #{rnn_forward.4} parent=15 // pred_check
        %p179 = pneg %p75
      $region22: #{rnn_forward.4} parent=15 // pred_check_branch
        %181 = sbr.rel (%p179) target = $region24
      $region23: #{rnn_forward.4} parent=15 // pred_region
        %p182 = scmp.lt.s32.totalorder %s16, 1
        %s183 = scalar_select %p182, %s16, 1
        %s184 = smul.addr %s183, 12
        %s185 = smul.addr %s184, 4
        %s186 = scalar_lea.vmem %s1, %s185
      $region24: #{rnn_forward.4} parent=15 // pred_fallthru
        _
      // Predicated region
      $region25: #{rnn_forward.4} parent=15 // pred_check
        %p187 = pneg %p101
      $region26: #{rnn_forward.4} parent=15 // pred_check_branch
        %189 = sbr.rel (%p187) target = $region28
      $region27: #{rnn_forward.4} parent=15 // pred_region
        %p190 = scmp.lt.s32.totalorder %s16, 1
        %s191 = scalar_select %p190, %s16, 1
        %s192 = scalar_lea.vmem %s2, %s191
      $region28: #{rnn_forward.4} parent=15 // pred_fallthru
        _
    $region16: #{rnn_forward.4} parent=5 // pred_fallthru
      _
    %p193 = scmp.le.s32.totalorder 1, %s9
    %p194 = scmp.lt.s32.totalorder %s9, 3
    %p195 = pnand %p193, %p194
    %p196 = pneg %p195
    // Predicated region
    $region29: #{rnn_forward.4} parent=5 // pred_check
      _
    $region30: #{rnn_forward.4} parent=5 // pred_check_branch
      %198 = sbr.rel (%p195) target = $region32
    $region31: #{rnn_forward.4} parent=5 // pred_region
      %s199 = ssub.s32 %s9, 1
      %s200 = smul.u32 %s19, 2
      %s201 = ssub.s32 0, %s200
      %s202 = smul.u32 %s18, %s201
      %s203 = sadd.s32 %s19, %s202
      %s204 = smul.u32 8, %s203
      %p205 = scmp.lt.s32.totalorder %s204, 7
      %s206 = scalar_select %p205, %s204, 7
      %s207 = smul.addr %s206, 2
      %s208 = scalar_lea.vmem %s0, %s207
      %p209 = pneg %p55
      %p210 = pneg %p52
      %p211 = scmp.lt.s32.totalorder %s18, 1
      %s212 = scalar_select %p211, %s18, 1
      %s213 = smul.addr %s212, 12
      %s214 = smul.addr %s213, 4
      %s215 = scalar_lea.vmem %s1, %s214
      %p216 = pneg %p81
      %p217 = pneg %p78
      %p218 = scmp.lt.s32.totalorder %s18, 1
      %s219 = scalar_select %p218, %s18, 1
      %s220 = scalar_lea.vmem %s2, %s219
      %p221 = pneg %p107
      %p222 = pneg %p104
      %p223 = pneg %p143
      %p224 = pneg %p140
      %s225 = smul.u32 %s19, 2
      %s226 = ssub.s32 0, %s225
      %s227 = smul.u32 %s18, %s226
      %s228 = sadd.s32 %s19, %s227
      %s229 = smul.u32 8, %s228
      %p230 = scmp.lt.s32.totalorder %s18, 1
      %s231 = scalar_select %p230, %s18, 1
      %p232 = scmp.lt.s32.totalorder %s229, 7
      %s233 = scalar_select %p232, %s229, 7
      %s234 = smul.addr %s231, 8
      %s235 = sadd.s32 %s233, %s234
      %s236 = smul.addr %s235, 2
      %s237 = scalar_lea.vmem %s3, %s236
      %s238 = smul.u32 %s19, 2
      %s239 = ssub.s32 0, %s238
      %s240 = smul.u32 %s18, %s239
      %s241 = sadd.s32 %s19, %s240
      %s242 = smul.u32 8, %s241
      %p243 = scmp.lt.s32.totalorder %s242, 7
      %s244 = scalar_select %p243, %s242, 7
      %s245 = smul.addr %s244, 2
      %s246 = scalar_lea.vmem %s0, %s245
      %s247 = smul.u32 %s19, 2
      %s248 = ssub.s32 0, %s247
      %s249 = smul.u32 %s18, %s248
      %s250 = sadd.s32 %s19, %s249
      %s251 = smul.u32 8, %s250
      %p252 = scmp.lt.s32.totalorder %s18, 1
      %s253 = scalar_select %p252, %s18, 1
      %s254 = smul.addr %s253, 12
      %s255 = smul.addr %s254, 4
      %s256 = scalar_lea.vmem %s1, %s255
      %p257 = scmp.lt.s32.totalorder %s18, 1
      %s258 = scalar_select %p257, %s18, 1
      %s259 = scalar_lea.vmem %s2, %s258
      %s260 = smul.u32 %s19, 2
      %s261 = ssub.s32 0, %s260
      %s262 = smul.u32 %s18, %s261
      %s263 = sadd.s32 %s19, %s262
      %s264 = smul.u32 8, %s263
      %p265 = scmp.lt.s32.totalorder %s18, 1
      %s266 = scalar_select %p265, %s18, 1
      %p267 = scmp.lt.s32.totalorder %s264, 7
      %s268 = scalar_select %p267, %s264, 7
      %s269 = smul.addr %s266, 8
      %s270 = sadd.s32 %s268, %s269
      %s271 = smul.addr %s270, 2
      %s272 = scalar_lea.vmem %s3, %s271
      %s273 = smul.u32 %s19, 2
      %s274 = ssub.s32 0, %s273
      %s275 = smul.u32 %s18, %s274
      %s276 = sadd.s32 %s19, %s275
      %s277 = smul.u32 8, %s276
      %p279 = scmp.eq.s32.totalorder %s19, 0
      // Predicated region
      $region33: #{rnn_forward.4} parent=31 // pred_check
        %p280 = pneg %p279
      $region34: #{rnn_forward.4} parent=31 // pred_check_branch
        %282 = sbr.rel (%p280) target = $region36
      $region35: #{rnn_forward.4} parent=31 // pred_region
        %vm283 = vcmask 254976
        %284 = vst.msk [vmem:[#allocation2] sm:$0x3] %vm283, 0.0
        %285 = vst.msk [vmem:[#allocation3] sm:$0x3] %vm283, 0.0
      $region36: #{rnn_forward.4} parent=31 // pred_fallthru
        _
      %v286 = vld [vmem:[%s256] sm:$0xf]
      %v287 = vld [vmem:[%s256 + $0x4] sm:$0xf]
      %v288 = vld [vmem:[%s256 + $0x8] sm:$0xf]
      %v289 = vld [vmem:[%s256 + $0xc] sm:$0xf]
      %v290 = vld [vmem:[%s256 + $0x10] sm:$0xf]
      %v291 = vld [vmem:[%s256 + $0x14] sm:$0xf]
      %v292 = vld [vmem:[%s256 + $0x18] sm:$0xf]
      %v293 = vld [vmem:[%s256 + $0x1c] sm:$0xf]
      %v294 = vld [vmem:[%s256 + $0x20] sm:$0xf]
      %v295 = vld [vmem:[%s256 + $0x24] sm:$0xf]
      %v296 = vld [vmem:[%s256 + $0x28] sm:$0xf]
      %v297 = vld [vmem:[%s256 + $0x2c] sm:$0xf]
      %v298 = vld [vmem:[%s259] sm:$0x1]
      %s299 = smul.u32 %s18, 7
      %v300 = vld [vmem:[#allocation2] sm:$0x3]
      %v301 = vpack.c.bf16 %v300, %v300
      %s302 = smul.u32 %s299, 2
      %s303 = scalar_lea.vmem %s246, %s302
      %v304 = vld [vmem:[%s303] sm:$0x3]
      %v305 = vpack.c.bf16 %v304, %v304
      %v310 = vunpack.c.l.b16 %v286
      %v311 = vunpack.c.l.b16 %v287
      %v312 = vunpack.c.l.b16 %v288
      %v313 = vunpack.c.l.b16 %v289
      %v314 = vpack.c.b16 %v311, %v310
      %v315 = vpack.c.b16 %v313, %v312
      %vm318 = vcmask 261120
      %v320 = vsel %vm318, %v305, 0
      %322 = vmatprep.subr.bf16.mxu0 0
      %323 = vmatpush1.bf16.msra.mxu0 0
      %324 = vmatprep.subr.bf16.mxu0 0
      %325 = vmatpush1.bf16.msra.mxu0 0
      %326 = vmatprep.subr.bf16.mxu0 0
      %327 = vmatpush1.bf16.msra.mxu0 0
      %328 = vmatprep.subr.bf16.mxu0 0
      %329 = vmatpush1.bf16.msra.mxu0 0
      %330 = vmatprep.subr.bf16.mxu0 0
      %331 = vmatpush1.bf16.msra.mxu0 0
      %332 = vmatprep.subr.bf16.mxu0 0
      %333 = vmatpush1.bf16.msra.mxu0 0
      %334 = vmatprep.subr.bf16.mxu0 0
      %335 = vmatpush1.bf16.msra.mxu0 %v315
      %336 = vmatprep.subr.bf16.mxu0 0
      %337 = vmatpush1.bf16.msra.mxu0 %v314
      %338 = vmatprep.subr.bf16.mxu0 0
      %339 = vmatpush2.bf16.msra.mxu0 0
      %340 = vmatprep.subr.bf16.mxu0 0
      %341 = vmatpush2.bf16.msra.mxu0 0
      %342 = vmatprep.subr.bf16.mxu0 0
      %343 = vmatpush2.bf16.msra.mxu0 0
      %344 = vmatprep.subr.bf16.mxu0 0
      %345 = vmatpush2.bf16.msra.mxu0 0
      %346 = vmatprep.subr.bf16.mxu0 0
      %347 = vmatpush2.bf16.msra.mxu0 0
      %348 = vmatprep.subr.bf16.mxu0 0
      %349 = vmatpush2.bf16.msra.mxu0 0
      %350 = vmatprep.subr.bf16.mxu0 0
      %351 = vmatpush2.bf16.msra.mxu0 0
      %352 = vmatprep.subr.bf16.mxu0 0
      %353 = vmatpush2.bf16.msra.mxu0 0
      %354 = vmatprep.mubr.bf16.mxu0 0
      %355 = vmatmul.mubr.bf16.gmra.mxu0 %v320
      %v356 = vpop.f32.mrf.mxu0
      %v357 = vadd.f32 0.0, %v356
      %v358 = vpop.f32.mrf.mxu0
      %v359 = vpop.f32.mrf.mxu0
      %v360 = vpop.f32.mrf.mxu0
      %361 = vdwg.mxu0
      %v366 = vunpack.c.l.b16 %v294
      %v367 = vunpack.c.l.b16 %v295
      %v368 = vunpack.c.l.b16 %v296
      %v369 = vunpack.c.l.b16 %v297
      %v370 = vpack.c.b16 %v367, %v366
      %v371 = vpack.c.b16 %v369, %v368
      %v375 = vsel %vm318, %v301, 0
      %377 = vmatprep.subr.bf16.mxu0 0
      %378 = vmatpush1.bf16.msra.mxu0 0
      %379 = vmatprep.subr.bf16.mxu0 0
      %380 = vmatpush1.bf16.msra.mxu0 0
      %381 = vmatprep.subr.bf16.mxu0 0
      %382 = vmatpush1.bf16.msra.mxu0 0
      %383 = vmatprep.subr.bf16.mxu0 0
      %384 = vmatpush1.bf16.msra.mxu0 0
      %385 = vmatprep.subr.bf16.mxu0 0
      %386 = vmatpush1.bf16.msra.mxu0 0
      %387 = vmatprep.subr.bf16.mxu0 0
      %388 = vmatpush1.bf16.msra.mxu0 0
      %389 = vmatprep.subr.bf16.mxu0 0
      %390 = vmatpush1.bf16.msra.mxu0 %v371
      %391 = vmatprep.subr.bf16.mxu0 0
      %392 = vmatpush1.bf16.msra.mxu0 %v370
      %393 = vmatprep.subr.bf16.mxu0 0
      %394 = vmatpush2.bf16.msra.mxu0 0
      %395 = vmatprep.subr.bf16.mxu0 0
      %396 = vmatpush2.bf16.msra.mxu0 0
      %397 = vmatprep.subr.bf16.mxu0 0
      %398 = vmatpush2.bf16.msra.mxu0 0
      %399 = vmatprep.subr.bf16.mxu0 0
      %400 = vmatpush2.bf16.msra.mxu0 0
      %401 = vmatprep.subr.bf16.mxu0 0
      %402 = vmatpush2.bf16.msra.mxu0 0
      %403 = vmatprep.subr.bf16.mxu0 0
      %404 = vmatpush2.bf16.msra.mxu0 0
      %405 = vmatprep.subr.bf16.mxu0 0
      %406 = vmatpush2.bf16.msra.mxu0 0
      %407 = vmatprep.subr.bf16.mxu0 0
      %408 = vmatpush2.bf16.msra.mxu0 0
      %409 = vmatprep.mubr.bf16.mxu0 0
      %410 = vmatmul.mubr.bf16.gmra.mxu0 %v375
      %v411 = vpop.f32.mrf.mxu0
      %v412 = vadd.f32 %v357, %v411
      %v413 = vpop.f32.mrf.mxu0
      %v414 = vpop.f32.mrf.mxu0
      %v415 = vpop.f32.mrf.mxu0
      %416 = vdwg.mxu0
      %s417 = sadd.s32 %s302, 16
      %s418 = scalar_lea.vmem %s246, %s417
      %v419 = vld [vmem:[%s418] sm:$0x3]
      %v420 = vpack.c.bf16 %v419, %v419
      %v425 = vunpack.c.l.b16 %v290
      %v426 = vunpack.c.l.b16 %v291
      %v427 = vunpack.c.l.b16 %v292
      %v428 = vunpack.c.l.b16 %v293
      %v429 = vpack.c.b16 %v426, %v425
      %v430 = vpack.c.b16 %v428, %v427
      %v434 = vsel %vm318, %v420, 0
      %436 = vmatprep.subr.bf16.mxu0 0
      %437 = vmatpush1.bf16.msra.mxu0 0
      %438 = vmatprep.subr.bf16.mxu0 0
      %439 = vmatpush1.bf16.msra.mxu0 0
      %440 = vmatprep.subr.bf16.mxu0 0
      %441 = vmatpush1.bf16.msra.mxu0 0
      %442 = vmatprep.subr.bf16.mxu0 0
      %443 = vmatpush1.bf16.msra.mxu0 0
      %444 = vmatprep.subr.bf16.mxu0 0
      %445 = vmatpush1.bf16.msra.mxu0 0
      %446 = vmatprep.subr.bf16.mxu0 0
      %447 = vmatpush1.bf16.msra.mxu0 0
      %448 = vmatprep.subr.bf16.mxu0 0
      %449 = vmatpush1.bf16.msra.mxu0 %v430
      %450 = vmatprep.subr.bf16.mxu0 0
      %451 = vmatpush1.bf16.msra.mxu0 %v429
      %452 = vmatprep.subr.bf16.mxu0 0
      %453 = vmatpush2.bf16.msra.mxu0 0
      %454 = vmatprep.subr.bf16.mxu0 0
      %455 = vmatpush2.bf16.msra.mxu0 0
      %456 = vmatprep.subr.bf16.mxu0 0
      %457 = vmatpush2.bf16.msra.mxu0 0
      %458 = vmatprep.subr.bf16.mxu0 0
      %459 = vmatpush2.bf16.msra.mxu0 0
      %460 = vmatprep.subr.bf16.mxu0 0
      %461 = vmatpush2.bf16.msra.mxu0 0
      %462 = vmatprep.subr.bf16.mxu0 0
      %463 = vmatpush2.bf16.msra.mxu0 0
      %464 = vmatprep.subr.bf16.mxu0 0
      %465 = vmatpush2.bf16.msra.mxu0 0
      %466 = vmatprep.subr.bf16.mxu0 0
      %467 = vmatpush2.bf16.msra.mxu0 0
      %468 = vmatprep.mubr.bf16.mxu0 0
      %469 = vmatmul.mubr.bf16.gmra.mxu0 %v434
      %v470 = vpop.f32.mrf.mxu0
      %v471 = vadd.f32 0.0, %v470
      %v472 = vpop.f32.mrf.mxu0
      %v473 = vpop.f32.mrf.mxu0
      %v474 = vpop.f32.mrf.mxu0
      %475 = vdwg.mxu0
      %v476 = vadd.f32 %v412, %v471
      %v478 = vlaneseq
      %v479 = vshrl.u32 %v478, 7
      %v480 = vsub.s32 0, %v479
      %v481 = vrot.slane %v298, %v480
      %v483 = vadd.f32 %v476, %v481
      %v484 = vxor.u32 %v483, 2147483648
      %v485 = vmul.f32 %v484, 1.442695
      %v486 = vpow.pop %v485
      %v487 = vadd.f32 %v486, 1.0
      %v488 = vrcp.pop %v487
      %v489 = vmul.f32 1.0, %v488
      %v490 = vtanh.pop %v483
      %v491 = vld [vmem:[#allocation3] sm:$0x3]
      %493 = vrot.lane.b32.xlu0 %v491, 32
      %v494 = vpop.permute.xlu0 %493
      %v496 = vmul.f32 %v489, %v494
      %498 = vrot.lane.b32.xlu0 %v490, 64
      %v499 = vpop.permute.xlu0 %498
      %v501 = vmul.f32 %v489, %v499
      %503 = vrot.lane.b32.xlu0 %v501, 32
      %v504 = vpop.permute.xlu0 %503
      %v506 = vadd.f32 %v496, %v504
      %v507 = vtanh.pop %v506
      %509 = vrot.lane.b32.xlu0 %v507, 64
      %v510 = vpop.permute.xlu0 %509
      %v512 = vmul.f32 %v489, %v510
      %514 = vrot.lane.b32.xlu0 %v512, 32
      %v515 = vpop.permute.xlu0 %514
      %vm517 = vcmask 254976
      %518 = vst.msk [vmem:[#allocation2] sm:$0x3] %vm517, %v515
      %520 = vrot.lane.b32.xlu0 %v506, 96
      %v521 = vpop.permute.xlu0 %520
      %523 = vst.msk [vmem:[#allocation3] sm:$0x3] %vm517, %v521
      %s524 = scalar_lea.vmem %s272, %s302
      %525 = vst.msk [vmem:[%s524] sm:$0x3] %vm517, %v515
      %s526 = smul.u32 %s18, 5
      %s527 = sadd.s32 %s526, 1
      %v528 = vld [vmem:[#allocation2] sm:$0x3]
      %v529 = vpack.c.bf16 %v528, %v528
      %s530 = smul.u32 %s527, 2
      %s531 = scalar_lea.vmem %s246, %s530
      %v532 = vld [vmem:[%s531] sm:$0x3]
      %v533 = vpack.c.bf16 %v532, %v532
      %v535 = vsel %vm318, %v533, 0
      %537 = vmatprep.subr.bf16.mxu0 0
      %538 = vmatpush1.bf16.msra.mxu0 0
      %539 = vmatprep.subr.bf16.mxu0 0
      %540 = vmatpush1.bf16.msra.mxu0 0
      %541 = vmatprep.subr.bf16.mxu0 0
      %542 = vmatpush1.bf16.msra.mxu0 0
      %543 = vmatprep.subr.bf16.mxu0 0
      %544 = vmatpush1.bf16.msra.mxu0 0
      %545 = vmatprep.subr.bf16.mxu0 0
      %546 = vmatpush1.bf16.msra.mxu0 0
      %547 = vmatprep.subr.bf16.mxu0 0
      %548 = vmatpush1.bf16.msra.mxu0 0
      %549 = vmatprep.subr.bf16.mxu0 0
      %550 = vmatpush1.bf16.msra.mxu0 %v315
      %551 = vmatprep.subr.bf16.mxu0 0
      %552 = vmatpush1.bf16.msra.mxu0 %v314
      %553 = vmatprep.subr.bf16.mxu0 0
      %554 = vmatpush2.bf16.msra.mxu0 0
      %555 = vmatprep.subr.bf16.mxu0 0
      %556 = vmatpush2.bf16.msra.mxu0 0
      %557 = vmatprep.subr.bf16.mxu0 0
      %558 = vmatpush2.bf16.msra.mxu0 0
      %559 = vmatprep.subr.bf16.mxu0 0
      %560 = vmatpush2.bf16.msra.mxu0 0
      %561 = vmatprep.subr.bf16.mxu0 0
      %562 = vmatpush2.bf16.msra.mxu0 0
      %563 = vmatprep.subr.bf16.mxu0 0
      %564 = vmatpush2.bf16.msra.mxu0 0
      %565 = vmatprep.subr.bf16.mxu0 0
      %566 = vmatpush2.bf16.msra.mxu0 0
      %567 = vmatprep.subr.bf16.mxu0 0
      %568 = vmatpush2.bf16.msra.mxu0 0
      %569 = vmatprep.mubr.bf16.mxu0 0
      %570 = vmatmul.mubr.bf16.gmra.mxu0 %v535
      %v571 = vpop.f32.mrf.mxu0
      %v572 = vadd.f32 0.0, %v571
      %v573 = vpop.f32.mrf.mxu0
      %v574 = vpop.f32.mrf.mxu0
      %v575 = vpop.f32.mrf.mxu0
      %576 = vdwg.mxu0
      %v578 = vsel %vm318, %v529, 0
      %580 = vmatprep.subr.bf16.mxu0 0
      %581 = vmatpush1.bf16.msra.mxu0 0
      %582 = vmatprep.subr.bf16.mxu0 0
      %583 = vmatpush1.bf16.msra.mxu0 0
      %584 = vmatprep.subr.bf16.mxu0 0
      %585 = vmatpush1.bf16.msra.mxu0 0
      %586 = vmatprep.subr.bf16.mxu0 0
      %587 = vmatpush1.bf16.msra.mxu0 0
      %588 = vmatprep.subr.bf16.mxu0 0
      %589 = vmatpush1.bf16.msra.mxu0 0
      %590 = vmatprep.subr.bf16.mxu0 0
      %591 = vmatpush1.bf16.msra.mxu0 0
      %592 = vmatprep.subr.bf16.mxu0 0
      %593 = vmatpush1.bf16.msra.mxu0 %v371
      %594 = vmatprep.subr.bf16.mxu0 0
      %595 = vmatpush1.bf16.msra.mxu0 %v370
      %596 = vmatprep.subr.bf16.mxu0 0
      %597 = vmatpush2.bf16.msra.mxu0 0
      %598 = vmatprep.subr.bf16.mxu0 0
      %599 = vmatpush2.bf16.msra.mxu0 0
      %600 = vmatprep.subr.bf16.mxu0 0
      %601 = vmatpush2.bf16.msra.mxu0 0
      %602 = vmatprep.subr.bf16.mxu0 0
      %603 = vmatpush2.bf16.msra.mxu0 0
      %604 = vmatprep.subr.bf16.mxu0 0
      %605 = vmatpush2.bf16.msra.mxu0 0
      %606 = vmatprep.subr.bf16.mxu0 0
      %607 = vmatpush2.bf16.msra.mxu0 0
      %608 = vmatprep.subr.bf16.mxu0 0
      %609 = vmatpush2.bf16.msra.mxu0 0
      %610 = vmatprep.subr.bf16.mxu0 0
      %611 = vmatpush2.bf16.msra.mxu0 0
      %612 = vmatprep.mubr.bf16.mxu0 0
      %613 = vmatmul.mubr.bf16.gmra.mxu0 %v578
      %v614 = vpop.f32.mrf.mxu0
      %v615 = vadd.f32 %v572, %v614
      %v616 = vpop.f32.mrf.mxu0
      %v617 = vpop.f32.mrf.mxu0
      %v618 = vpop.f32.mrf.mxu0
      %619 = vdwg.mxu0
      %s620 = sadd.s32 %s530, 16
      %s621 = scalar_lea.vmem %s246, %s620
      %v622 = vld [vmem:[%s621] sm:$0x3]
      %v623 = vpack.c.bf16 %v622, %v622
      %v625 = vsel %vm318, %v623, 0
      %627 = vmatprep.subr.bf16.mxu0 0
      %628 = vmatpush1.bf16.msra.mxu0 0
      %629 = vmatprep.subr.bf16.mxu0 0
      %630 = vmatpush1.bf16.msra.mxu0 0
      %631 = vmatprep.subr.bf16.mxu0 0
      %632 = vmatpush1.bf16.msra.mxu0 0
      %633 = vmatprep.subr.bf16.mxu0 0
      %634 = vmatpush1.bf16.msra.mxu0 0
      %635 = vmatprep.subr.bf16.mxu0 0
      %636 = vmatpush1.bf16.msra.mxu0 0
      %637 = vmatprep.subr.bf16.mxu0 0
      %638 = vmatpush1.bf16.msra.mxu0 0
      %639 = vmatprep.subr.bf16.mxu0 0
      %640 = vmatpush1.bf16.msra.mxu0 %v430
      %641 = vmatprep.subr.bf16.mxu0 0
      %642 = vmatpush1.bf16.msra.mxu0 %v429
      %643 = vmatprep.subr.bf16.mxu0 0
      %644 = vmatpush2.bf16.msra.mxu0 0
      %645 = vmatprep.subr.bf16.mxu0 0
      %646 = vmatpush2.bf16.msra.mxu0 0
      %647 = vmatprep.subr.bf16.mxu0 0
      %648 = vmatpush2.bf16.msra.mxu0 0
      %649 = vmatprep.subr.bf16.mxu0 0
      %650 = vmatpush2.bf16.msra.mxu0 0
      %651 = vmatprep.subr.bf16.mxu0 0
      %652 = vmatpush2.bf16.msra.mxu0 0
      %653 = vmatprep.subr.bf16.mxu0 0
      %654 = vmatpush2.bf16.msra.mxu0 0
      %655 = vmatprep.subr.bf16.mxu0 0
      %656 = vmatpush2.bf16.msra.mxu0 0
      %657 = vmatprep.subr.bf16.mxu0 0
      %658 = vmatpush2.bf16.msra.mxu0 0
      %659 = vmatprep.mubr.bf16.mxu0 0
      %660 = vmatmul.mubr.bf16.gmra.mxu0 %v625
      %v661 = vpop.f32.mrf.mxu0
      %v662 = vadd.f32 0.0, %v661
      %v663 = vpop.f32.mrf.mxu0
      %v664 = vpop.f32.mrf.mxu0
      %v665 = vpop.f32.mrf.mxu0
      %666 = vdwg.mxu0
      %v667 = vadd.f32 %v615, %v662
      %v668 = vadd.f32 %v667, %v481
      %v669 = vxor.u32 %v668, 2147483648
      %v670 = vmul.f32 %v669, 1.442695
      %v671 = vpow.pop %v670
      %v672 = vadd.f32 %v671, 1.0
      %v673 = vrcp.pop %v672
      %v674 = vmul.f32 1.0, %v673
      %v675 = vtanh.pop %v668
      %v676 = vld [vmem:[#allocation3] sm:$0x3]
      %678 = vrot.lane.b32.xlu0 %v676, 32
      %v679 = vpop.permute.xlu0 %678
      %v681 = vmul.f32 %v674, %v679
      %683 = vrot.lane.b32.xlu0 %v675, 64
      %v684 = vpop.permute.xlu0 %683
      %v686 = vmul.f32 %v674, %v684
      %688 = vrot.lane.b32.xlu0 %v686, 32
      %v689 = vpop.permute.xlu0 %688
      %v691 = vadd.f32 %v681, %v689
      %v692 = vtanh.pop %v691
      %694 = vrot.lane.b32.xlu0 %v692, 64
      %v695 = vpop.permute.xlu0 %694
      %v697 = vmul.f32 %v674, %v695
      %699 = vrot.lane.b32.xlu0 %v697, 32
      %v700 = vpop.permute.xlu0 %699
      %702 = vst.msk [vmem:[#allocation2] sm:$0x3] %vm517, %v700
      %704 = vrot.lane.b32.xlu0 %v691, 96
      %v705 = vpop.permute.xlu0 %704
      %707 = vst.msk [vmem:[#allocation3] sm:$0x3] %vm517, %v705
      %s708 = scalar_lea.vmem %s272, %s530
      %709 = vst.msk [vmem:[%s708] sm:$0x3] %vm517, %v700
      %s710 = smul.u32 %s18, 3
      %s711 = sadd.s32 %s710, 2
      %v712 = vld [vmem:[#allocation2] sm:$0x3]
      %v713 = vpack.c.bf16 %v712, %v712
      %s714 = smul.u32 %s711, 2
      %s715 = scalar_lea.vmem %s246, %s714
      %v716 = vld [vmem:[%s715] sm:$0x3]
      %v717 = vpack.c.bf16 %v716, %v716
      %v719 = vsel %vm318, %v717, 0
      %721 = vmatprep.subr.bf16.mxu0 0
      %722 = vmatpush1.bf16.msra.mxu0 0
      %723 = vmatprep.subr.bf16.mxu0 0
      %724 = vmatpush1.bf16.msra.mxu0 0
      %725 = vmatprep.subr.bf16.mxu0 0
      %726 = vmatpush1.bf16.msra.mxu0 0
      %727 = vmatprep.subr.bf16.mxu0 0
      %728 = vmatpush1.bf16.msra.mxu0 0
      %729 = vmatprep.subr.bf16.mxu0 0
      %730 = vmatpush1.bf16.msra.mxu0 0
      %731 = vmatprep.subr.bf16.mxu0 0
      %732 = vmatpush1.bf16.msra.mxu0 0
      %733 = vmatprep.subr.bf16.mxu0 0
      %734 = vmatpush1.bf16.msra.mxu0 %v315
      %735 = vmatprep.subr.bf16.mxu0 0
      %736 = vmatpush1.bf16.msra.mxu0 %v314
      %737 = vmatprep.subr.bf16.mxu0 0
      %738 = vmatpush2.bf16.msra.mxu0 0
      %739 = vmatprep.subr.bf16.mxu0 0
      %740 = vmatpush2.bf16.msra.mxu0 0
      %741 = vmatprep.subr.bf16.mxu0 0
      %742 = vmatpush2.bf16.msra.mxu0 0
      %743 = vmatprep.subr.bf16.mxu0 0
      %744 = vmatpush2.bf16.msra.mxu0 0
      %745 = vmatprep.subr.bf16.mxu0 0
      %746 = vmatpush2.bf16.msra.mxu0 0
      %747 = vmatprep.subr.bf16.mxu0 0
      %748 = vmatpush2.bf16.msra.mxu0 0
      %749 = vmatprep.subr.bf16.mxu0 0
      %750 = vmatpush2.bf16.msra.mxu0 0
      %751 = vmatprep.subr.bf16.mxu0 0
      %752 = vmatpush2.bf16.msra.mxu0 0
      %753 = vmatprep.mubr.bf16.mxu0 0
      %754 = vmatmul.mubr.bf16.gmra.mxu0 %v719
      %v755 = vpop.f32.mrf.mxu0
      %v756 = vadd.f32 0.0, %v755
      %v757 = vpop.f32.mrf.mxu0
      %v758 = vpop.f32.mrf.mxu0
      %v759 = vpop.f32.mrf.mxu0
      %760 = vdwg.mxu0
      %v762 = vsel %vm318, %v713, 0
      %764 = vmatprep.subr.bf16.mxu0 0
      %765 = vmatpush1.bf16.msra.mxu0 0
      %766 = vmatprep.subr.bf16.mxu0 0
      %767 = vmatpush1.bf16.msra.mxu0 0
      %768 = vmatprep.subr.bf16.mxu0 0
      %769 = vmatpush1.bf16.msra.mxu0 0
      %770 = vmatprep.subr.bf16.mxu0 0
      %771 = vmatpush1.bf16.msra.mxu0 0
      %772 = vmatprep.subr.bf16.mxu0 0
      %773 = vmatpush1.bf16.msra.mxu0 0
      %774 = vmatprep.subr.bf16.mxu0 0
      %775 = vmatpush1.bf16.msra.mxu0 0
      %776 = vmatprep.subr.bf16.mxu0 0
      %777 = vmatpush1.bf16.msra.mxu0 %v371
      %778 = vmatprep.subr.bf16.mxu0 0
      %779 = vmatpush1.bf16.msra.mxu0 %v370
      %780 = vmatprep.subr.bf16.mxu0 0
      %781 = vmatpush2.bf16.msra.mxu0 0
      %782 = vmatprep.subr.bf16.mxu0 0
      %783 = vmatpush2.bf16.msra.mxu0 0
      %784 = vmatprep.subr.bf16.mxu0 0
      %785 = vmatpush2.bf16.msra.mxu0 0
      %786 = vmatprep.subr.bf16.mxu0 0
      %787 = vmatpush2.bf16.msra.mxu0 0
      %788 = vmatprep.subr.bf16.mxu0 0
      %789 = vmatpush2.bf16.msra.mxu0 0
      %790 = vmatprep.subr.bf16.mxu0 0
      %791 = vmatpush2.bf16.msra.mxu0 0
      %792 = vmatprep.subr.bf16.mxu0 0
      %793 = vmatpush2.bf16.msra.mxu0 0
      %794 = vmatprep.subr.bf16.mxu0 0
      %795 = vmatpush2.bf16.msra.mxu0 0
      %796 = vmatprep.mubr.bf16.mxu0 0
      %797 = vmatmul.mubr.bf16.gmra.mxu0 %v762
      %v798 = vpop.f32.mrf.mxu0
      %v799 = vadd.f32 %v756, %v798
      %v800 = vpop.f32.mrf.mxu0
      %v801 = vpop.f32.mrf.mxu0
      %v802 = vpop.f32.mrf.mxu0
      %803 = vdwg.mxu0
      %s804 = sadd.s32 %s714, 16
      %s805 = scalar_lea.vmem %s246, %s804
      %v806 = vld [vmem:[%s805] sm:$0x3]
      %v807 = vpack.c.bf16 %v806, %v806
      %v809 = vsel %vm318, %v807, 0
      %811 = vmatprep.subr.bf16.mxu0 0
      %812 = vmatpush1.bf16.msra.mxu0 0
      %813 = vmatprep.subr.bf16.mxu0 0
      %814 = vmatpush1.bf16.msra.mxu0 0
      %815 = vmatprep.subr.bf16.mxu0 0
      %816 = vmatpush1.bf16.msra.mxu0 0
      %817 = vmatprep.subr.bf16.mxu0 0
      %818 = vmatpush1.bf16.msra.mxu0 0
      %819 = vmatprep.subr.bf16.mxu0 0
      %820 = vmatpush1.bf16.msra.mxu0 0
      %821 = vmatprep.subr.bf16.mxu0 0
      %822 = vmatpush1.bf16.msra.mxu0 0
      %823 = vmatprep.subr.bf16.mxu0 0
      %824 = vmatpush1.bf16.msra.mxu0 %v430
      %825 = vmatprep.subr.bf16.mxu0 0
      %826 = vmatpush1.bf16.msra.mxu0 %v429
      %827 = vmatprep.subr.bf16.mxu0 0
      %828 = vmatpush2.bf16.msra.mxu0 0
      %829 = vmatprep.subr.bf16.mxu0 0
      %830 = vmatpush2.bf16.msra.mxu0 0
      %831 = vmatprep.subr.bf16.mxu0 0
      %832 = vmatpush2.bf16.msra.mxu0 0
      %833 = vmatprep.subr.bf16.mxu0 0
      %834 = vmatpush2.bf16.msra.mxu0 0
      %835 = vmatprep.subr.bf16.mxu0 0
      %836 = vmatpush2.bf16.msra.mxu0 0
      %837 = vmatprep.subr.bf16.mxu0 0
      %838 = vmatpush2.bf16.msra.mxu0 0
      %839 = vmatprep.subr.bf16.mxu0 0
      %840 = vmatpush2.bf16.msra.mxu0 0
      %841 = vmatprep.subr.bf16.mxu0 0
      %842 = vmatpush2.bf16.msra.mxu0 0
      %843 = vmatprep.mubr.bf16.mxu0 0
      %844 = vmatmul.mubr.bf16.gmra.mxu0 %v809
      %v845 = vpop.f32.mrf.mxu0
      %v846 = vadd.f32 0.0, %v845
      %v847 = vpop.f32.mrf.mxu0
      %v848 = vpop.f32.mrf.mxu0
      %v849 = vpop.f32.mrf.mxu0
      %850 = vdwg.mxu0
      %v851 = vadd.f32 %v799, %v846
      %v852 = vadd.f32 %v851, %v481
      %v853 = vxor.u32 %v852, 2147483648
      %v854 = vmul.f32 %v853, 1.442695
      %v855 = vpow.pop %v854
      %v856 = vadd.f32 %v855, 1.0
      %v857 = vrcp.pop %v856
      %v858 = vmul.f32 1.0, %v857
      %v859 = vtanh.pop %v852
      %v860 = vld [vmem:[#allocation3] sm:$0x3]
      %862 = vrot.lane.b32.xlu0 %v860, 32
      %v863 = vpop.permute.xlu0 %862
      %v865 = vmul.f32 %v858, %v863
      %867 = vrot.lane.b32.xlu0 %v859, 64
      %v868 = vpop.permute.xlu0 %867
      %v870 = vmul.f32 %v858, %v868
      %872 = vrot.lane.b32.xlu0 %v870, 32
      %v873 = vpop.permute.xlu0 %872
      %v875 = vadd.f32 %v865, %v873
      %v876 = vtanh.pop %v875
      %878 = vrot.lane.b32.xlu0 %v876, 64
      %v879 = vpop.permute.xlu0 %878
      %v881 = vmul.f32 %v858, %v879
      %883 = vrot.lane.b32.xlu0 %v881, 32
      %v884 = vpop.permute.xlu0 %883
      %886 = vst.msk [vmem:[#allocation2] sm:$0x3] %vm517, %v884
      %888 = vrot.lane.b32.xlu0 %v875, 96
      %v889 = vpop.permute.xlu0 %888
      %891 = vst.msk [vmem:[#allocation3] sm:$0x3] %vm517, %v889
      %s892 = scalar_lea.vmem %s272, %s714
      %893 = vst.msk [vmem:[%s892] sm:$0x3] %vm517, %v884
      %s894 = sadd.s32 %s18, 3
      %v895 = vld [vmem:[#allocation2] sm:$0x3]
      %v896 = vpack.c.bf16 %v895, %v895
      %s897 = smul.u32 %s894, 2
      %s898 = scalar_lea.vmem %s246, %s897
      %v899 = vld [vmem:[%s898] sm:$0x3]
      %v900 = vpack.c.bf16 %v899, %v899
      %v902 = vsel %vm318, %v900, 0
      %904 = vmatprep.subr.bf16.mxu0 0
      %905 = vmatpush1.bf16.msra.mxu0 0
      %906 = vmatprep.subr.bf16.mxu0 0
      %907 = vmatpush1.bf16.msra.mxu0 0
      %908 = vmatprep.subr.bf16.mxu0 0
      %909 = vmatpush1.bf16.msra.mxu0 0
      %910 = vmatprep.subr.bf16.mxu0 0
      %911 = vmatpush1.bf16.msra.mxu0 0
      %912 = vmatprep.subr.bf16.mxu0 0
      %913 = vmatpush1.bf16.msra.mxu0 0
      %914 = vmatprep.subr.bf16.mxu0 0
      %915 = vmatpush1.bf16.msra.mxu0 0
      %916 = vmatprep.subr.bf16.mxu0 0
      %917 = vmatpush1.bf16.msra.mxu0 %v315
      %918 = vmatprep.subr.bf16.mxu0 0
      %919 = vmatpush1.bf16.msra.mxu0 %v314
      %920 = vmatprep.subr.bf16.mxu0 0
      %921 = vmatpush2.bf16.msra.mxu0 0
      %922 = vmatprep.subr.bf16.mxu0 0
      %923 = vmatpush2.bf16.msra.mxu0 0
      %924 = vmatprep.subr.bf16.mxu0 0
      %925 = vmatpush2.bf16.msra.mxu0 0
      %926 = vmatprep.subr.bf16.mxu0 0
      %927 = vmatpush2.bf16.msra.mxu0 0
      %928 = vmatprep.subr.bf16.mxu0 0
      %929 = vmatpush2.bf16.msra.mxu0 0
      %930 = vmatprep.subr.bf16.mxu0 0
      %931 = vmatpush2.bf16.msra.mxu0 0
      %932 = vmatprep.subr.bf16.mxu0 0
      %933 = vmatpush2.bf16.msra.mxu0 0
      %934 = vmatprep.subr.bf16.mxu0 0
      %935 = vmatpush2.bf16.msra.mxu0 0
      %936 = vmatprep.mubr.bf16.mxu0 0
      %937 = vmatmul.mubr.bf16.gmra.mxu0 %v902
      %v938 = vpop.f32.mrf.mxu0
      %v939 = vadd.f32 0.0, %v938
      %v940 = vpop.f32.mrf.mxu0
      %v941 = vpop.f32.mrf.mxu0
      %v942 = vpop.f32.mrf.mxu0
      %943 = vdwg.mxu0
      %v945 = vsel %vm318, %v896, 0
      %947 = vmatprep.subr.bf16.mxu0 0
      %948 = vmatpush1.bf16.msra.mxu0 0
      %949 = vmatprep.subr.bf16.mxu0 0
      %950 = vmatpush1.bf16.msra.mxu0 0
      %951 = vmatprep.subr.bf16.mxu0 0
      %952 = vmatpush1.bf16.msra.mxu0 0
      %953 = vmatprep.subr.bf16.mxu0 0
      %954 = vmatpush1.bf16.msra.mxu0 0
      %955 = vmatprep.subr.bf16.mxu0 0
      %956 = vmatpush1.bf16.msra.mxu0 0
      %957 = vmatprep.subr.bf16.mxu0 0
      %958 = vmatpush1.bf16.msra.mxu0 0
      %959 = vmatprep.subr.bf16.mxu0 0
      %960 = vmatpush1.bf16.msra.mxu0 %v371
      %961 = vmatprep.subr.bf16.mxu0 0
      %962 = vmatpush1.bf16.msra.mxu0 %v370
      %963 = vmatprep.subr.bf16.mxu0 0
      %964 = vmatpush2.bf16.msra.mxu0 0
      %965 = vmatprep.subr.bf16.mxu0 0
      %966 = vmatpush2.bf16.msra.mxu0 0
      %967 = vmatprep.subr.bf16.mxu0 0
      %968 = vmatpush2.bf16.msra.mxu0 0
      %969 = vmatprep.subr.bf16.mxu0 0
      %970 = vmatpush2.bf16.msra.mxu0 0
      %971 = vmatprep.subr.bf16.mxu0 0
      %972 = vmatpush2.bf16.msra.mxu0 0
      %973 = vmatprep.subr.bf16.mxu0 0
      %974 = vmatpush2.bf16.msra.mxu0 0
      %975 = vmatprep.subr.bf16.mxu0 0
      %976 = vmatpush2.bf16.msra.mxu0 0
      %977 = vmatprep.subr.bf16.mxu0 0
      %978 = vmatpush2.bf16.msra.mxu0 0
      %979 = vmatprep.mubr.bf16.mxu0 0
      %980 = vmatmul.mubr.bf16.gmra.mxu0 %v945
      %v981 = vpop.f32.mrf.mxu0
      %v982 = vadd.f32 %v939, %v981
      %v983 = vpop.f32.mrf.mxu0
      %v984 = vpop.f32.mrf.mxu0
      %v985 = vpop.f32.mrf.mxu0
      %986 = vdwg.mxu0
      %s987 = sadd.s32 %s897, 16
      %s988 = scalar_lea.vmem %s246, %s987
      %v989 = vld [vmem:[%s988] sm:$0x3]
      %v990 = vpack.c.bf16 %v989, %v989
      %v992 = vsel %vm318, %v990, 0
      %994 = vmatprep.subr.bf16.mxu0 0
      %995 = vmatpush1.bf16.msra.mxu0 0
      %996 = vmatprep.subr.bf16.mxu0 0
      %997 = vmatpush1.bf16.msra.mxu0 0
      %998 = vmatprep.subr.bf16.mxu0 0
      %999 = vmatpush1.bf16.msra.mxu0 0
      %1000 = vmatprep.subr.bf16.mxu0 0
      %1001 = vmatpush1.bf16.msra.mxu0 0
      %1002 = vmatprep.subr.bf16.mxu0 0
      %1003 = vmatpush1.bf16.msra.mxu0 0
      %1004 = vmatprep.subr.bf16.mxu0 0
      %1005 = vmatpush1.bf16.msra.mxu0 0
      %1006 = vmatprep.subr.bf16.mxu0 0
      %1007 = vmatpush1.bf16.msra.mxu0 %v430
      %1008 = vmatprep.subr.bf16.mxu0 0
      %1009 = vmatpush1.bf16.msra.mxu0 %v429
      %1010 = vmatprep.subr.bf16.mxu0 0
      %1011 = vmatpush2.bf16.msra.mxu0 0
      %1012 = vmatprep.subr.bf16.mxu0 0
      %1013 = vmatpush2.bf16.msra.mxu0 0
      %1014 = vmatprep.subr.bf16.mxu0 0
      %1015 = vmatpush2.bf16.msra.mxu0 0
      %1016 = vmatprep.subr.bf16.mxu0 0
      %1017 = vmatpush2.bf16.msra.mxu0 0
      %1018 = vmatprep.subr.bf16.mxu0 0
      %1019 = vmatpush2.bf16.msra.mxu0 0
      %1020 = vmatprep.subr.bf16.mxu0 0
      %1021 = vmatpush2.bf16.msra.mxu0 0
      %1022 = vmatprep.subr.bf16.mxu0 0
      %1023 = vmatpush2.bf16.msra.mxu0 0
      %1024 = vmatprep.subr.bf16.mxu0 0
      %1025 = vmatpush2.bf16.msra.mxu0 0
      %1026 = vmatprep.mubr.bf16.mxu0 0
      %1027 = vmatmul.mubr.bf16.gmra.mxu0 %v992
      %v1028 = vpop.f32.mrf.mxu0
      %v1029 = vadd.f32 0.0, %v1028
      %v1030 = vpop.f32.mrf.mxu0
      %v1031 = vpop.f32.mrf.mxu0
      %v1032 = vpop.f32.mrf.mxu0
      %1033 = vdwg.mxu0
      %v1034 = vadd.f32 %v982, %v1029
      %v1035 = vadd.f32 %v1034, %v481
      %v1036 = vxor.u32 %v1035, 2147483648
      %v1037 = vmul.f32 %v1036, 1.442695
      %v1038 = vpow.pop %v1037
      %v1039 = vadd.f32 %v1038, 1.0
      %v1040 = vrcp.pop %v1039
      %v1041 = vmul.f32 1.0, %v1040
      %v1042 = vtanh.pop %v1035
      %v1043 = vld [vmem:[#allocation3] sm:$0x3]
      %1045 = vrot.lane.b32.xlu0 %v1043, 32
      %v1046 = vpop.permute.xlu0 %1045
      %v1048 = vmul.f32 %v1041, %v1046
      %1050 = vrot.lane.b32.xlu0 %v1042, 64
      %v1051 = vpop.permute.xlu0 %1050
      %v1053 = vmul.f32 %v1041, %v1051
      %1055 = vrot.lane.b32.xlu0 %v1053, 32
      %v1056 = vpop.permute.xlu0 %1055
      %v1058 = vadd.f32 %v1048, %v1056
      %v1059 = vtanh.pop %v1058
      %1061 = vrot.lane.b32.xlu0 %v1059, 64
      %v1062 = vpop.permute.xlu0 %1061
      %v1064 = vmul.f32 %v1041, %v1062
      %1066 = vrot.lane.b32.xlu0 %v1064, 32
      %v1067 = vpop.permute.xlu0 %1066
      %1069 = vst.msk [vmem:[#allocation2] sm:$0x3] %vm517, %v1067
      %1071 = vrot.lane.b32.xlu0 %v1058, 96
      %v1072 = vpop.permute.xlu0 %1071
      %1074 = vst.msk [vmem:[#allocation3] sm:$0x3] %vm517, %v1072
      %s1075 = scalar_lea.vmem %s272, %s897
      %1076 = vst.msk [vmem:[%s1075] sm:$0x3] %vm517, %v1067
      %s1077 = ssub.s32 4, %s18
      %v1078 = vld [vmem:[#allocation2] sm:$0x3]
      %v1079 = vpack.c.bf16 %v1078, %v1078
      %s1080 = smul.u32 %s1077, 2
      %s1081 = scalar_lea.vmem %s246, %s1080
      %v1082 = vld [vmem:[%s1081] sm:$0x3]
      %v1083 = vpack.c.bf16 %v1082, %v1082
      %v1085 = vsel %vm318, %v1083, 0
      %1087 = vmatprep.subr.bf16.mxu0 0
      %1088 = vmatpush1.bf16.msra.mxu0 0
      %1089 = vmatprep.subr.bf16.mxu0 0
      %1090 = vmatpush1.bf16.msra.mxu0 0
      %1091 = vmatprep.subr.bf16.mxu0 0
      %1092 = vmatpush1.bf16.msra.mxu0 0
      %1093 = vmatprep.subr.bf16.mxu0 0
      %1094 = vmatpush1.bf16.msra.mxu0 0
      %1095 = vmatprep.subr.bf16.mxu0 0
      %1096 = vmatpush1.bf16.msra.mxu0 0
      %1097 = vmatprep.subr.bf16.mxu0 0
      %1098 = vmatpush1.bf16.msra.mxu0 0
      %1099 = vmatprep.subr.bf16.mxu0 0
      %1100 = vmatpush1.bf16.msra.mxu0 %v315
      %1101 = vmatprep.subr.bf16.mxu0 0
      %1102 = vmatpush1.bf16.msra.mxu0 %v314
      %1103 = vmatprep.subr.bf16.mxu0 0
      %1104 = vmatpush2.bf16.msra.mxu0 0
      %1105 = vmatprep.subr.bf16.mxu0 0
      %1106 = vmatpush2.bf16.msra.mxu0 0
      %1107 = vmatprep.subr.bf16.mxu0 0
      %1108 = vmatpush2.bf16.msra.mxu0 0
      %1109 = vmatprep.subr.bf16.mxu0 0
      %1110 = vmatpush2.bf16.msra.mxu0 0
      %1111 = vmatprep.subr.bf16.mxu0 0
      %1112 = vmatpush2.bf16.msra.mxu0 0
      %1113 = vmatprep.subr.bf16.mxu0 0
      %1114 = vmatpush2.bf16.msra.mxu0 0
      %1115 = vmatprep.subr.bf16.mxu0 0
      %1116 = vmatpush2.bf16.msra.mxu0 0
      %1117 = vmatprep.subr.bf16.mxu0 0
      %1118 = vmatpush2.bf16.msra.mxu0 0
      %1119 = vmatprep.mubr.bf16.mxu0 0
      %1120 = vmatmul.mubr.bf16.gmra.mxu0 %v1085
      %v1121 = vpop.f32.mrf.mxu0
      %v1122 = vadd.f32 0.0, %v1121
      %v1123 = vpop.f32.mrf.mxu0
      %v1124 = vpop.f32.mrf.mxu0
      %v1125 = vpop.f32.mrf.mxu0
      %1126 = vdwg.mxu0
      %v1128 = vsel %vm318, %v1079, 0
      %1130 = vmatprep.subr.bf16.mxu0 0
      %1131 = vmatpush1.bf16.msra.mxu0 0
      %1132 = vmatprep.subr.bf16.mxu0 0
      %1133 = vmatpush1.bf16.msra.mxu0 0
      %1134 = vmatprep.subr.bf16.mxu0 0
      %1135 = vmatpush1.bf16.msra.mxu0 0
      %1136 = vmatprep.subr.bf16.mxu0 0
      %1137 = vmatpush1.bf16.msra.mxu0 0
      %1138 = vmatprep.subr.bf16.mxu0 0
      %1139 = vmatpush1.bf16.msra.mxu0 0
      %1140 = vmatprep.subr.bf16.mxu0 0
      %1141 = vmatpush1.bf16.msra.mxu0 0
      %1142 = vmatprep.subr.bf16.mxu0 0
      %1143 = vmatpush1.bf16.msra.mxu0 %v371
      %1144 = vmatprep.subr.bf16.mxu0 0
      %1145 = vmatpush1.bf16.msra.mxu0 %v370
      %1146 = vmatprep.subr.bf16.mxu0 0
      %1147 = vmatpush2.bf16.msra.mxu0 0
      %1148 = vmatprep.subr.bf16.mxu0 0
      %1149 = vmatpush2.bf16.msra.mxu0 0
      %1150 = vmatprep.subr.bf16.mxu0 0
      %1151 = vmatpush2.bf16.msra.mxu0 0
      %1152 = vmatprep.subr.bf16.mxu0 0
      %1153 = vmatpush2.bf16.msra.mxu0 0
      %1154 = vmatprep.subr.bf16.mxu0 0
      %1155 = vmatpush2.bf16.msra.mxu0 0
      %1156 = vmatprep.subr.bf16.mxu0 0
      %1157 = vmatpush2.bf16.msra.mxu0 0
      %1158 = vmatprep.subr.bf16.mxu0 0
      %1159 = vmatpush2.bf16.msra.mxu0 0
      %1160 = vmatprep.subr.bf16.mxu0 0
      %1161 = vmatpush2.bf16.msra.mxu0 0
      %1162 = vmatprep.mubr.bf16.mxu0 0
      %1163 = vmatmul.mubr.bf16.gmra.mxu0 %v1128
      %v1164 = vpop.f32.mrf.mxu0
      %v1165 = vadd.f32 %v1122, %v1164
      %v1166 = vpop.f32.mrf.mxu0
      %v1167 = vpop.f32.mrf.mxu0
      %v1168 = vpop.f32.mrf.mxu0
      %1169 = vdwg.mxu0
      %s1170 = sadd.s32 %s1080, 16
      %s1171 = scalar_lea.vmem %s246, %s1170
      %v1172 = vld [vmem:[%s1171] sm:$0x3]
      %v1173 = vpack.c.bf16 %v1172, %v1172
      %v1175 = vsel %vm318, %v1173, 0
      %1177 = vmatprep.subr.bf16.mxu0 0
      %1178 = vmatpush1.bf16.msra.mxu0 0
      %1179 = vmatprep.subr.bf16.mxu0 0
      %1180 = vmatpush1.bf16.msra.mxu0 0
      %1181 = vmatprep.subr.bf16.mxu0 0
      %1182 = vmatpush1.bf16.msra.mxu0 0
      %1183 = vmatprep.subr.bf16.mxu0 0
      %1184 = vmatpush1.bf16.msra.mxu0 0
      %1185 = vmatprep.subr.bf16.mxu0 0
      %1186 = vmatpush1.bf16.msra.mxu0 0
      %1187 = vmatprep.subr.bf16.mxu0 0
      %1188 = vmatpush1.bf16.msra.mxu0 0
      %1189 = vmatprep.subr.bf16.mxu0 0
      %1190 = vmatpush1.bf16.msra.mxu0 %v430
      %1191 = vmatprep.subr.bf16.mxu0 0
      %1192 = vmatpush1.bf16.msra.mxu0 %v429
      %1193 = vmatprep.subr.bf16.mxu0 0
      %1194 = vmatpush2.bf16.msra.mxu0 0
      %1195 = vmatprep.subr.bf16.mxu0 0
      %1196 = vmatpush2.bf16.msra.mxu0 0
      %1197 = vmatprep.subr.bf16.mxu0 0
      %1198 = vmatpush2.bf16.msra.mxu0 0
      %1199 = vmatprep.subr.bf16.mxu0 0
      %1200 = vmatpush2.bf16.msra.mxu0 0
      %1201 = vmatprep.subr.bf16.mxu0 0
      %1202 = vmatpush2.bf16.msra.mxu0 0
      %1203 = vmatprep.subr.bf16.mxu0 0
      %1204 = vmatpush2.bf16.msra.mxu0 0
      %1205 = vmatprep.subr.bf16.mxu0 0
      %1206 = vmatpush2.bf16.msra.mxu0 0
      %1207 = vmatprep.subr.bf16.mxu0 0
      %1208 = vmatpush2.bf16.msra.mxu0 0
      %1209 = vmatprep.mubr.bf16.mxu0 0
      %1210 = vmatmul.mubr.bf16.gmra.mxu0 %v1175
      %v1211 = vpop.f32.mrf.mxu0
      %v1212 = vadd.f32 0.0, %v1211
      %v1213 = vpop.f32.mrf.mxu0
      %v1214 = vpop.f32.mrf.mxu0
      %v1215 = vpop.f32.mrf.mxu0
      %1216 = vdwg.mxu0
      %v1217 = vadd.f32 %v1165, %v1212
      %v1218 = vadd.f32 %v1217, %v481
      %v1219 = vxor.u32 %v1218, 2147483648
      %v1220 = vmul.f32 %v1219, 1.442695
      %v1221 = vpow.pop %v1220
      %v1222 = vadd.f32 %v1221, 1.0
      %v1223 = vrcp.pop %v1222
      %v1224 = vmul.f32 1.0, %v1223
      %v1225 = vtanh.pop %v1218
      %v1226 = vld [vmem:[#allocation3] sm:$0x3]
      %1228 = vrot.lane.b32.xlu0 %v1226, 32
      %v1229 = vpop.permute.xlu0 %1228
      %v1231 = vmul.f32 %v1224, %v1229
      %1233 = vrot.lane.b32.xlu0 %v1225, 64
      %v1234 = vpop.permute.xlu0 %1233
      %v1236 = vmul.f32 %v1224, %v1234
      %1238 = vrot.lane.b32.xlu0 %v1236, 32
      %v1239 = vpop.permute.xlu0 %1238
      %v1241 = vadd.f32 %v1231, %v1239
      %v1242 = vtanh.pop %v1241
      %1244 = vrot.lane.b32.xlu0 %v1242, 64
      %v1245 = vpop.permute.xlu0 %1244
      %v1247 = vmul.f32 %v1224, %v1245
      %1249 = vrot.lane.b32.xlu0 %v1247, 32
      %v1250 = vpop.permute.xlu0 %1249
      %1252 = vst.msk [vmem:[#allocation2] sm:$0x3] %vm517, %v1250
      %1254 = vrot.lane.b32.xlu0 %v1241, 96
      %v1255 = vpop.permute.xlu0 %1254
      %1257 = vst.msk [vmem:[#allocation3] sm:$0x3] %vm517, %v1255
      %s1258 = scalar_lea.vmem %s272, %s1080
      %1259 = vst.msk [vmem:[%s1258] sm:$0x3] %vm517, %v1250
      %s1260 = smul.u32 %s18, 4294967293
      %s1261 = sadd.s32 %s1260, 5
      %v1262 = vld [vmem:[#allocation2] sm:$0x3]
      %v1263 = vpack.c.bf16 %v1262, %v1262
      %s1264 = smul.u32 %s1261, 2
      %s1265 = scalar_lea.vmem %s246, %s1264
      %v1266 = vld [vmem:[%s1265] sm:$0x3]
      %v1267 = vpack.c.bf16 %v1266, %v1266
      %v1269 = vsel %vm318, %v1267, 0
      %1271 = vmatprep.subr.bf16.mxu0 0
      %1272 = vmatpush1.bf16.msra.mxu0 0
      %1273 = vmatprep.subr.bf16.mxu0 0
      %1274 = vmatpush1.bf16.msra.mxu0 0
      %1275 = vmatprep.subr.bf16.mxu0 0
      %1276 = vmatpush1.bf16.msra.mxu0 0
      %1277 = vmatprep.subr.bf16.mxu0 0
      %1278 = vmatpush1.bf16.msra.mxu0 0
      %1279 = vmatprep.subr.bf16.mxu0 0
      %1280 = vmatpush1.bf16.msra.mxu0 0
      %1281 = vmatprep.subr.bf16.mxu0 0
      %1282 = vmatpush1.bf16.msra.mxu0 0
      %1283 = vmatprep.subr.bf16.mxu0 0
      %1284 = vmatpush1.bf16.msra.mxu0 %v315
      %1285 = vmatprep.subr.bf16.mxu0 0
      %1286 = vmatpush1.bf16.msra.mxu0 %v314
      %1287 = vmatprep.subr.bf16.mxu0 0
      %1288 = vmatpush2.bf16.msra.mxu0 0
      %1289 = vmatprep.subr.bf16.mxu0 0
      %1290 = vmatpush2.bf16.msra.mxu0 0
      %1291 = vmatprep.subr.bf16.mxu0 0
      %1292 = vmatpush2.bf16.msra.mxu0 0
      %1293 = vmatprep.subr.bf16.mxu0 0
      %1294 = vmatpush2.bf16.msra.mxu0 0
      %1295 = vmatprep.subr.bf16.mxu0 0
      %1296 = vmatpush2.bf16.msra.mxu0 0
      %1297 = vmatprep.subr.bf16.mxu0 0
      %1298 = vmatpush2.bf16.msra.mxu0 0
      %1299 = vmatprep.subr.bf16.mxu0 0
      %1300 = vmatpush2.bf16.msra.mxu0 0
      %1301 = vmatprep.subr.bf16.mxu0 0
      %1302 = vmatpush2.bf16.msra.mxu0 0
      %1303 = vmatprep.mubr.bf16.mxu0 0
      %1304 = vmatmul.mubr.bf16.gmra.mxu0 %v1269
      %v1305 = vpop.f32.mrf.mxu0
      %v1306 = vadd.f32 0.0, %v1305
      %v1307 = vpop.f32.mrf.mxu0
      %v1308 = vpop.f32.mrf.mxu0
      %v1309 = vpop.f32.mrf.mxu0
      %1310 = vdwg.mxu0
      %v1312 = vsel %vm318, %v1263, 0
      %1314 = vmatprep.subr.bf16.mxu0 0
      %1315 = vmatpush1.bf16.msra.mxu0 0
      %1316 = vmatprep.subr.bf16.mxu0 0
      %1317 = vmatpush1.bf16.msra.mxu0 0
      %1318 = vmatprep.subr.bf16.mxu0 0
      %1319 = vmatpush1.bf16.msra.mxu0 0
      %1320 = vmatprep.subr.bf16.mxu0 0
      %1321 = vmatpush1.bf16.msra.mxu0 0
      %1322 = vmatprep.subr.bf16.mxu0 0
      %1323 = vmatpush1.bf16.msra.mxu0 0
      %1324 = vmatprep.subr.bf16.mxu0 0
      %1325 = vmatpush1.bf16.msra.mxu0 0
      %1326 = vmatprep.subr.bf16.mxu0 0
      %1327 = vmatpush1.bf16.msra.mxu0 %v371
      %1328 = vmatprep.subr.bf16.mxu0 0
      %1329 = vmatpush1.bf16.msra.mxu0 %v370
      %1330 = vmatprep.subr.bf16.mxu0 0
      %1331 = vmatpush2.bf16.msra.mxu0 0
      %1332 = vmatprep.subr.bf16.mxu0 0
      %1333 = vmatpush2.bf16.msra.mxu0 0
      %1334 = vmatprep.subr.bf16.mxu0 0
      %1335 = vmatpush2.bf16.msra.mxu0 0
      %1336 = vmatprep.subr.bf16.mxu0 0
      %1337 = vmatpush2.bf16.msra.mxu0 0
      %1338 = vmatprep.subr.bf16.mxu0 0
      %1339 = vmatpush2.bf16.msra.mxu0 0
      %1340 = vmatprep.subr.bf16.mxu0 0
      %1341 = vmatpush2.bf16.msra.mxu0 0
      %1342 = vmatprep.subr.bf16.mxu0 0
      %1343 = vmatpush2.bf16.msra.mxu0 0
      %1344 = vmatprep.subr.bf16.mxu0 0
      %1345 = vmatpush2.bf16.msra.mxu0 0
      %1346 = vmatprep.mubr.bf16.mxu0 0
      %1347 = vmatmul.mubr.bf16.gmra.mxu0 %v1312
      %v1348 = vpop.f32.mrf.mxu0
      %v1349 = vadd.f32 %v1306, %v1348
      %v1350 = vpop.f32.mrf.mxu0
      %v1351 = vpop.f32.mrf.mxu0
      %v1352 = vpop.f32.mrf.mxu0
      %1353 = vdwg.mxu0
      %s1354 = sadd.s32 %s1264, 16
      %s1355 = scalar_lea.vmem %s246, %s1354
      %v1356 = vld [vmem:[%s1355] sm:$0x3]
      %v1357 = vpack.c.bf16 %v1356, %v1356
      %v1359 = vsel %vm318, %v1357, 0
      %1361 = vmatprep.subr.bf16.mxu0 0
      %1362 = vmatpush1.bf16.msra.mxu0 0
      %1363 = vmatprep.subr.bf16.mxu0 0
      %1364 = vmatpush1.bf16.msra.mxu0 0
      %1365 = vmatprep.subr.bf16.mxu0 0
      %1366 = vmatpush1.bf16.msra.mxu0 0
      %1367 = vmatprep.subr.bf16.mxu0 0
      %1368 = vmatpush1.bf16.msra.mxu0 0
      %1369 = vmatprep.subr.bf16.mxu0 0
      %1370 = vmatpush1.bf16.msra.mxu0 0
      %1371 = vmatprep.subr.bf16.mxu0 0
      %1372 = vmatpush1.bf16.msra.mxu0 0
      %1373 = vmatprep.subr.bf16.mxu0 0
      %1374 = vmatpush1.bf16.msra.mxu0 %v430
      %1375 = vmatprep.subr.bf16.mxu0 0
      %1376 = vmatpush1.bf16.msra.mxu0 %v429
      %1377 = vmatprep.subr.bf16.mxu0 0
      %1378 = vmatpush2.bf16.msra.mxu0 0
      %1379 = vmatprep.subr.bf16.mxu0 0
      %1380 = vmatpush2.bf16.msra.mxu0 0
      %1381 = vmatprep.subr.bf16.mxu0 0
      %1382 = vmatpush2.bf16.msra.mxu0 0
      %1383 = vmatprep.subr.bf16.mxu0 0
      %1384 = vmatpush2.bf16.msra.mxu0 0
      %1385 = vmatprep.subr.bf16.mxu0 0
      %1386 = vmatpush2.bf16.msra.mxu0 0
      %1387 = vmatprep.subr.bf16.mxu0 0
      %1388 = vmatpush2.bf16.msra.mxu0 0
      %1389 = vmatprep.subr.bf16.mxu0 0
      %1390 = vmatpush2.bf16.msra.mxu0 0
      %1391 = vmatprep.subr.bf16.mxu0 0
      %1392 = vmatpush2.bf16.msra.mxu0 0
      %1393 = vmatprep.mubr.bf16.mxu0 0
      %1394 = vmatmul.mubr.bf16.gmra.mxu0 %v1359
      %v1395 = vpop.f32.mrf.mxu0
      %v1396 = vadd.f32 0.0, %v1395
      %v1397 = vpop.f32.mrf.mxu0
      %v1398 = vpop.f32.mrf.mxu0
      %v1399 = vpop.f32.mrf.mxu0
      %1400 = vdwg.mxu0
      %v1401 = vadd.f32 %v1349, %v1396
      %v1402 = vadd.f32 %v1401, %v481
      %v1403 = vxor.u32 %v1402, 2147483648
      %v1404 = vmul.f32 %v1403, 1.442695
      %v1405 = vpow.pop %v1404
      %v1406 = vadd.f32 %v1405, 1.0
      %v1407 = vrcp.pop %v1406
      %v1408 = vmul.f32 1.0, %v1407
      %v1409 = vtanh.pop %v1402
      %v1410 = vld [vmem:[#allocation3] sm:$0x3]
      %1412 = vrot.lane.b32.xlu0 %v1410, 32
      %v1413 = vpop.permute.xlu0 %1412
      %v1415 = vmul.f32 %v1408, %v1413
      %1417 = vrot.lane.b32.xlu0 %v1409, 64
      %v1418 = vpop.permute.xlu0 %1417
      %v1420 = vmul.f32 %v1408, %v1418
      %1422 = vrot.lane.b32.xlu0 %v1420, 32
      %v1423 = vpop.permute.xlu0 %1422
      %v1425 = vadd.f32 %v1415, %v1423
      %v1426 = vtanh.pop %v1425
      %1428 = vrot.lane.b32.xlu0 %v1426, 64
      %v1429 = vpop.permute.xlu0 %1428
      %v1431 = vmul.f32 %v1408, %v1429
      %1433 = vrot.lane.b32.xlu0 %v1431, 32
      %v1434 = vpop.permute.xlu0 %1433
      %1436 = vst.msk [vmem:[#allocation2] sm:$0x3] %vm517, %v1434
      %1438 = vrot.lane.b32.xlu0 %v1425, 96
      %v1439 = vpop.permute.xlu0 %1438
      %1441 = vst.msk [vmem:[#allocation3] sm:$0x3] %vm517, %v1439
      %s1442 = scalar_lea.vmem %s272, %s1264
      %1443 = vst.msk [vmem:[%s1442] sm:$0x3] %vm517, %v1434
      %s1444 = smul.u32 %s18, 4294967291
      %s1445 = sadd.s32 %s1444, 6
      %v1446 = vld [vmem:[#allocation2] sm:$0x3]
      %v1447 = vpack.c.bf16 %v1446, %v1446
      %s1448 = smul.u32 %s1445, 2
      %s1449 = scalar_lea.vmem %s246, %s1448
      %v1450 = vld [vmem:[%s1449] sm:$0x3]
      %v1451 = vpack.c.bf16 %v1450, %v1450
      %v1453 = vsel %vm318, %v1451, 0
      %1455 = vmatprep.subr.bf16.mxu0 0
      %1456 = vmatpush1.bf16.msra.mxu0 0
      %1457 = vmatprep.subr.bf16.mxu0 0
      %1458 = vmatpush1.bf16.msra.mxu0 0
      %1459 = vmatprep.subr.bf16.mxu0 0
      %1460 = vmatpush1.bf16.msra.mxu0 0
      %1461 = vmatprep.subr.bf16.mxu0 0
      %1462 = vmatpush1.bf16.msra.mxu0 0
      %1463 = vmatprep.subr.bf16.mxu0 0
      %1464 = vmatpush1.bf16.msra.mxu0 0
      %1465 = vmatprep.subr.bf16.mxu0 0
      %1466 = vmatpush1.bf16.msra.mxu0 0
      %1467 = vmatprep.subr.bf16.mxu0 0
      %1468 = vmatpush1.bf16.msra.mxu0 %v315
      %1469 = vmatprep.subr.bf16.mxu0 0
      %1470 = vmatpush1.bf16.msra.mxu0 %v314
      %1471 = vmatprep.subr.bf16.mxu0 0
      %1472 = vmatpush2.bf16.msra.mxu0 0
      %1473 = vmatprep.subr.bf16.mxu0 0
      %1474 = vmatpush2.bf16.msra.mxu0 0
      %1475 = vmatprep.subr.bf16.mxu0 0
      %1476 = vmatpush2.bf16.msra.mxu0 0
      %1477 = vmatprep.subr.bf16.mxu0 0
      %1478 = vmatpush2.bf16.msra.mxu0 0
      %1479 = vmatprep.subr.bf16.mxu0 0
      %1480 = vmatpush2.bf16.msra.mxu0 0
      %1481 = vmatprep.subr.bf16.mxu0 0
      %1482 = vmatpush2.bf16.msra.mxu0 0
      %1483 = vmatprep.subr.bf16.mxu0 0
      %1484 = vmatpush2.bf16.msra.mxu0 0
      %1485 = vmatprep.subr.bf16.mxu0 0
      %1486 = vmatpush2.bf16.msra.mxu0 0
      %1487 = vmatprep.mubr.bf16.mxu0 0
      %1488 = vmatmul.mubr.bf16.gmra.mxu0 %v1453
      %v1489 = vpop.f32.mrf.mxu0
      %v1490 = vadd.f32 0.0, %v1489
      %v1491 = vpop.f32.mrf.mxu0
      %v1492 = vpop.f32.mrf.mxu0
      %v1493 = vpop.f32.mrf.mxu0
      %1494 = vdwg.mxu0
      %v1496 = vsel %vm318, %v1447, 0
      %1498 = vmatprep.subr.bf16.mxu0 0
      %1499 = vmatpush1.bf16.msra.mxu0 0
      %1500 = vmatprep.subr.bf16.mxu0 0
      %1501 = vmatpush1.bf16.msra.mxu0 0
      %1502 = vmatprep.subr.bf16.mxu0 0
      %1503 = vmatpush1.bf16.msra.mxu0 0
      %1504 = vmatprep.subr.bf16.mxu0 0
      %1505 = vmatpush1.bf16.msra.mxu0 0
      %1506 = vmatprep.subr.bf16.mxu0 0
      %1507 = vmatpush1.bf16.msra.mxu0 0
      %1508 = vmatprep.subr.bf16.mxu0 0
      %1509 = vmatpush1.bf16.msra.mxu0 0
      %1510 = vmatprep.subr.bf16.mxu0 0
      %1511 = vmatpush1.bf16.msra.mxu0 %v371
      %1512 = vmatprep.subr.bf16.mxu0 0
      %1513 = vmatpush1.bf16.msra.mxu0 %v370
      %1514 = vmatprep.subr.bf16.mxu0 0
      %1515 = vmatpush2.bf16.msra.mxu0 0
      %1516 = vmatprep.subr.bf16.mxu0 0
      %1517 = vmatpush2.bf16.msra.mxu0 0
      %1518 = vmatprep.subr.bf16.mxu0 0
      %1519 = vmatpush2.bf16.msra.mxu0 0
      %1520 = vmatprep.subr.bf16.mxu0 0
      %1521 = vmatpush2.bf16.msra.mxu0 0
      %1522 = vmatprep.subr.bf16.mxu0 0
      %1523 = vmatpush2.bf16.msra.mxu0 0
      %1524 = vmatprep.subr.bf16.mxu0 0
      %1525 = vmatpush2.bf16.msra.mxu0 0
      %1526 = vmatprep.subr.bf16.mxu0 0
      %1527 = vmatpush2.bf16.msra.mxu0 0
      %1528 = vmatprep.subr.bf16.mxu0 0
      %1529 = vmatpush2.bf16.msra.mxu0 0
      %1530 = vmatprep.mubr.bf16.mxu0 0
      %1531 = vmatmul.mubr.bf16.gmra.mxu0 %v1496
      %v1532 = vpop.f32.mrf.mxu0
      %v1533 = vadd.f32 %v1490, %v1532
      %v1534 = vpop.f32.mrf.mxu0
      %v1535 = vpop.f32.mrf.mxu0
      %v1536 = vpop.f32.mrf.mxu0
      %1537 = vdwg.mxu0
      %s1538 = sadd.s32 %s1448, 16
      %s1539 = scalar_lea.vmem %s246, %s1538
      %v1540 = vld [vmem:[%s1539] sm:$0x3]
      %v1541 = vpack.c.bf16 %v1540, %v1540
      %v1543 = vsel %vm318, %v1541, 0
      %1545 = vmatprep.subr.bf16.mxu0 0
      %1546 = vmatpush1.bf16.msra.mxu0 0
      %1547 = vmatprep.subr.bf16.mxu0 0
      %1548 = vmatpush1.bf16.msra.mxu0 0
      %1549 = vmatprep.subr.bf16.mxu0 0
      %1550 = vmatpush1.bf16.msra.mxu0 0
      %1551 = vmatprep.subr.bf16.mxu0 0
      %1552 = vmatpush1.bf16.msra.mxu0 0
      %1553 = vmatprep.subr.bf16.mxu0 0
      %1554 = vmatpush1.bf16.msra.mxu0 0
      %1555 = vmatprep.subr.bf16.mxu0 0
      %1556 = vmatpush1.bf16.msra.mxu0 0
      %1557 = vmatprep.subr.bf16.mxu0 0
      %1558 = vmatpush1.bf16.msra.mxu0 %v430
      %1559 = vmatprep.subr.bf16.mxu0 0
      %1560 = vmatpush1.bf16.msra.mxu0 %v429
      %1561 = vmatprep.subr.bf16.mxu0 0
      %1562 = vmatpush2.bf16.msra.mxu0 0
      %1563 = vmatprep.subr.bf16.mxu0 0
      %1564 = vmatpush2.bf16.msra.mxu0 0
      %1565 = vmatprep.subr.bf16.mxu0 0
      %1566 = vmatpush2.bf16.msra.mxu0 0
      %1567 = vmatprep.subr.bf16.mxu0 0
      %1568 = vmatpush2.bf16.msra.mxu0 0
      %1569 = vmatprep.subr.bf16.mxu0 0
      %1570 = vmatpush2.bf16.msra.mxu0 0
      %1571 = vmatprep.subr.bf16.mxu0 0
      %1572 = vmatpush2.bf16.msra.mxu0 0
      %1573 = vmatprep.subr.bf16.mxu0 0
      %1574 = vmatpush2.bf16.msra.mxu0 0
      %1575 = vmatprep.subr.bf16.mxu0 0
      %1576 = vmatpush2.bf16.msra.mxu0 0
      %1577 = vmatprep.mubr.bf16.mxu0 0
      %1578 = vmatmul.mubr.bf16.gmra.mxu0 %v1543
      %v1579 = vpop.f32.mrf.mxu0
      %v1580 = vadd.f32 0.0, %v1579
      %v1581 = vpop.f32.mrf.mxu0
      %v1582 = vpop.f32.mrf.mxu0
      %v1583 = vpop.f32.mrf.mxu0
      %1584 = vdwg.mxu0
      %v1585 = vadd.f32 %v1533, %v1580
      %v1586 = vadd.f32 %v1585, %v481
      %v1587 = vxor.u32 %v1586, 2147483648
      %v1588 = vmul.f32 %v1587, 1.442695
      %v1589 = vpow.pop %v1588
      %v1590 = vadd.f32 %v1589, 1.0
      %v1591 = vrcp.pop %v1590
      %v1592 = vmul.f32 1.0, %v1591
      %v1593 = vtanh.pop %v1586
      %v1594 = vld [vmem:[#allocation3] sm:$0x3]
      %1596 = vrot.lane.b32.xlu0 %v1594, 32
      %v1597 = vpop.permute.xlu0 %1596
      %v1599 = vmul.f32 %v1592, %v1597
      %1601 = vrot.lane.b32.xlu0 %v1593, 64
      %v1602 = vpop.permute.xlu0 %1601
      %v1604 = vmul.f32 %v1592, %v1602
      %1606 = vrot.lane.b32.xlu0 %v1604, 32
      %v1607 = vpop.permute.xlu0 %1606
      %v1609 = vadd.f32 %v1599, %v1607
      %v1610 = vtanh.pop %v1609
      %1612 = vrot.lane.b32.xlu0 %v1610, 64
      %v1613 = vpop.permute.xlu0 %1612
      %v1615 = vmul.f32 %v1592, %v1613
      %1617 = vrot.lane.b32.xlu0 %v1615, 32
      %v1618 = vpop.permute.xlu0 %1617
      %1620 = vst.msk [vmem:[#allocation2] sm:$0x3] %vm517, %v1618
      %1622 = vrot.lane.b32.xlu0 %v1609, 96
      %v1623 = vpop.permute.xlu0 %1622
      %1625 = vst.msk [vmem:[#allocation3] sm:$0x3] %vm517, %v1623
      %s1626 = scalar_lea.vmem %s272, %s1448
      %1627 = vst.msk [vmem:[%s1626] sm:$0x3] %vm517, %v1618
      %s1628 = smul.u32 %s18, 4294967289
      %s1629 = sadd.s32 %s1628, 7
      %v1630 = vld [vmem:[#allocation2] sm:$0x3]
      %v1631 = vpack.c.bf16 %v1630, %v1630
      %s1632 = smul.u32 %s1629, 2
      %s1633 = scalar_lea.vmem %s246, %s1632
      %v1634 = vld [vmem:[%s1633] sm:$0x3]
      %v1635 = vpack.c.bf16 %v1634, %v1634
      %v1637 = vsel %vm318, %v1635, 0
      %1639 = vmatprep.subr.bf16.mxu0 0
      %1640 = vmatpush1.bf16.msra.mxu0 0
      %1641 = vmatprep.subr.bf16.mxu0 0
      %1642 = vmatpush1.bf16.msra.mxu0 0
      %1643 = vmatprep.subr.bf16.mxu0 0
      %1644 = vmatpush1.bf16.msra.mxu0 0
      %1645 = vmatprep.subr.bf16.mxu0 0
      %1646 = vmatpush1.bf16.msra.mxu0 0
      %1647 = vmatprep.subr.bf16.mxu0 0
      %1648 = vmatpush1.bf16.msra.mxu0 0
      %1649 = vmatprep.subr.bf16.mxu0 0
      %1650 = vmatpush1.bf16.msra.mxu0 0
      %1651 = vmatprep.subr.bf16.mxu0 0
      %1652 = vmatpush1.bf16.msra.mxu0 %v315
      %1653 = vmatprep.subr.bf16.mxu0 0
      %1654 = vmatpush1.bf16.msra.mxu0 %v314
      %1655 = vmatprep.subr.bf16.mxu0 0
      %1656 = vmatpush2.bf16.msra.mxu0 0
      %1657 = vmatprep.subr.bf16.mxu0 0
      %1658 = vmatpush2.bf16.msra.mxu0 0
      %1659 = vmatprep.subr.bf16.mxu0 0
      %1660 = vmatpush2.bf16.msra.mxu0 0
      %1661 = vmatprep.subr.bf16.mxu0 0
      %1662 = vmatpush2.bf16.msra.mxu0 0
      %1663 = vmatprep.subr.bf16.mxu0 0
      %1664 = vmatpush2.bf16.msra.mxu0 0
      %1665 = vmatprep.subr.bf16.mxu0 0
      %1666 = vmatpush2.bf16.msra.mxu0 0
      %1667 = vmatprep.subr.bf16.mxu0 0
      %1668 = vmatpush2.bf16.msra.mxu0 0
      %1669 = vmatprep.subr.bf16.mxu0 0
      %1670 = vmatpush2.bf16.msra.mxu0 0
      %1671 = vmatprep.mubr.bf16.mxu0 0
      %1672 = vmatmul.mubr.bf16.gmra.mxu0 %v1637
      %v1673 = vpop.f32.mrf.mxu0
      %v1674 = vadd.f32 0.0, %v1673
      %v1675 = vpop.f32.mrf.mxu0
      %v1676 = vpop.f32.mrf.mxu0
      %v1677 = vpop.f32.mrf.mxu0
      %1678 = vdwg.mxu0
      %v1680 = vsel %vm318, %v1631, 0
      %1682 = vmatprep.subr.bf16.mxu0 0
      %1683 = vmatpush1.bf16.msra.mxu0 0
      %1684 = vmatprep.subr.bf16.mxu0 0
      %1685 = vmatpush1.bf16.msra.mxu0 0
      %1686 = vmatprep.subr.bf16.mxu0 0
      %1687 = vmatpush1.bf16.msra.mxu0 0
      %1688 = vmatprep.subr.bf16.mxu0 0
      %1689 = vmatpush1.bf16.msra.mxu0 0
      %1690 = vmatprep.subr.bf16.mxu0 0
      %1691 = vmatpush1.bf16.msra.mxu0 0
      %1692 = vmatprep.subr.bf16.mxu0 0
      %1693 = vmatpush1.bf16.msra.mxu0 0
      %1694 = vmatprep.subr.bf16.mxu0 0
      %1695 = vmatpush1.bf16.msra.mxu0 %v371
      %1696 = vmatprep.subr.bf16.mxu0 0
      %1697 = vmatpush1.bf16.msra.mxu0 %v370
      %1698 = vmatprep.subr.bf16.mxu0 0
      %1699 = vmatpush2.bf16.msra.mxu0 0
      %1700 = vmatprep.subr.bf16.mxu0 0
      %1701 = vmatpush2.bf16.msra.mxu0 0
      %1702 = vmatprep.subr.bf16.mxu0 0
      %1703 = vmatpush2.bf16.msra.mxu0 0
      %1704 = vmatprep.subr.bf16.mxu0 0
      %1705 = vmatpush2.bf16.msra.mxu0 0
      %1706 = vmatprep.subr.bf16.mxu0 0
      %1707 = vmatpush2.bf16.msra.mxu0 0
      %1708 = vmatprep.subr.bf16.mxu0 0
      %1709 = vmatpush2.bf16.msra.mxu0 0
      %1710 = vmatprep.subr.bf16.mxu0 0
      %1711 = vmatpush2.bf16.msra.mxu0 0
      %1712 = vmatprep.subr.bf16.mxu0 0
      %1713 = vmatpush2.bf16.msra.mxu0 0
      %1714 = vmatprep.mubr.bf16.mxu0 0
      %1715 = vmatmul.mubr.bf16.gmra.mxu0 %v1680
      %v1716 = vpop.f32.mrf.mxu0
      %v1717 = vadd.f32 %v1674, %v1716
      %v1718 = vpop.f32.mrf.mxu0
      %v1719 = vpop.f32.mrf.mxu0
      %v1720 = vpop.f32.mrf.mxu0
      %1721 = vdwg.mxu0
      %s1722 = sadd.s32 %s1632, 16
      %s1723 = scalar_lea.vmem %s246, %s1722
      %v1724 = vld [vmem:[%s1723] sm:$0x3]
      %v1725 = vpack.c.bf16 %v1724, %v1724
      %v1727 = vsel %vm318, %v1725, 0
      %1729 = vmatprep.subr.bf16.mxu0 0
      %1730 = vmatpush1.bf16.msra.mxu0 0
      %1731 = vmatprep.subr.bf16.mxu0 0
      %1732 = vmatpush1.bf16.msra.mxu0 0
      %1733 = vmatprep.subr.bf16.mxu0 0
      %1734 = vmatpush1.bf16.msra.mxu0 0
      %1735 = vmatprep.subr.bf16.mxu0 0
      %1736 = vmatpush1.bf16.msra.mxu0 0
      %1737 = vmatprep.subr.bf16.mxu0 0
      %1738 = vmatpush1.bf16.msra.mxu0 0
      %1739 = vmatprep.subr.bf16.mxu0 0
      %1740 = vmatpush1.bf16.msra.mxu0 0
      %1741 = vmatprep.subr.bf16.mxu0 0
      %1742 = vmatpush1.bf16.msra.mxu0 %v430
      %1743 = vmatprep.subr.bf16.mxu0 0
      %1744 = vmatpush1.bf16.msra.mxu0 %v429
      %1745 = vmatprep.subr.bf16.mxu0 0
      %1746 = vmatpush2.bf16.msra.mxu0 0
      %1747 = vmatprep.subr.bf16.mxu0 0
      %1748 = vmatpush2.bf16.msra.mxu0 0
      %1749 = vmatprep.subr.bf16.mxu0 0
      %1750 = vmatpush2.bf16.msra.mxu0 0
      %1751 = vmatprep.subr.bf16.mxu0 0
      %1752 = vmatpush2.bf16.msra.mxu0 0
      %1753 = vmatprep.subr.bf16.mxu0 0
      %1754 = vmatpush2.bf16.msra.mxu0 0
      %1755 = vmatprep.subr.bf16.mxu0 0
      %1756 = vmatpush2.bf16.msra.mxu0 0
      %1757 = vmatprep.subr.bf16.mxu0 0
      %1758 = vmatpush2.bf16.msra.mxu0 0
      %1759 = vmatprep.subr.bf16.mxu0 0
      %1760 = vmatpush2.bf16.msra.mxu0 0
      %1761 = vmatprep.mubr.bf16.mxu0 0
      %1762 = vmatmul.mubr.bf16.gmra.mxu0 %v1727
      %v1763 = vpop.f32.mrf.mxu0
      %v1764 = vadd.f32 0.0, %v1763
      %v1765 = vpop.f32.mrf.mxu0
      %v1766 = vpop.f32.mrf.mxu0
      %v1767 = vpop.f32.mrf.mxu0
      %1768 = vdwg.mxu0
      %v1769 = vadd.f32 %v1717, %v1764
      %v1770 = vadd.f32 %v1769, %v481
      %v1771 = vxor.u32 %v1770, 2147483648
      %v1772 = vmul.f32 %v1771, 1.442695
      %v1773 = vpow.pop %v1772
      %v1774 = vadd.f32 %v1773, 1.0
      %v1775 = vrcp.pop %v1774
      %v1776 = vmul.f32 1.0, %v1775
      %v1777 = vtanh.pop %v1770
      %v1778 = vld [vmem:[#allocation3] sm:$0x3]
      %1780 = vrot.lane.b32.xlu0 %v1778, 32
      %v1781 = vpop.permute.xlu0 %1780
      %v1783 = vmul.f32 %v1776, %v1781
      %1785 = vrot.lane.b32.xlu0 %v1777, 64
      %v1786 = vpop.permute.xlu0 %1785
      %v1788 = vmul.f32 %v1776, %v1786
      %1790 = vrot.lane.b32.xlu0 %v1788, 32
      %v1791 = vpop.permute.xlu0 %1790
      %v1793 = vadd.f32 %v1783, %v1791
      %v1794 = vtanh.pop %v1793
      %1796 = vrot.lane.b32.xlu0 %v1794, 64
      %v1797 = vpop.permute.xlu0 %1796
      %v1799 = vmul.f32 %v1776, %v1797
      %1801 = vrot.lane.b32.xlu0 %v1799, 32
      %v1802 = vpop.permute.xlu0 %1801
      %1804 = vst.msk [vmem:[#allocation2] sm:$0x3] %vm517, %v1802
      %1806 = vrot.lane.b32.xlu0 %v1793, 96
      %v1807 = vpop.permute.xlu0 %1806
      %1809 = vst.msk [vmem:[#allocation3] sm:$0x3] %vm517, %v1807
      %s1810 = scalar_lea.vmem %s272, %s1632
      %1811 = vst.msk [vmem:[%s1810] sm:$0x3] %vm517, %v1802
      %s1812 = smul.u32 %s19, 2
      %s1813 = ssub.s32 0, %s1812
      %s1814 = smul.u32 %s18, %s1813
      %s1815 = sadd.s32 %s19, %s1814
      %s1816 = smul.u32 8, %s1815
      %p1817 = scmp.lt.s32.totalorder %s18, 1
      %s1818 = scalar_select %p1817, %s18, 1
      %p1819 = scmp.lt.s32.totalorder %s1816, 7
      %s1820 = scalar_select %p1819, %s1816, 7
      %s1821 = smul.addr %s1818, 8
      %s1822 = sadd.s32 %s1820, %s1821
      %s1823 = smul.addr %s1822, 2
      %s1824 = scalar_lea.vmem %s3, %s1823
      // Predicated region
      $region37: #{rnn_forward.4} parent=31 // pred_check
        %p1825 = pneg %p140
      $region38: #{rnn_forward.4} parent=31 // pred_check_branch
        %1827 = sbr.rel (%p1825) target = $region40
      $region39: #{rnn_forward.4} parent=31 // pred_region
        %s1828 = smul.u32 %s19, 2
        %s1829 = ssub.s32 0, %s1828
        %s1830 = smul.u32 %s18, %s1829
        %s1831 = sadd.s32 %s19, %s1830
        %s1832 = smul.u32 8, %s1831
      $region40: #{rnn_forward.4} parent=31 // pred_fallthru
        _
    $region32: #{rnn_forward.4} parent=5 // pred_fallthru
      _
    %p1833 = scmp.le.s32.totalorder 2, %s9
    // Predicated region
    $region41: #{rnn_forward.4} parent=5 // pred_check
      %p1834 = pneg %p1833
    $region42: #{rnn_forward.4} parent=5 // pred_check_branch
      %1836 = sbr.rel (%p1834) target = $region44
    $region43: #{rnn_forward.4} parent=5 // pred_region
      %s1837 = ssub.s32 %s9, 2
      // Predicated region
      $region45: #{rnn_forward.4} parent=43 // pred_check
        %p1838 = pneg %p146
      $region46: #{rnn_forward.4} parent=43 // pred_check_branch
        %1840 = sbr.rel (%p1838) target = $region48
      $region47: #{rnn_forward.4} parent=43 // pred_region
        %s1841 = smul.u32 %s21, 2
        %s1842 = ssub.s32 0, %s1841
        %s1843 = smul.u32 %s20, %s1842
        %s1844 = sadd.s32 %s21, %s1843
        %s1845 = smul.u32 8, %s1844
        %p1846 = scmp.lt.s32.totalorder %s20, 1
        %s1847 = scalar_select %p1846, %s20, 1
        %p1848 = scmp.lt.s32.totalorder %s1845, 7
        %s1849 = scalar_select %p1848, %s1845, 7
        %s1850 = smul.addr %s1847, 8
        %s1851 = sadd.s32 %s1849, %s1850
        %s1852 = smul.addr %s1851, 2
        %s1853 = scalar_lea.vmem %s3, %s1852
      $region48: #{rnn_forward.4} parent=43 // pred_fallthru
        _
    $region44: #{rnn_forward.4} parent=5 // pred_fallthru
      _
  $region6: #{rnn_forward.4} parent=0 // loop_footer
    %s13 = sadd.s32 1, %s9
  $region7: #{rnn_forward.4} parent=0 // loop_footer_branch
    %8 = sbr.rel target = $region3
  $region8: #{rnn_forward.4} parent=0 // loop_exit
    _

// kernel: rnn_forward.3
$region0: #{rnn_forward.3}
  #allocation0 [shape = 'u32[]', space=smem, size = 0x4, offset = 0x4, fixed_abs, tag = 'smem constant byte address 0x4 - core index']
  #allocation1 [shape = 'u32[144,128]{1,0:T(1,128)}', space=vmem, size = 0x12000, scoped, tag = 'internal scratch']
  #allocation2 [shape = 'f32[2,32]{1,0:T(2,128)}', space=vmem, size = 0x400, scoped, tag = 'scratch operand']
  #allocation3 [shape = 'f32[2,32]{1,0:T(2,128)}', space=vmem, size = 0x400, scoped, tag = 'scratch operand']
  %s0 = inlined_call_operand.vmem [shape: f32[1,8,2,16], index: 0, kind: input, shape index: {}]
  %s1 = inlined_call_operand.vmem [shape: bf16[2,48,128], index: 1, kind: input, shape index: {}]
  %s2 = inlined_call_operand.vmem [shape: f32[2,1,128], index: 2, kind: input, shape index: {}]
  %s3 = inlined_call_operand.vmem [shape: f32[2,8,2,32], index: 3, kind: output, shape index: {}]
  %s4 = sld [smem:[#allocation0]]
  $region49: #{rnn_forward.3} parent=0
    _
  %s6 = ssub.s32 1, %s4
  %s7 = scalar_select 0, %s6, %s4
  loop: start=0, step=1, limit=4
  $region2: #{rnn_forward.3} parent=0 // loop_pre_header
    _
  $region3: #{rnn_forward.3} parent=0 // loop_header
    %s9 = sphi 0, %s13
    %p10 = scmp.ge.s32.totalorder %s9, 4
    %s16 = sphi 0, %s28
    %s17 = sphi 0, %s24
    %s18 = sphi 0, %s16
    %s19 = sphi 0, %s17
    %s20 = sphi 0, %s18
    %s21 = sphi 0, %s19
    %s39 = sphi 0, %s41
    %s42 = sphi 0, %s39
    %s43 = sphi 0, %s42
    %s59 = sphi 0, %s43
    %s65 = sphi 0, %s67
    %s68 = sphi 0, %s65
    %s69 = sphi 0, %s68
    %s85 = sphi 0, %s69
    %s91 = sphi 0, %s93
    %s94 = sphi 0, %s91
    %s95 = sphi 0, %s94
    %s111 = sphi 0, %s95
    %s127 = sphi 0, %s129
    %s130 = sphi 0, %s127
    %s131 = sphi 0, %s130
    %s147 = sphi 0, %s131
  $region4: #{rnn_forward.3} parent=0 // loop_header_branch
    %12 = sbr.rel (%p10) target = $region8
  $region5: #{rnn_forward.3} parent=0 // loop_body
    %s14 = ssub.s32 %s9, 1
    %s15 = ssub.s32 %s9, 2
    %s22 = sadd.s32 1, %s17
    %p23 = scmp.ge.s32.totalorder %s22, 1
    %s24 = scalar_select %p23, 0, %s22
    %s25 = sadd.s32 1, %s16
    %s26 = scalar_select %p23, %s25, %s16
    %p27 = scmp.ge.s32.totalorder %s26, 2
    %s28 = scalar_select %p27, 0, %s26
    %s29 = smul.u32 %s17, 2
    %s30 = ssub.s32 0, %s29
    %s31 = smul.u32 %s16, %s30
    %s32 = sadd.s32 %s17, %s31
    %s33 = smul.u32 %s24, 2
    %s34 = ssub.s32 0, %s33
    %s35 = smul.u32 %s28, %s34
    %s36 = sadd.s32 %s24, %s35
    %s37 = ssub.s32 %s32, %s36
    %p38 = scmp.eq.s32.totalorder %s37, 0
    %s40 = sadd.s32 %s39, 1
    %s41 = scalar_select %p38, %s39, %s40
    %p44 = pneg %p38
    %p45 = scmp.eq.s32.totalorder %s9, 1
    %p46 = por %p44, %p45
    %p47 = scmp.ne.s32.totalorder %s39, %s42
    %p48 = scmp.eq.s32.totalorder %s9, 0
    %p49 = por %p47, %p48
    %p50 = scmp.ne.s32.totalorder %s39, %s42
    %p51 = scmp.eq.s32.totalorder %s14, 1
    %p52 = por %p50, %p51
    %p53 = scmp.ne.s32.totalorder %s42, %s43
    %p54 = scmp.eq.s32.totalorder %s14, 0
    %p55 = por %p53, %p54
    %p56 = scmp.ne.s32.totalorder %s42, %s43
    %p57 = scmp.eq.s32.totalorder %s15, 1
    %p58 = por %p56, %p57
    %p60 = scmp.ne.s32.totalorder %s43, %s59
    %p61 = scmp.eq.s32.totalorder %s15, 0
    %p62 = por %p60, %p61
    %s63 = ssub.s32 %s16, %s28
    %p64 = scmp.eq.s32.totalorder %s63, 0
    %s66 = sadd.s32 %s65, 1
    %s67 = scalar_select %p64, %s65, %s66
    %p70 = pneg %p64
    %p71 = scmp.eq.s32.totalorder %s9, 1
    %p72 = por %p70, %p71
    %p73 = scmp.ne.s32.totalorder %s65, %s68
    %p74 = scmp.eq.s32.totalorder %s9, 0
    %p75 = por %p73, %p74
    %p76 = scmp.ne.s32.totalorder %s65, %s68
    %p77 = scmp.eq.s32.totalorder %s14, 1
    %p78 = por %p76, %p77
    %p79 = scmp.ne.s32.totalorder %s68, %s69
    %p80 = scmp.eq.s32.totalorder %s14, 0
    %p81 = por %p79, %p80
    %p82 = scmp.ne.s32.totalorder %s68, %s69
    %p83 = scmp.eq.s32.totalorder %s15, 1
    %p84 = por %p82, %p83
    %p86 = scmp.ne.s32.totalorder %s69, %s85
    %p87 = scmp.eq.s32.totalorder %s15, 0
    %p88 = por %p86, %p87
    %s89 = ssub.s32 %s16, %s28
    %p90 = scmp.eq.s32.totalorder %s89, 0
    %s92 = sadd.s32 %s91, 1
    %s93 = scalar_select %p90, %s91, %s92
    %p96 = pneg %p90
    %p97 = scmp.eq.s32.totalorder %s9, 1
    %p98 = por %p96, %p97
    %p99 = scmp.ne.s32.totalorder %s91, %s94
    %p100 = scmp.eq.s32.totalorder %s9, 0
    %p101 = por %p99, %p100
    %p102 = scmp.ne.s32.totalorder %s91, %s94
    %p103 = scmp.eq.s32.totalorder %s14, 1
    %p104 = por %p102, %p103
    %p105 = scmp.ne.s32.totalorder %s94, %s95
    %p106 = scmp.eq.s32.totalorder %s14, 0
    %p107 = por %p105, %p106
    %p108 = scmp.ne.s32.totalorder %s94, %s95
    %p109 = scmp.eq.s32.totalorder %s15, 1
    %p110 = por %p108, %p109
    %p112 = scmp.ne.s32.totalorder %s95, %s111
    %p113 = scmp.eq.s32.totalorder %s15, 0
    %p114 = por %p112, %p113
    %s115 = smul.u32 %s17, 2
    %s116 = ssub.s32 0, %s115
    %s117 = smul.u32 %s16, %s116
    %s118 = sadd.s32 %s17, %s117
    %s119 = smul.u32 %s24, 2
    %s120 = ssub.s32 0, %s119
    %s121 = smul.u32 %s28, %s120
    %s122 = sadd.s32 %s24, %s121
    %s123 = ssub.s32 %s16, %s28
    %s124 = ssub.s32 %s118, %s122
    %s125 = sor.u32 %s123, %s124
    %p126 = scmp.eq.s32.totalorder %s125, 0
    %s128 = sadd.s32 %s127, 1
    %s129 = scalar_select %p126, %s127, %s128
    %p132 = pneg %p126
    %p133 = scmp.eq.s32.totalorder %s9, 1
    %p134 = por %p132, %p133
    %p135 = scmp.ne.s32.totalorder %s127, %s130
    %p136 = scmp.eq.s32.totalorder %s9, 0
    %p137 = por %p135, %p136
    %p138 = scmp.ne.s32.totalorder %s127, %s130
    %p139 = scmp.eq.s32.totalorder %s14, 1
    %p140 = por %p138, %p139
    %p141 = scmp.ne.s32.totalorder %s130, %s131
    %p142 = scmp.eq.s32.totalorder %s14, 0
    %p143 = por %p141, %p142
    %p144 = scmp.ne.s32.totalorder %s130, %s131
    %p145 = scmp.eq.s32.totalorder %s15, 1
    %p146 = por %p144, %p145
    %p148 = scmp.ne.s32.totalorder %s131, %s147
    %p149 = scmp.eq.s32.totalorder %s15, 0
    %p150 = por %p148, %p149
    %p151 = scmp.le.s32.totalorder 1, %s9
    %p152 = scmp.lt.s32.totalorder %s9, 3
    %p153 = pnand %p151, %p152
    %p154 = pneg %p153
    // Predicated region
    $region9: #{rnn_forward.3} parent=5 // pred_check
      _
    $region10: #{rnn_forward.3} parent=5 // pred_check_branch
      %156 = sbr.rel (%p153) target = $region12
    $region11: #{rnn_forward.3} parent=5 // pred_region
      %s157 = ssub.s32 %s9, 1
    $region12: #{rnn_forward.3} parent=5 // pred_fallthru
      _
    %p158 = scmp.lt.s32.totalorder %s9, 2
    // Predicated region
    $region13: #{rnn_forward.3} parent=5 // pred_check
      %p159 = pneg %p158
    $region14: #{rnn_forward.3} parent=5 // pred_check_branch
      %161 = sbr.rel (%p159) target = $region16
    $region15: #{rnn_forward.3} parent=5 // pred_region
      // Predicated region
      $region17: #{rnn_forward.3} parent=15 // pred_check
        %p162 = pneg %p49
      $region18: #{rnn_forward.3} parent=15 // pred_check_branch
        %164 = sbr.rel (%p162) target = $region20
      $region19: #{rnn_forward.3} parent=15 // pred_region
        %s165 = smul.u32 %s17, 2
        %s166 = ssub.s32 0, %s165
        %s167 = smul.u32 %s16, %s166
        %s168 = sadd.s32 %s17, %s167
        %s169 = smul.u32 8, %s168
        %p170 = scmp.lt.s32.totalorder %s169, 7
        %s171 = scalar_select %p170, %s169, 7
        %s172 = smul.addr %s171, 2
        %s173 = scalar_lea.vmem %s0, %s172
        %s174 = smul.u32 %s17, 2
        %s175 = ssub.s32 0, %s174
        %s176 = smul.u32 %s16, %s175
        %s177 = sadd.s32 %s17, %s176
        %s178 = smul.u32 8, %s177
      $region20: #{rnn_forward.3} parent=15 // pred_fallthru
        _
      // Predicated region
      $region21: #{rnn_forward.3} parent=15 // pred_check
        %p179 = pneg %p75
      $region22: #{rnn_forward.3} parent=15 // pred_check_branch
        %181 = sbr.rel (%p179) target = $region24
      $region23: #{rnn_forward.3} parent=15 // pred_region
        %p182 = scmp.lt.s32.totalorder %s16, 1
        %s183 = scalar_select %p182, %s16, 1
        %s184 = smul.addr %s183, 6
        %s185 = smul.addr %s184, 4
        %s186 = scalar_lea.vmem %s1, %s185
      $region24: #{rnn_forward.3} parent=15 // pred_fallthru
        _
      // Predicated region
      $region25: #{rnn_forward.3} parent=15 // pred_check
        %p187 = pneg %p101
      $region26: #{rnn_forward.3} parent=15 // pred_check_branch
        %189 = sbr.rel (%p187) target = $region28
      $region27: #{rnn_forward.3} parent=15 // pred_region
        %p190 = scmp.lt.s32.totalorder %s16, 1
        %s191 = scalar_select %p190, %s16, 1
        %s192 = scalar_lea.vmem %s2, %s191
      $region28: #{rnn_forward.3} parent=15 // pred_fallthru
        _
    $region16: #{rnn_forward.3} parent=5 // pred_fallthru
      _
    %p193 = scmp.le.s32.totalorder 1, %s9
    %p194 = scmp.lt.s32.totalorder %s9, 3
    %p195 = pnand %p193, %p194
    %p196 = pneg %p195
    // Predicated region
    $region29: #{rnn_forward.3} parent=5 // pred_check
      _
    $region30: #{rnn_forward.3} parent=5 // pred_check_branch
      %198 = sbr.rel (%p195) target = $region32
    $region31: #{rnn_forward.3} parent=5 // pred_region
      %s199 = ssub.s32 %s9, 1
      %s200 = smul.u32 %s19, 2
      %s201 = ssub.s32 0, %s200
      %s202 = smul.u32 %s18, %s201
      %s203 = sadd.s32 %s19, %s202
      %s204 = smul.u32 8, %s203
      %p205 = scmp.lt.s32.totalorder %s204, 7
      %s206 = scalar_select %p205, %s204, 7
      %s207 = smul.addr %s206, 2
      %s208 = scalar_lea.vmem %s0, %s207
      %p209 = pneg %p55
      %p210 = pneg %p52
      %p211 = scmp.lt.s32.totalorder %s18, 1
      %s212 = scalar_select %p211, %s18, 1
      %s213 = smul.addr %s212, 6
      %s214 = smul.addr %s213, 4
      %s215 = scalar_lea.vmem %s1, %s214
      %p216 = pneg %p81
      %p217 = pneg %p78
      %p218 = scmp.lt.s32.totalorder %s18, 1
      %s219 = scalar_select %p218, %s18, 1
      %s220 = scalar_lea.vmem %s2, %s219
      %p221 = pneg %p107
      %p222 = pneg %p104
      %p223 = pneg %p143
      %p224 = pneg %p140
      %s225 = smul.u32 %s19, 2
      %s226 = ssub.s32 0, %s225
      %s227 = smul.u32 %s18, %s226
      %s228 = sadd.s32 %s19, %s227
      %s229 = smul.u32 8, %s228
      %p230 = scmp.lt.s32.totalorder %s18, 1
      %s231 = scalar_select %p230, %s18, 1
      %p232 = scmp.lt.s32.totalorder %s229, 7
      %s233 = scalar_select %p232, %s229, 7
      %s234 = smul.addr %s231, 8
      %s235 = sadd.s32 %s233, %s234
      %s236 = smul.addr %s235, 2
      %s237 = scalar_lea.vmem %s3, %s236
      %s238 = smul.u32 %s19, 2
      %s239 = ssub.s32 0, %s238
      %s240 = smul.u32 %s18, %s239
      %s241 = sadd.s32 %s19, %s240
      %s242 = smul.u32 8, %s241
      %p243 = scmp.lt.s32.totalorder %s242, 7
      %s244 = scalar_select %p243, %s242, 7
      %s245 = smul.addr %s244, 2
      %s246 = scalar_lea.vmem %s0, %s245
      %s247 = smul.u32 %s19, 2
      %s248 = ssub.s32 0, %s247
      %s249 = smul.u32 %s18, %s248
      %s250 = sadd.s32 %s19, %s249
      %s251 = smul.u32 8, %s250
      %p252 = scmp.lt.s32.totalorder %s18, 1
      %s253 = scalar_select %p252, %s18, 1
      %s254 = smul.addr %s253, 6
      %s255 = smul.addr %s254, 4
      %s256 = scalar_lea.vmem %s1, %s255
      %p257 = scmp.lt.s32.totalorder %s18, 1
      %s258 = scalar_select %p257, %s18, 1
      %s259 = scalar_lea.vmem %s2, %s258
      %s260 = smul.u32 %s19, 2
      %s261 = ssub.s32 0, %s260
      %s262 = smul.u32 %s18, %s261
      %s263 = sadd.s32 %s19, %s262
      %s264 = smul.u32 8, %s263
      %p265 = scmp.lt.s32.totalorder %s18, 1
      %s266 = scalar_select %p265, %s18, 1
      %p267 = scmp.lt.s32.totalorder %s264, 7
      %s268 = scalar_select %p267, %s264, 7
      %s269 = smul.addr %s266, 8
      %s270 = sadd.s32 %s268, %s269
      %s271 = smul.addr %s270, 2
      %s272 = scalar_lea.vmem %s3, %s271
      %s273 = smul.u32 %s19, 2
      %s274 = ssub.s32 0, %s273
      %s275 = smul.u32 %s18, %s274
      %s276 = sadd.s32 %s19, %s275
      %s277 = smul.u32 8, %s276
      %p279 = scmp.eq.s32.totalorder %s19, 0
      // Predicated region
      $region33: #{rnn_forward.3} parent=31 // pred_check
        %p280 = pneg %p279
      $region34: #{rnn_forward.3} parent=31 // pred_check_branch
        %282 = sbr.rel (%p280) target = $region36
      $region35: #{rnn_forward.3} parent=31 // pred_region
        %vm283 = vcmask 254976
        %284 = vst.msk [vmem:[#allocation2] sm:$0x3] %vm283, 0.0
        %285 = vst.msk [vmem:[#allocation3] sm:$0x3] %vm283, 0.0
      $region36: #{rnn_forward.3} parent=31 // pred_fallthru
        _
      %v286 = vld [vmem:[%s256] sm:$0xf]
      %v287 = vld [vmem:[%s256 + $0x4] sm:$0xf]
      %v288 = vld [vmem:[%s256 + $0x8] sm:$0xf]
      %v289 = vld [vmem:[%s256 + $0xc] sm:$0xf]
      %v290 = vld [vmem:[%s256 + $0x10] sm:$0xf]
      %v291 = vld [vmem:[%s256 + $0x14] sm:$0xf]
      %v292 = vld [vmem:[%s259] sm:$0x1]
      %s293 = smul.u32 %s18, 7
      %v294 = vld [vmem:[#allocation2] sm:$0x3]
      %v295 = vpack.c.bf16 %v294, %v294
      %s296 = smul.u32 %s293, 2
      %s297 = scalar_lea.vmem %s246, %s296
      %v298 = vld [vmem:[%s297] sm:$0x3]
      %v299 = vpack.c.bf16 %v298, %v298
      %v302 = vunpack.c.l.b16 %v286
      %v303 = vunpack.c.l.b16 %v287
      %v304 = vpack.c.b16 %v303, %v302
      %vm306 = vcmask 130048
      %v308 = vsel %vm306, %v299, 0
      %310 = vmatprep.subr.bf16.mxu0 0
      %311 = vmatpush1.bf16.msra.mxu0 0
      %312 = vmatprep.subr.bf16.mxu0 0
      %313 = vmatpush1.bf16.msra.mxu0 0
      %314 = vmatprep.subr.bf16.mxu0 0
      %315 = vmatpush1.bf16.msra.mxu0 0
      %316 = vmatprep.subr.bf16.mxu0 0
      %317 = vmatpush1.bf16.msra.mxu0 0
      %318 = vmatprep.subr.bf16.mxu0 0
      %319 = vmatpush1.bf16.msra.mxu0 0
      %320 = vmatprep.subr.bf16.mxu0 0
      %321 = vmatpush1.bf16.msra.mxu0 0
      %322 = vmatprep.subr.bf16.mxu0 0
      %323 = vmatpush1.bf16.msra.mxu0 0
      %324 = vmatprep.subr.bf16.mxu0 0
      %325 = vmatpush1.bf16.msra.mxu0 %v304
      %326 = vmatprep.subr.bf16.mxu0 0
      %327 = vmatpush2.bf16.msra.mxu0 0
      %328 = vmatprep.subr.bf16.mxu0 0
      %329 = vmatpush2.bf16.msra.mxu0 0
      %330 = vmatprep.subr.bf16.mxu0 0
      %331 = vmatpush2.bf16.msra.mxu0 0
      %332 = vmatprep.subr.bf16.mxu0 0
      %333 = vmatpush2.bf16.msra.mxu0 0
      %334 = vmatprep.subr.bf16.mxu0 0
      %335 = vmatpush2.bf16.msra.mxu0 0
      %336 = vmatprep.subr.bf16.mxu0 0
      %337 = vmatpush2.bf16.msra.mxu0 0
      %338 = vmatprep.subr.bf16.mxu0 0
      %339 = vmatpush2.bf16.msra.mxu0 0
      %340 = vmatprep.subr.bf16.mxu0 0
      %341 = vmatpush2.bf16.msra.mxu0 0
      %342 = vmatprep.mubr.bf16.mxu0 0
      %343 = vmatmul.mubr.bf16.gmra.mxu0 %v308
      %v344 = vpop.f32.mrf.mxu0
      %v345 = vadd.f32 0.0, %v344
      %v346 = vpop.f32.mrf.mxu0
      %v347 = vpop.f32.mrf.mxu0
      %v348 = vpop.f32.mrf.mxu0
      %349 = vdwg.mxu0
      %v354 = vunpack.c.l.b16 %v288
      %v355 = vunpack.c.l.b16 %v289
      %v356 = vunpack.c.l.b16 %v290
      %v357 = vunpack.c.l.b16 %v291
      %v358 = vpack.c.b16 %v355, %v354
      %v359 = vpack.c.b16 %v357, %v356
      %vm362 = vcmask 261120
      %v364 = vsel %vm362, %v295, 0
      %366 = vmatprep.subr.bf16.mxu0 0
      %367 = vmatpush1.bf16.msra.mxu0 0
      %368 = vmatprep.subr.bf16.mxu0 0
      %369 = vmatpush1.bf16.msra.mxu0 0
      %370 = vmatprep.subr.bf16.mxu0 0
      %371 = vmatpush1.bf16.msra.mxu0 0
      %372 = vmatprep.subr.bf16.mxu0 0
      %373 = vmatpush1.bf16.msra.mxu0 0
      %374 = vmatprep.subr.bf16.mxu0 0
      %375 = vmatpush1.bf16.msra.mxu0 0
      %376 = vmatprep.subr.bf16.mxu0 0
      %377 = vmatpush1.bf16.msra.mxu0 0
      %378 = vmatprep.subr.bf16.mxu0 0
      %379 = vmatpush1.bf16.msra.mxu0 %v359
      %380 = vmatprep.subr.bf16.mxu0 0
      %381 = vmatpush1.bf16.msra.mxu0 %v358
      %382 = vmatprep.subr.bf16.mxu0 0
      %383 = vmatpush2.bf16.msra.mxu0 0
      %384 = vmatprep.subr.bf16.mxu0 0
      %385 = vmatpush2.bf16.msra.mxu0 0
      %386 = vmatprep.subr.bf16.mxu0 0
      %387 = vmatpush2.bf16.msra.mxu0 0
      %388 = vmatprep.subr.bf16.mxu0 0
      %389 = vmatpush2.bf16.msra.mxu0 0
      %390 = vmatprep.subr.bf16.mxu0 0
      %391 = vmatpush2.bf16.msra.mxu0 0
      %392 = vmatprep.subr.bf16.mxu0 0
      %393 = vmatpush2.bf16.msra.mxu0 0
      %394 = vmatprep.subr.bf16.mxu0 0
      %395 = vmatpush2.bf16.msra.mxu0 0
      %396 = vmatprep.subr.bf16.mxu0 0
      %397 = vmatpush2.bf16.msra.mxu0 0
      %398 = vmatprep.mubr.bf16.mxu0 0
      %399 = vmatmul.mubr.bf16.gmra.mxu0 %v364
      %v400 = vpop.f32.mrf.mxu0
      %v401 = vadd.f32 %v345, %v400
      %v402 = vpop.f32.mrf.mxu0
      %v403 = vpop.f32.mrf.mxu0
      %v404 = vpop.f32.mrf.mxu0
      %405 = vdwg.mxu0
      %v407 = vlaneseq
      %v408 = vshrl.u32 %v407, 7
      %v409 = vsub.s32 0, %v408
      %v410 = vrot.slane %v292, %v409
      %v412 = vadd.f32 %v401, %v410
      %v413 = vxor.u32 %v412, 2147483648
      %v414 = vmul.f32 %v413, 1.442695
      %v415 = vpow.pop %v414
      %v416 = vadd.f32 %v415, 1.0
      %v417 = vrcp.pop %v416
      %v418 = vmul.f32 1.0, %v417
      %v419 = vtanh.pop %v412
      %v420 = vld [vmem:[#allocation3] sm:$0x3]
      %422 = vrot.lane.b32.xlu0 %v420, 32
      %v423 = vpop.permute.xlu0 %422
      %v425 = vmul.f32 %v418, %v423
      %427 = vrot.lane.b32.xlu0 %v419, 64
      %v428 = vpop.permute.xlu0 %427
      %v430 = vmul.f32 %v418, %v428
      %432 = vrot.lane.b32.xlu0 %v430, 32
      %v433 = vpop.permute.xlu0 %432
      %v435 = vadd.f32 %v425, %v433
      %v436 = vtanh.pop %v435
      %438 = vrot.lane.b32.xlu0 %v436, 64
      %v439 = vpop.permute.xlu0 %438
      %v441 = vmul.f32 %v418, %v439
      %443 = vrot.lane.b32.xlu0 %v441, 32
      %v444 = vpop.permute.xlu0 %443
      %vm446 = vcmask 254976
      %447 = vst.msk [vmem:[#allocation2] sm:$0x3] %vm446, %v444
      %449 = vrot.lane.b32.xlu0 %v435, 96
      %v450 = vpop.permute.xlu0 %449
      %452 = vst.msk [vmem:[#allocation3] sm:$0x3] %vm446, %v450
      %s453 = scalar_lea.vmem %s272, %s296
      %454 = vst.msk [vmem:[%s453] sm:$0x3] %vm446, %v444
      %s455 = smul.u32 %s18, 5
      %s456 = sadd.s32 %s455, 1
      %v457 = vld [vmem:[#allocation2] sm:$0x3]
      %v458 = vpack.c.bf16 %v457, %v457
      %s459 = smul.u32 %s456, 2
      %s460 = scalar_lea.vmem %s246, %s459
      %v461 = vld [vmem:[%s460] sm:$0x3]
      %v462 = vpack.c.bf16 %v461, %v461
      %v464 = vsel %vm306, %v462, 0
      %466 = vmatprep.subr.bf16.mxu0 0
      %467 = vmatpush1.bf16.msra.mxu0 0
      %468 = vmatprep.subr.bf16.mxu0 0
      %469 = vmatpush1.bf16.msra.mxu0 0
      %470 = vmatprep.subr.bf16.mxu0 0
      %471 = vmatpush1.bf16.msra.mxu0 0
      %472 = vmatprep.subr.bf16.mxu0 0
      %473 = vmatpush1.bf16.msra.mxu0 0
      %474 = vmatprep.subr.bf16.mxu0 0
      %475 = vmatpush1.bf16.msra.mxu0 0
      %476 = vmatprep.subr.bf16.mxu0 0
      %477 = vmatpush1.bf16.msra.mxu0 0
      %478 = vmatprep.subr.bf16.mxu0 0
      %479 = vmatpush1.bf16.msra.mxu0 0
      %480 = vmatprep.subr.bf16.mxu0 0
      %481 = vmatpush1.bf16.msra.mxu0 %v304
      %482 = vmatprep.subr.bf16.mxu0 0
      %483 = vmatpush2.bf16.msra.mxu0 0
      %484 = vmatprep.subr.bf16.mxu0 0
      %485 = vmatpush2.bf16.msra.mxu0 0
      %486 = vmatprep.subr.bf16.mxu0 0
      %487 = vmatpush2.bf16.msra.mxu0 0
      %488 = vmatprep.subr.bf16.mxu0 0
      %489 = vmatpush2.bf16.msra.mxu0 0
      %490 = vmatprep.subr.bf16.mxu0 0
      %491 = vmatpush2.bf16.msra.mxu0 0
      %492 = vmatprep.subr.bf16.mxu0 0
      %493 = vmatpush2.bf16.msra.mxu0 0
      %494 = vmatprep.subr.bf16.mxu0 0
      %495 = vmatpush2.bf16.msra.mxu0 0
      %496 = vmatprep.subr.bf16.mxu0 0
      %497 = vmatpush2.bf16.msra.mxu0 0
      %498 = vmatprep.mubr.bf16.mxu0 0
      %499 = vmatmul.mubr.bf16.gmra.mxu0 %v464
      %v500 = vpop.f32.mrf.mxu0
      %v501 = vadd.f32 0.0, %v500
      %v502 = vpop.f32.mrf.mxu0
      %v503 = vpop.f32.mrf.mxu0
      %v504 = vpop.f32.mrf.mxu0
      %505 = vdwg.mxu0
      %v507 = vsel %vm362, %v458, 0
      %509 = vmatprep.subr.bf16.mxu0 0
      %510 = vmatpush1.bf16.msra.mxu0 0
      %511 = vmatprep.subr.bf16.mxu0 0
      %512 = vmatpush1.bf16.msra.mxu0 0
      %513 = vmatprep.subr.bf16.mxu0 0
      %514 = vmatpush1.bf16.msra.mxu0 0
      %515 = vmatprep.subr.bf16.mxu0 0
      %516 = vmatpush1.bf16.msra.mxu0 0
      %517 = vmatprep.subr.bf16.mxu0 0
      %518 = vmatpush1.bf16.msra.mxu0 0
      %519 = vmatprep.subr.bf16.mxu0 0
      %520 = vmatpush1.bf16.msra.mxu0 0
      %521 = vmatprep.subr.bf16.mxu0 0
      %522 = vmatpush1.bf16.msra.mxu0 %v359
      %523 = vmatprep.subr.bf16.mxu0 0
      %524 = vmatpush1.bf16.msra.mxu0 %v358
      %525 = vmatprep.subr.bf16.mxu0 0
      %526 = vmatpush2.bf16.msra.mxu0 0
      %527 = vmatprep.subr.bf16.mxu0 0
      %528 = vmatpush2.bf16.msra.mxu0 0
      %529 = vmatprep.subr.bf16.mxu0 0
      %530 = vmatpush2.bf16.msra.mxu0 0
      %531 = vmatprep.subr.bf16.mxu0 0
      %532 = vmatpush2.bf16.msra.mxu0 0
      %533 = vmatprep.subr.bf16.mxu0 0
      %534 = vmatpush2.bf16.msra.mxu0 0
      %535 = vmatprep.subr.bf16.mxu0 0
      %536 = vmatpush2.bf16.msra.mxu0 0
      %537 = vmatprep.subr.bf16.mxu0 0
      %538 = vmatpush2.bf16.msra.mxu0 0
      %539 = vmatprep.subr.bf16.mxu0 0
      %540 = vmatpush2.bf16.msra.mxu0 0
      %541 = vmatprep.mubr.bf16.mxu0 0
      %542 = vmatmul.mubr.bf16.gmra.mxu0 %v507
      %v543 = vpop.f32.mrf.mxu0
      %v544 = vadd.f32 %v501, %v543
      %v545 = vpop.f32.mrf.mxu0
      %v546 = vpop.f32.mrf.mxu0
      %v547 = vpop.f32.mrf.mxu0
      %548 = vdwg.mxu0
      %v549 = vadd.f32 %v544, %v410
      %v550 = vxor.u32 %v549, 2147483648
      %v551 = vmul.f32 %v550, 1.442695
      %v552 = vpow.pop %v551
      %v553 = vadd.f32 %v552, 1.0
      %v554 = vrcp.pop %v553
      %v555 = vmul.f32 1.0, %v554
      %v556 = vtanh.pop %v549
      %v557 = vld [vmem:[#allocation3] sm:$0x3]
      %559 = vrot.lane.b32.xlu0 %v557, 32
      %v560 = vpop.permute.xlu0 %559
      %v562 = vmul.f32 %v555, %v560
      %564 = vrot.lane.b32.xlu0 %v556, 64
      %v565 = vpop.permute.xlu0 %564
      %v567 = vmul.f32 %v555, %v565
      %569 = vrot.lane.b32.xlu0 %v567, 32
      %v570 = vpop.permute.xlu0 %569
      %v572 = vadd.f32 %v562, %v570
      %v573 = vtanh.pop %v572
      %575 = vrot.lane.b32.xlu0 %v573, 64
      %v576 = vpop.permute.xlu0 %575
      %v578 = vmul.f32 %v555, %v576
      %580 = vrot.lane.b32.xlu0 %v578, 32
      %v581 = vpop.permute.xlu0 %580
      %583 = vst.msk [vmem:[#allocation2] sm:$0x3] %vm446, %v581
      %585 = vrot.lane.b32.xlu0 %v572, 96
      %v586 = vpop.permute.xlu0 %585
      %588 = vst.msk [vmem:[#allocation3] sm:$0x3] %vm446, %v586
      %s589 = scalar_lea.vmem %s272, %s459
      %590 = vst.msk [vmem:[%s589] sm:$0x3] %vm446, %v581
      %s591 = smul.u32 %s18, 3
      %s592 = sadd.s32 %s591, 2
      %v593 = vld [vmem:[#allocation2] sm:$0x3]
      %v594 = vpack.c.bf16 %v593, %v593
      %s595 = smul.u32 %s592, 2
      %s596 = scalar_lea.vmem %s246, %s595
      %v597 = vld [vmem:[%s596] sm:$0x3]
      %v598 = vpack.c.bf16 %v597, %v597
      %v600 = vsel %vm306, %v598, 0
      %602 = vmatprep.subr.bf16.mxu0 0
      %603 = vmatpush1.bf16.msra.mxu0 0
      %604 = vmatprep.subr.bf16.mxu0 0
      %605 = vmatpush1.bf16.msra.mxu0 0
      %606 = vmatprep.subr.bf16.mxu0 0
      %607 = vmatpush1.bf16.msra.mxu0 0
      %608 = vmatprep.subr.bf16.mxu0 0
      %609 = vmatpush1.bf16.msra.mxu0 0
      %610 = vmatprep.subr.bf16.mxu0 0
      %611 = vmatpush1.bf16.msra.mxu0 0
      %612 = vmatprep.subr.bf16.mxu0 0
      %613 = vmatpush1.bf16.msra.mxu0 0
      %614 = vmatprep.subr.bf16.mxu0 0
      %615 = vmatpush1.bf16.msra.mxu0 0
      %616 = vmatprep.subr.bf16.mxu0 0
      %617 = vmatpush1.bf16.msra.mxu0 %v304
      %618 = vmatprep.subr.bf16.mxu0 0
      %619 = vmatpush2.bf16.msra.mxu0 0
      %620 = vmatprep.subr.bf16.mxu0 0
      %621 = vmatpush2.bf16.msra.mxu0 0
      %622 = vmatprep.subr.bf16.mxu0 0
      %623 = vmatpush2.bf16.msra.mxu0 0
      %624 = vmatprep.subr.bf16.mxu0 0
      %625 = vmatpush2.bf16.msra.mxu0 0
      %626 = vmatprep.subr.bf16.mxu0 0
      %627 = vmatpush2.bf16.msra.mxu0 0
      %628 = vmatprep.subr.bf16.mxu0 0
      %629 = vmatpush2.bf16.msra.mxu0 0
      %630 = vmatprep.subr.bf16.mxu0 0
      %631 = vmatpush2.bf16.msra.mxu0 0
      %632 = vmatprep.subr.bf16.mxu0 0
      %633 = vmatpush2.bf16.msra.mxu0 0
      %634 = vmatprep.mubr.bf16.mxu0 0
      %635 = vmatmul.mubr.bf16.gmra.mxu0 %v600
      %v636 = vpop.f32.mrf.mxu0
      %v637 = vadd.f32 0.0, %v636
      %v638 = vpop.f32.mrf.mxu0
      %v639 = vpop.f32.mrf.mxu0
      %v640 = vpop.f32.mrf.mxu0
      %641 = vdwg.mxu0
      %v643 = vsel %vm362, %v594, 0
      %645 = vmatprep.subr.bf16.mxu0 0
      %646 = vmatpush1.bf16.msra.mxu0 0
      %647 = vmatprep.subr.bf16.mxu0 0
      %648 = vmatpush1.bf16.msra.mxu0 0
      %649 = vmatprep.subr.bf16.mxu0 0
      %650 = vmatpush1.bf16.msra.mxu0 0
      %651 = vmatprep.subr.bf16.mxu0 0
      %652 = vmatpush1.bf16.msra.mxu0 0
      %653 = vmatprep.subr.bf16.mxu0 0
      %654 = vmatpush1.bf16.msra.mxu0 0
      %655 = vmatprep.subr.bf16.mxu0 0
      %656 = vmatpush1.bf16.msra.mxu0 0
      %657 = vmatprep.subr.bf16.mxu0 0
      %658 = vmatpush1.bf16.msra.mxu0 %v359
      %659 = vmatprep.subr.bf16.mxu0 0
      %660 = vmatpush1.bf16.msra.mxu0 %v358
      %661 = vmatprep.subr.bf16.mxu0 0
      %662 = vmatpush2.bf16.msra.mxu0 0
      %663 = vmatprep.subr.bf16.mxu0 0
      %664 = vmatpush2.bf16.msra.mxu0 0
      %665 = vmatprep.subr.bf16.mxu0 0
      %666 = vmatpush2.bf16.msra.mxu0 0
      %667 = vmatprep.subr.bf16.mxu0 0
      %668 = vmatpush2.bf16.msra.mxu0 0
      %669 = vmatprep.subr.bf16.mxu0 0
      %670 = vmatpush2.bf16.msra.mxu0 0
      %671 = vmatprep.subr.bf16.mxu0 0
      %672 = vmatpush2.bf16.msra.mxu0 0
      %673 = vmatprep.subr.bf16.mxu0 0
      %674 = vmatpush2.bf16.msra.mxu0 0
      %675 = vmatprep.subr.bf16.mxu0 0
      %676 = vmatpush2.bf16.msra.mxu0 0
      %677 = vmatprep.mubr.bf16.mxu0 0
      %678 = vmatmul.mubr.bf16.gmra.mxu0 %v643
      %v679 = vpop.f32.mrf.mxu0
      %v680 = vadd.f32 %v637, %v679
      %v681 = vpop.f32.mrf.mxu0
      %v682 = vpop.f32.mrf.mxu0
      %v683 = vpop.f32.mrf.mxu0
      %684 = vdwg.mxu0
      %v685 = vadd.f32 %v680, %v410
      %v686 = vxor.u32 %v685, 2147483648
      %v687 = vmul.f32 %v686, 1.442695
      %v688 = vpow.pop %v687
      %v689 = vadd.f32 %v688, 1.0
      %v690 = vrcp.pop %v689
      %v691 = vmul.f32 1.0, %v690
      %v692 = vtanh.pop %v685
      %v693 = vld [vmem:[#allocation3] sm:$0x3]
      %695 = vrot.lane.b32.xlu0 %v693, 32
      %v696 = vpop.permute.xlu0 %695
      %v698 = vmul.f32 %v691, %v696
      %700 = vrot.lane.b32.xlu0 %v692, 64
      %v701 = vpop.permute.xlu0 %700
      %v703 = vmul.f32 %v691, %v701
      %705 = vrot.lane.b32.xlu0 %v703, 32
      %v706 = vpop.permute.xlu0 %705
      %v708 = vadd.f32 %v698, %v706
      %v709 = vtanh.pop %v708
      %711 = vrot.lane.b32.xlu0 %v709, 64
      %v712 = vpop.permute.xlu0 %711
      %v714 = vmul.f32 %v691, %v712
      %716 = vrot.lane.b32.xlu0 %v714, 32
      %v717 = vpop.permute.xlu0 %716
      %719 = vst.msk [vmem:[#allocation2] sm:$0x3] %vm446, %v717
      %721 = vrot.lane.b32.xlu0 %v708, 96
      %v722 = vpop.permute.xlu0 %721
      %724 = vst.msk [vmem:[#allocation3] sm:$0x3] %vm446, %v722
      %s725 = scalar_lea.vmem %s272, %s595
      %726 = vst.msk [vmem:[%s725] sm:$0x3] %vm446, %v717
      %s727 = sadd.s32 %s18, 3
      %v728 = vld [vmem:[#allocation2] sm:$0x3]
      %v729 = vpack.c.bf16 %v728, %v728
      %s730 = smul.u32 %s727, 2
      %s731 = scalar_lea.vmem %s246, %s730
      %v732 = vld [vmem:[%s731] sm:$0x3]
      %v733 = vpack.c.bf16 %v732, %v732
      %v735 = vsel %vm306, %v733, 0
      %737 = vmatprep.subr.bf16.mxu0 0
      %738 = vmatpush1.bf16.msra.mxu0 0
      %739 = vmatprep.subr.bf16.mxu0 0
      %740 = vmatpush1.bf16.msra.mxu0 0
      %741 = vmatprep.subr.bf16.mxu0 0
      %742 = vmatpush1.bf16.msra.mxu0 0
      %743 = vmatprep.subr.bf16.mxu0 0
      %744 = vmatpush1.bf16.msra.mxu0 0
      %745 = vmatprep.subr.bf16.mxu0 0
      %746 = vmatpush1.bf16.msra.mxu0 0
      %747 = vmatprep.subr.bf16.mxu0 0
      %748 = vmatpush1.bf16.msra.mxu0 0
      %749 = vmatprep.subr.bf16.mxu0 0
      %750 = vmatpush1.bf16.msra.mxu0 0
      %751 = vmatprep.subr.bf16.mxu0 0
      %752 = vmatpush1.bf16.msra.mxu0 %v304
      %753 = vmatprep.subr.bf16.mxu0 0
      %754 = vmatpush2.bf16.msra.mxu0 0
      %755 = vmatprep.subr.bf16.mxu0 0
      %756 = vmatpush2.bf16.msra.mxu0 0
      %757 = vmatprep.subr.bf16.mxu0 0
      %758 = vmatpush2.bf16.msra.mxu0 0
      %759 = vmatprep.subr.bf16.mxu0 0
      %760 = vmatpush2.bf16.msra.mxu0 0
      %761 = vmatprep.subr.bf16.mxu0 0
      %762 = vmatpush2.bf16.msra.mxu0 0
      %763 = vmatprep.subr.bf16.mxu0 0
      %764 = vmatpush2.bf16.msra.mxu0 0
      %765 = vmatprep.subr.bf16.mxu0 0
      %766 = vmatpush2.bf16.msra.mxu0 0
      %767 = vmatprep.subr.bf16.mxu0 0
      %768 = vmatpush2.bf16.msra.mxu0 0
      %769 = vmatprep.mubr.bf16.mxu0 0
      %770 = vmatmul.mubr.bf16.gmra.mxu0 %v735
      %v771 = vpop.f32.mrf.mxu0
      %v772 = vadd.f32 0.0, %v771
      %v773 = vpop.f32.mrf.mxu0
      %v774 = vpop.f32.mrf.mxu0
      %v775 = vpop.f32.mrf.mxu0
      %776 = vdwg.mxu0
      %v778 = vsel %vm362, %v729, 0
      %780 = vmatprep.subr.bf16.mxu0 0
      %781 = vmatpush1.bf16.msra.mxu0 0
      %782 = vmatprep.subr.bf16.mxu0 0
      %783 = vmatpush1.bf16.msra.mxu0 0
      %784 = vmatprep.subr.bf16.mxu0 0
      %785 = vmatpush1.bf16.msra.mxu0 0
      %786 = vmatprep.subr.bf16.mxu0 0
      %787 = vmatpush1.bf16.msra.mxu0 0
      %788 = vmatprep.subr.bf16.mxu0 0
      %789 = vmatpush1.bf16.msra.mxu0 0
      %790 = vmatprep.subr.bf16.mxu0 0
      %791 = vmatpush1.bf16.msra.mxu0 0
      %792 = vmatprep.subr.bf16.mxu0 0
      %793 = vmatpush1.bf16.msra.mxu0 %v359
      %794 = vmatprep.subr.bf16.mxu0 0
      %795 = vmatpush1.bf16.msra.mxu0 %v358
      %796 = vmatprep.subr.bf16.mxu0 0
      %797 = vmatpush2.bf16.msra.mxu0 0
      %798 = vmatprep.subr.bf16.mxu0 0
      %799 = vmatpush2.bf16.msra.mxu0 0
      %800 = vmatprep.subr.bf16.mxu0 0
      %801 = vmatpush2.bf16.msra.mxu0 0
      %802 = vmatprep.subr.bf16.mxu0 0
      %803 = vmatpush2.bf16.msra.mxu0 0
      %804 = vmatprep.subr.bf16.mxu0 0
      %805 = vmatpush2.bf16.msra.mxu0 0
      %806 = vmatprep.subr.bf16.mxu0 0
      %807 = vmatpush2.bf16.msra.mxu0 0
      %808 = vmatprep.subr.bf16.mxu0 0
      %809 = vmatpush2.bf16.msra.mxu0 0
      %810 = vmatprep.subr.bf16.mxu0 0
      %811 = vmatpush2.bf16.msra.mxu0 0
      %812 = vmatprep.mubr.bf16.mxu0 0
      %813 = vmatmul.mubr.bf16.gmra.mxu0 %v778
      %v814 = vpop.f32.mrf.mxu0
      %v815 = vadd.f32 %v772, %v814
      %v816 = vpop.f32.mrf.mxu0
      %v817 = vpop.f32.mrf.mxu0
      %v818 = vpop.f32.mrf.mxu0
      %819 = vdwg.mxu0
      %v820 = vadd.f32 %v815, %v410
      %v821 = vxor.u32 %v820, 2147483648
      %v822 = vmul.f32 %v821, 1.442695
      %v823 = vpow.pop %v822
      %v824 = vadd.f32 %v823, 1.0
      %v825 = vrcp.pop %v824
      %v826 = vmul.f32 1.0, %v825
      %v827 = vtanh.pop %v820
      %v828 = vld [vmem:[#allocation3] sm:$0x3]
      %830 = vrot.lane.b32.xlu0 %v828, 32
      %v831 = vpop.permute.xlu0 %830
      %v833 = vmul.f32 %v826, %v831
      %835 = vrot.lane.b32.xlu0 %v827, 64
      %v836 = vpop.permute.xlu0 %835
      %v838 = vmul.f32 %v826, %v836
      %840 = vrot.lane.b32.xlu0 %v838, 32
      %v841 = vpop.permute.xlu0 %840
      %v843 = vadd.f32 %v833, %v841
      %v844 = vtanh.pop %v843
      %846 = vrot.lane.b32.xlu0 %v844, 64
      %v847 = vpop.permute.xlu0 %846
      %v849 = vmul.f32 %v826, %v847
      %851 = vrot.lane.b32.xlu0 %v849, 32
      %v852 = vpop.permute.xlu0 %851
      %854 = vst.msk [vmem:[#allocation2] sm:$0x3] %vm446, %v852
      %856 = vrot.lane.b32.xlu0 %v843, 96
      %v857 = vpop.permute.xlu0 %856
      %859 = vst.msk [vmem:[#allocation3] sm:$0x3] %vm446, %v857
      %s860 = scalar_lea.vmem %s272, %s730
      %861 = vst.msk [vmem:[%s860] sm:$0x3] %vm446, %v852
      %s862 = ssub.s32 4, %s18
      %v863 = vld [vmem:[#allocation2] sm:$0x3]
      %v864 = vpack.c.bf16 %v863, %v863
      %s865 = smul.u32 %s862, 2
      %s866 = scalar_lea.vmem %s246, %s865
      %v867 = vld [vmem:[%s866] sm:$0x3]
      %v868 = vpack.c.bf16 %v867, %v867
      %v870 = vsel %vm306, %v868, 0
      %872 = vmatprep.subr.bf16.mxu0 0
      %873 = vmatpush1.bf16.msra.mxu0 0
      %874 = vmatprep.subr.bf16.mxu0 0
      %875 = vmatpush1.bf16.msra.mxu0 0
      %876 = vmatprep.subr.bf16.mxu0 0
      %877 = vmatpush1.bf16.msra.mxu0 0
      %878 = vmatprep.subr.bf16.mxu0 0
      %879 = vmatpush1.bf16.msra.mxu0 0
      %880 = vmatprep.subr.bf16.mxu0 0
      %881 = vmatpush1.bf16.msra.mxu0 0
      %882 = vmatprep.subr.bf16.mxu0 0
      %883 = vmatpush1.bf16.msra.mxu0 0
      %884 = vmatprep.subr.bf16.mxu0 0
      %885 = vmatpush1.bf16.msra.mxu0 0
      %886 = vmatprep.subr.bf16.mxu0 0
      %887 = vmatpush1.bf16.msra.mxu0 %v304
      %888 = vmatprep.subr.bf16.mxu0 0
      %889 = vmatpush2.bf16.msra.mxu0 0
      %890 = vmatprep.subr.bf16.mxu0 0
      %891 = vmatpush2.bf16.msra.mxu0 0
      %892 = vmatprep.subr.bf16.mxu0 0
      %893 = vmatpush2.bf16.msra.mxu0 0
      %894 = vmatprep.subr.bf16.mxu0 0
      %895 = vmatpush2.bf16.msra.mxu0 0
      %896 = vmatprep.subr.bf16.mxu0 0
      %897 = vmatpush2.bf16.msra.mxu0 0
      %898 = vmatprep.subr.bf16.mxu0 0
      %899 = vmatpush2.bf16.msra.mxu0 0
      %900 = vmatprep.subr.bf16.mxu0 0
      %901 = vmatpush2.bf16.msra.mxu0 0
      %902 = vmatprep.subr.bf16.mxu0 0
      %903 = vmatpush2.bf16.msra.mxu0 0
      %904 = vmatprep.mubr.bf16.mxu0 0
      %905 = vmatmul.mubr.bf16.gmra.mxu0 %v870
      %v906 = vpop.f32.mrf.mxu0
      %v907 = vadd.f32 0.0, %v906
      %v908 = vpop.f32.mrf.mxu0
      %v909 = vpop.f32.mrf.mxu0
      %v910 = vpop.f32.mrf.mxu0
      %911 = vdwg.mxu0
      %v913 = vsel %vm362, %v864, 0
      %915 = vmatprep.subr.bf16.mxu0 0
      %916 = vmatpush1.bf16.msra.mxu0 0
      %917 = vmatprep.subr.bf16.mxu0 0
      %918 = vmatpush1.bf16.msra.mxu0 0
      %919 = vmatprep.subr.bf16.mxu0 0
      %920 = vmatpush1.bf16.msra.mxu0 0
      %921 = vmatprep.subr.bf16.mxu0 0
      %922 = vmatpush1.bf16.msra.mxu0 0
      %923 = vmatprep.subr.bf16.mxu0 0
      %924 = vmatpush1.bf16.msra.mxu0 0
      %925 = vmatprep.subr.bf16.mxu0 0
      %926 = vmatpush1.bf16.msra.mxu0 0
      %927 = vmatprep.subr.bf16.mxu0 0
      %928 = vmatpush1.bf16.msra.mxu0 %v359
      %929 = vmatprep.subr.bf16.mxu0 0
      %930 = vmatpush1.bf16.msra.mxu0 %v358
      %931 = vmatprep.subr.bf16.mxu0 0
      %932 = vmatpush2.bf16.msra.mxu0 0
      %933 = vmatprep.subr.bf16.mxu0 0
      %934 = vmatpush2.bf16.msra.mxu0 0
      %935 = vmatprep.subr.bf16.mxu0 0
      %936 = vmatpush2.bf16.msra.mxu0 0
      %937 = vmatprep.subr.bf16.mxu0 0
      %938 = vmatpush2.bf16.msra.mxu0 0
      %939 = vmatprep.subr.bf16.mxu0 0
      %940 = vmatpush2.bf16.msra.mxu0 0
      %941 = vmatprep.subr.bf16.mxu0 0
      %942 = vmatpush2.bf16.msra.mxu0 0
      %943 = vmatprep.subr.bf16.mxu0 0
      %944 = vmatpush2.bf16.msra.mxu0 0
      %945 = vmatprep.subr.bf16.mxu0 0
      %946 = vmatpush2.bf16.msra.mxu0 0
      %947 = vmatprep.mubr.bf16.mxu0 0
      %948 = vmatmul.mubr.bf16.gmra.mxu0 %v913
      %v949 = vpop.f32.mrf.mxu0
      %v950 = vadd.f32 %v907, %v949
      %v951 = vpop.f32.mrf.mxu0
      %v952 = vpop.f32.mrf.mxu0
      %v953 = vpop.f32.mrf.mxu0
      %954 = vdwg.mxu0
      %v955 = vadd.f32 %v950, %v410
      %v956 = vxor.u32 %v955, 2147483648
      %v957 = vmul.f32 %v956, 1.442695
      %v958 = vpow.pop %v957
      %v959 = vadd.f32 %v958, 1.0
      %v960 = vrcp.pop %v959
      %v961 = vmul.f32 1.0, %v960
      %v962 = vtanh.pop %v955
      %v963 = vld [vmem:[#allocation3] sm:$0x3]
      %965 = vrot.lane.b32.xlu0 %v963, 32
      %v966 = vpop.permute.xlu0 %965
      %v968 = vmul.f32 %v961, %v966
      %970 = vrot.lane.b32.xlu0 %v962, 64
      %v971 = vpop.permute.xlu0 %970
      %v973 = vmul.f32 %v961, %v971
      %975 = vrot.lane.b32.xlu0 %v973, 32
      %v976 = vpop.permute.xlu0 %975
      %v978 = vadd.f32 %v968, %v976
      %v979 = vtanh.pop %v978
      %981 = vrot.lane.b32.xlu0 %v979, 64
      %v982 = vpop.permute.xlu0 %981
      %v984 = vmul.f32 %v961, %v982
      %986 = vrot.lane.b32.xlu0 %v984, 32
      %v987 = vpop.permute.xlu0 %986
      %989 = vst.msk [vmem:[#allocation2] sm:$0x3] %vm446, %v987
      %991 = vrot.lane.b32.xlu0 %v978, 96
      %v992 = vpop.permute.xlu0 %991
      %994 = vst.msk [vmem:[#allocation3] sm:$0x3] %vm446, %v992
      %s995 = scalar_lea.vmem %s272, %s865
      %996 = vst.msk [vmem:[%s995] sm:$0x3] %vm446, %v987
      %s997 = smul.u32 %s18, 4294967293
      %s998 = sadd.s32 %s997, 5
      %v999 = vld [vmem:[#allocation2] sm:$0x3]
      %v1000 = vpack.c.bf16 %v999, %v999
      %s1001 = smul.u32 %s998, 2
      %s1002 = scalar_lea.vmem %s246, %s1001
      %v1003 = vld [vmem:[%s1002] sm:$0x3]
      %v1004 = vpack.c.bf16 %v1003, %v1003
      %v1006 = vsel %vm306, %v1004, 0
      %1008 = vmatprep.subr.bf16.mxu0 0
      %1009 = vmatpush1.bf16.msra.mxu0 0
      %1010 = vmatprep.subr.bf16.mxu0 0
      %1011 = vmatpush1.bf16.msra.mxu0 0
      %1012 = vmatprep.subr.bf16.mxu0 0
      %1013 = vmatpush1.bf16.msra.mxu0 0
      %1014 = vmatprep.subr.bf16.mxu0 0
      %1015 = vmatpush1.bf16.msra.mxu0 0
      %1016 = vmatprep.subr.bf16.mxu0 0
      %1017 = vmatpush1.bf16.msra.mxu0 0
      %1018 = vmatprep.subr.bf16.mxu0 0
      %1019 = vmatpush1.bf16.msra.mxu0 0
      %1020 = vmatprep.subr.bf16.mxu0 0
      %1021 = vmatpush1.bf16.msra.mxu0 0
      %1022 = vmatprep.subr.bf16.mxu0 0
      %1023 = vmatpush1.bf16.msra.mxu0 %v304
      %1024 = vmatprep.subr.bf16.mxu0 0
      %1025 = vmatpush2.bf16.msra.mxu0 0
      %1026 = vmatprep.subr.bf16.mxu0 0
      %1027 = vmatpush2.bf16.msra.mxu0 0
      %1028 = vmatprep.subr.bf16.mxu0 0
      %1029 = vmatpush2.bf16.msra.mxu0 0
      %1030 = vmatprep.subr.bf16.mxu0 0
      %1031 = vmatpush2.bf16.msra.mxu0 0
      %1032 = vmatprep.subr.bf16.mxu0 0
      %1033 = vmatpush2.bf16.msra.mxu0 0
      %1034 = vmatprep.subr.bf16.mxu0 0
      %1035 = vmatpush2.bf16.msra.mxu0 0
      %1036 = vmatprep.subr.bf16.mxu0 0
      %1037 = vmatpush2.bf16.msra.mxu0 0
      %1038 = vmatprep.subr.bf16.mxu0 0
      %1039 = vmatpush2.bf16.msra.mxu0 0
      %1040 = vmatprep.mubr.bf16.mxu0 0
      %1041 = vmatmul.mubr.bf16.gmra.mxu0 %v1006
      %v1042 = vpop.f32.mrf.mxu0
      %v1043 = vadd.f32 0.0, %v1042
      %v1044 = vpop.f32.mrf.mxu0
      %v1045 = vpop.f32.mrf.mxu0
      %v1046 = vpop.f32.mrf.mxu0
      %1047 = vdwg.mxu0
      %v1049 = vsel %vm362, %v1000, 0
      %1051 = vmatprep.subr.bf16.mxu0 0
      %1052 = vmatpush1.bf16.msra.mxu0 0
      %1053 = vmatprep.subr.bf16.mxu0 0
      %1054 = vmatpush1.bf16.msra.mxu0 0
      %1055 = vmatprep.subr.bf16.mxu0 0
      %1056 = vmatpush1.bf16.msra.mxu0 0
      %1057 = vmatprep.subr.bf16.mxu0 0
      %1058 = vmatpush1.bf16.msra.mxu0 0
      %1059 = vmatprep.subr.bf16.mxu0 0
      %1060 = vmatpush1.bf16.msra.mxu0 0
      %1061 = vmatprep.subr.bf16.mxu0 0
      %1062 = vmatpush1.bf16.msra.mxu0 0
      %1063 = vmatprep.subr.bf16.mxu0 0
      %1064 = vmatpush1.bf16.msra.mxu0 %v359
      %1065 = vmatprep.subr.bf16.mxu0 0
      %1066 = vmatpush1.bf16.msra.mxu0 %v358
      %1067 = vmatprep.subr.bf16.mxu0 0
      %1068 = vmatpush2.bf16.msra.mxu0 0
      %1069 = vmatprep.subr.bf16.mxu0 0
      %1070 = vmatpush2.bf16.msra.mxu0 0
      %1071 = vmatprep.subr.bf16.mxu0 0
      %1072 = vmatpush2.bf16.msra.mxu0 0
      %1073 = vmatprep.subr.bf16.mxu0 0
      %1074 = vmatpush2.bf16.msra.mxu0 0
      %1075 = vmatprep.subr.bf16.mxu0 0
      %1076 = vmatpush2.bf16.msra.mxu0 0
      %1077 = vmatprep.subr.bf16.mxu0 0
      %1078 = vmatpush2.bf16.msra.mxu0 0
      %1079 = vmatprep.subr.bf16.mxu0 0
      %1080 = vmatpush2.bf16.msra.mxu0 0
      %1081 = vmatprep.subr.bf16.mxu0 0
      %1082 = vmatpush2.bf16.msra.mxu0 0
      %1083 = vmatprep.mubr.bf16.mxu0 0
      %1084 = vmatmul.mubr.bf16.gmra.mxu0 %v1049
      %v1085 = vpop.f32.mrf.mxu0
      %v1086 = vadd.f32 %v1043, %v1085
      %v1087 = vpop.f32.mrf.mxu0
      %v1088 = vpop.f32.mrf.mxu0
      %v1089 = vpop.f32.mrf.mxu0
      %1090 = vdwg.mxu0
      %v1091 = vadd.f32 %v1086, %v410
      %v1092 = vxor.u32 %v1091, 2147483648
      %v1093 = vmul.f32 %v1092, 1.442695
      %v1094 = vpow.pop %v1093
      %v1095 = vadd.f32 %v1094, 1.0
      %v1096 = vrcp.pop %v1095
      %v1097 = vmul.f32 1.0, %v1096
      %v1098 = vtanh.pop %v1091
      %v1099 = vld [vmem:[#allocation3] sm:$0x3]
      %1101 = vrot.lane.b32.xlu0 %v1099, 32
      %v1102 = vpop.permute.xlu0 %1101
      %v1104 = vmul.f32 %v1097, %v1102
      %1106 = vrot.lane.b32.xlu0 %v1098, 64
      %v1107 = vpop.permute.xlu0 %1106
      %v1109 = vmul.f32 %v1097, %v1107
      %1111 = vrot.lane.b32.xlu0 %v1109, 32
      %v1112 = vpop.permute.xlu0 %1111
      %v1114 = vadd.f32 %v1104, %v1112
      %v1115 = vtanh.pop %v1114
      %1117 = vrot.lane.b32.xlu0 %v1115, 64
      %v1118 = vpop.permute.xlu0 %1117
      %v1120 = vmul.f32 %v1097, %v1118
      %1122 = vrot.lane.b32.xlu0 %v1120, 32
      %v1123 = vpop.permute.xlu0 %1122
      %1125 = vst.msk [vmem:[#allocation2] sm:$0x3] %vm446, %v1123
      %1127 = vrot.lane.b32.xlu0 %v1114, 96
      %v1128 = vpop.permute.xlu0 %1127
      %1130 = vst.msk [vmem:[#allocation3] sm:$0x3] %vm446, %v1128
      %s1131 = scalar_lea.vmem %s272, %s1001
      %1132 = vst.msk [vmem:[%s1131] sm:$0x3] %vm446, %v1123
      %s1133 = smul.u32 %s18, 4294967291
      %s1134 = sadd.s32 %s1133, 6
      %v1135 = vld [vmem:[#allocation2] sm:$0x3]
      %v1136 = vpack.c.bf16 %v1135, %v1135
      %s1137 = smul.u32 %s1134, 2
      %s1138 = scalar_lea.vmem %s246, %s1137
      %v1139 = vld [vmem:[%s1138] sm:$0x3]
      %v1140 = vpack.c.bf16 %v1139, %v1139
      %v1142 = vsel %vm306, %v1140, 0
      %1144 = vmatprep.subr.bf16.mxu0 0
      %1145 = vmatpush1.bf16.msra.mxu0 0
      %1146 = vmatprep.subr.bf16.mxu0 0
      %1147 = vmatpush1.bf16.msra.mxu0 0
      %1148 = vmatprep.subr.bf16.mxu0 0
      %1149 = vmatpush1.bf16.msra.mxu0 0
      %1150 = vmatprep.subr.bf16.mxu0 0
      %1151 = vmatpush1.bf16.msra.mxu0 0
      %1152 = vmatprep.subr.bf16.mxu0 0
      %1153 = vmatpush1.bf16.msra.mxu0 0
      %1154 = vmatprep.subr.bf16.mxu0 0
      %1155 = vmatpush1.bf16.msra.mxu0 0
      %1156 = vmatprep.subr.bf16.mxu0 0
      %1157 = vmatpush1.bf16.msra.mxu0 0
      %1158 = vmatprep.subr.bf16.mxu0 0
      %1159 = vmatpush1.bf16.msra.mxu0 %v304
      %1160 = vmatprep.subr.bf16.mxu0 0
      %1161 = vmatpush2.bf16.msra.mxu0 0
      %1162 = vmatprep.subr.bf16.mxu0 0
      %1163 = vmatpush2.bf16.msra.mxu0 0
      %1164 = vmatprep.subr.bf16.mxu0 0
      %1165 = vmatpush2.bf16.msra.mxu0 0
      %1166 = vmatprep.subr.bf16.mxu0 0
      %1167 = vmatpush2.bf16.msra.mxu0 0
      %1168 = vmatprep.subr.bf16.mxu0 0
      %1169 = vmatpush2.bf16.msra.mxu0 0
      %1170 = vmatprep.subr.bf16.mxu0 0
      %1171 = vmatpush2.bf16.msra.mxu0 0
      %1172 = vmatprep.subr.bf16.mxu0 0
      %1173 = vmatpush2.bf16.msra.mxu0 0
      %1174 = vmatprep.subr.bf16.mxu0 0
      %1175 = vmatpush2.bf16.msra.mxu0 0
      %1176 = vmatprep.mubr.bf16.mxu0 0
      %1177 = vmatmul.mubr.bf16.gmra.mxu0 %v1142
      %v1178 = vpop.f32.mrf.mxu0
      %v1179 = vadd.f32 0.0, %v1178
      %v1180 = vpop.f32.mrf.mxu0
      %v1181 = vpop.f32.mrf.mxu0
      %v1182 = vpop.f32.mrf.mxu0
      %1183 = vdwg.mxu0
      %v1185 = vsel %vm362, %v1136, 0
      %1187 = vmatprep.subr.bf16.mxu0 0
      %1188 = vmatpush1.bf16.msra.mxu0 0
      %1189 = vmatprep.subr.bf16.mxu0 0
      %1190 = vmatpush1.bf16.msra.mxu0 0
      %1191 = vmatprep.subr.bf16.mxu0 0
      %1192 = vmatpush1.bf16.msra.mxu0 0
      %1193 = vmatprep.subr.bf16.mxu0 0
      %1194 = vmatpush1.bf16.msra.mxu0 0
      %1195 = vmatprep.subr.bf16.mxu0 0
      %1196 = vmatpush1.bf16.msra.mxu0 0
      %1197 = vmatprep.subr.bf16.mxu0 0
      %1198 = vmatpush1.bf16.msra.mxu0 0
      %1199 = vmatprep.subr.bf16.mxu0 0
      %1200 = vmatpush1.bf16.msra.mxu0 %v359
      %1201 = vmatprep.subr.bf16.mxu0 0
      %1202 = vmatpush1.bf16.msra.mxu0 %v358
      %1203 = vmatprep.subr.bf16.mxu0 0
      %1204 = vmatpush2.bf16.msra.mxu0 0
      %1205 = vmatprep.subr.bf16.mxu0 0
      %1206 = vmatpush2.bf16.msra.mxu0 0
      %1207 = vmatprep.subr.bf16.mxu0 0
      %1208 = vmatpush2.bf16.msra.mxu0 0
      %1209 = vmatprep.subr.bf16.mxu0 0
      %1210 = vmatpush2.bf16.msra.mxu0 0
      %1211 = vmatprep.subr.bf16.mxu0 0
      %1212 = vmatpush2.bf16.msra.mxu0 0
      %1213 = vmatprep.subr.bf16.mxu0 0
      %1214 = vmatpush2.bf16.msra.mxu0 0
      %1215 = vmatprep.subr.bf16.mxu0 0
      %1216 = vmatpush2.bf16.msra.mxu0 0
      %1217 = vmatprep.subr.bf16.mxu0 0
      %1218 = vmatpush2.bf16.msra.mxu0 0
      %1219 = vmatprep.mubr.bf16.mxu0 0
      %1220 = vmatmul.mubr.bf16.gmra.mxu0 %v1185
      %v1221 = vpop.f32.mrf.mxu0
      %v1222 = vadd.f32 %v1179, %v1221
      %v1223 = vpop.f32.mrf.mxu0
      %v1224 = vpop.f32.mrf.mxu0
      %v1225 = vpop.f32.mrf.mxu0
      %1226 = vdwg.mxu0
      %v1227 = vadd.f32 %v1222, %v410
      %v1228 = vxor.u32 %v1227, 2147483648
      %v1229 = vmul.f32 %v1228, 1.442695
      %v1230 = vpow.pop %v1229
      %v1231 = vadd.f32 %v1230, 1.0
      %v1232 = vrcp.pop %v1231
      %v1233 = vmul.f32 1.0, %v1232
      %v1234 = vtanh.pop %v1227
      %v1235 = vld [vmem:[#allocation3] sm:$0x3]
      %1237 = vrot.lane.b32.xlu0 %v1235, 32
      %v1238 = vpop.permute.xlu0 %1237
      %v1240 = vmul.f32 %v1233, %v1238
      %1242 = vrot.lane.b32.xlu0 %v1234, 64
      %v1243 = vpop.permute.xlu0 %1242
      %v1245 = vmul.f32 %v1233, %v1243
      %1247 = vrot.lane.b32.xlu0 %v1245, 32
      %v1248 = vpop.permute.xlu0 %1247
      %v1250 = vadd.f32 %v1240, %v1248
      %v1251 = vtanh.pop %v1250
      %1253 = vrot.lane.b32.xlu0 %v1251, 64
      %v1254 = vpop.permute.xlu0 %1253
      %v1256 = vmul.f32 %v1233, %v1254
      %1258 = vrot.lane.b32.xlu0 %v1256, 32
      %v1259 = vpop.permute.xlu0 %1258
      %1261 = vst.msk [vmem:[#allocation2] sm:$0x3] %vm446, %v1259
      %1263 = vrot.lane.b32.xlu0 %v1250, 96
      %v1264 = vpop.permute.xlu0 %1263
      %1266 = vst.msk [vmem:[#allocation3] sm:$0x3] %vm446, %v1264
      %s1267 = scalar_lea.vmem %s272, %s1137
      %1268 = vst.msk [vmem:[%s1267] sm:$0x3] %vm446, %v1259
      %s1269 = smul.u32 %s18, 4294967289
      %s1270 = sadd.s32 %s1269, 7
      %v1271 = vld [vmem:[#allocation2] sm:$0x3]
      %v1272 = vpack.c.bf16 %v1271, %v1271
      %s1273 = smul.u32 %s1270, 2
      %s1274 = scalar_lea.vmem %s246, %s1273
      %v1275 = vld [vmem:[%s1274] sm:$0x3]
      %v1276 = vpack.c.bf16 %v1275, %v1275
      %v1278 = vsel %vm306, %v1276, 0
      %1280 = vmatprep.subr.bf16.mxu0 0
      %1281 = vmatpush1.bf16.msra.mxu0 0
      %1282 = vmatprep.subr.bf16.mxu0 0
      %1283 = vmatpush1.bf16.msra.mxu0 0
      %1284 = vmatprep.subr.bf16.mxu0 0
      %1285 = vmatpush1.bf16.msra.mxu0 0
      %1286 = vmatprep.subr.bf16.mxu0 0
      %1287 = vmatpush1.bf16.msra.mxu0 0
      %1288 = vmatprep.subr.bf16.mxu0 0
      %1289 = vmatpush1.bf16.msra.mxu0 0
      %1290 = vmatprep.subr.bf16.mxu0 0
      %1291 = vmatpush1.bf16.msra.mxu0 0
      %1292 = vmatprep.subr.bf16.mxu0 0
      %1293 = vmatpush1.bf16.msra.mxu0 0
      %1294 = vmatprep.subr.bf16.mxu0 0
      %1295 = vmatpush1.bf16.msra.mxu0 %v304
      %1296 = vmatprep.subr.bf16.mxu0 0
      %1297 = vmatpush2.bf16.msra.mxu0 0
      %1298 = vmatprep.subr.bf16.mxu0 0
      %1299 = vmatpush2.bf16.msra.mxu0 0
      %1300 = vmatprep.subr.bf16.mxu0 0
      %1301 = vmatpush2.bf16.msra.mxu0 0
      %1302 = vmatprep.subr.bf16.mxu0 0
      %1303 = vmatpush2.bf16.msra.mxu0 0
      %1304 = vmatprep.subr.bf16.mxu0 0
      %1305 = vmatpush2.bf16.msra.mxu0 0
      %1306 = vmatprep.subr.bf16.mxu0 0
      %1307 = vmatpush2.bf16.msra.mxu0 0
      %1308 = vmatprep.subr.bf16.mxu0 0
      %1309 = vmatpush2.bf16.msra.mxu0 0
      %1310 = vmatprep.subr.bf16.mxu0 0
      %1311 = vmatpush2.bf16.msra.mxu0 0
      %1312 = vmatprep.mubr.bf16.mxu0 0
      %1313 = vmatmul.mubr.bf16.gmra.mxu0 %v1278
      %v1314 = vpop.f32.mrf.mxu0
      %v1315 = vadd.f32 0.0, %v1314
      %v1316 = vpop.f32.mrf.mxu0
      %v1317 = vpop.f32.mrf.mxu0
      %v1318 = vpop.f32.mrf.mxu0
      %1319 = vdwg.mxu0
      %v1321 = vsel %vm362, %v1272, 0
      %1323 = vmatprep.subr.bf16.mxu0 0
      %1324 = vmatpush1.bf16.msra.mxu0 0
      %1325 = vmatprep.subr.bf16.mxu0 0
      %1326 = vmatpush1.bf16.msra.mxu0 0
      %1327 = vmatprep.subr.bf16.mxu0 0
      %1328 = vmatpush1.bf16.msra.mxu0 0
      %1329 = vmatprep.subr.bf16.mxu0 0
      %1330 = vmatpush1.bf16.msra.mxu0 0
      %1331 = vmatprep.subr.bf16.mxu0 0
      %1332 = vmatpush1.bf16.msra.mxu0 0
      %1333 = vmatprep.subr.bf16.mxu0 0
      %1334 = vmatpush1.bf16.msra.mxu0 0
      %1335 = vmatprep.subr.bf16.mxu0 0
      %1336 = vmatpush1.bf16.msra.mxu0 %v359
      %1337 = vmatprep.subr.bf16.mxu0 0
      %1338 = vmatpush1.bf16.msra.mxu0 %v358
      %1339 = vmatprep.subr.bf16.mxu0 0
      %1340 = vmatpush2.bf16.msra.mxu0 0
      %1341 = vmatprep.subr.bf16.mxu0 0
      %1342 = vmatpush2.bf16.msra.mxu0 0
      %1343 = vmatprep.subr.bf16.mxu0 0
      %1344 = vmatpush2.bf16.msra.mxu0 0
      %1345 = vmatprep.subr.bf16.mxu0 0
      %1346 = vmatpush2.bf16.msra.mxu0 0
      %1347 = vmatprep.subr.bf16.mxu0 0
      %1348 = vmatpush2.bf16.msra.mxu0 0
      %1349 = vmatprep.subr.bf16.mxu0 0
      %1350 = vmatpush2.bf16.msra.mxu0 0
      %1351 = vmatprep.subr.bf16.mxu0 0
      %1352 = vmatpush2.bf16.msra.mxu0 0
      %1353 = vmatprep.subr.bf16.mxu0 0
      %1354 = vmatpush2.bf16.msra.mxu0 0
      %1355 = vmatprep.mubr.bf16.mxu0 0
      %1356 = vmatmul.mubr.bf16.gmra.mxu0 %v1321
      %v1357 = vpop.f32.mrf.mxu0
      %v1358 = vadd.f32 %v1315, %v1357
      %v1359 = vpop.f32.mrf.mxu0
      %v1360 = vpop.f32.mrf.mxu0
      %v1361 = vpop.f32.mrf.mxu0
      %1362 = vdwg.mxu0
      %v1363 = vadd.f32 %v1358, %v410
      %v1364 = vxor.u32 %v1363, 2147483648
      %v1365 = vmul.f32 %v1364, 1.442695
      %v1366 = vpow.pop %v1365
      %v1367 = vadd.f32 %v1366, 1.0
      %v1368 = vrcp.pop %v1367
      %v1369 = vmul.f32 1.0, %v1368
      %v1370 = vtanh.pop %v1363
      %v1371 = vld [vmem:[#allocation3] sm:$0x3]
      %1373 = vrot.lane.b32.xlu0 %v1371, 32
      %v1374 = vpop.permute.xlu0 %1373
      %v1376 = vmul.f32 %v1369, %v1374
      %1378 = vrot.lane.b32.xlu0 %v1370, 64
      %v1379 = vpop.permute.xlu0 %1378
      %v1381 = vmul.f32 %v1369, %v1379
      %1383 = vrot.lane.b32.xlu0 %v1381, 32
      %v1384 = vpop.permute.xlu0 %1383
      %v1386 = vadd.f32 %v1376, %v1384
      %v1387 = vtanh.pop %v1386
      %1389 = vrot.lane.b32.xlu0 %v1387, 64
      %v1390 = vpop.permute.xlu0 %1389
      %v1392 = vmul.f32 %v1369, %v1390
      %1394 = vrot.lane.b32.xlu0 %v1392, 32
      %v1395 = vpop.permute.xlu0 %1394
      %1397 = vst.msk [vmem:[#allocation2] sm:$0x3] %vm446, %v1395
      %1399 = vrot.lane.b32.xlu0 %v1386, 96
      %v1400 = vpop.permute.xlu0 %1399
      %1402 = vst.msk [vmem:[#allocation3] sm:$0x3] %vm446, %v1400
      %s1403 = scalar_lea.vmem %s272, %s1273
      %1404 = vst.msk [vmem:[%s1403] sm:$0x3] %vm446, %v1395
      %s1405 = smul.u32 %s19, 2
      %s1406 = ssub.s32 0, %s1405
      %s1407 = smul.u32 %s18, %s1406
      %s1408 = sadd.s32 %s19, %s1407
      %s1409 = smul.u32 8, %s1408
      %p1410 = scmp.lt.s32.totalorder %s18, 1
      %s1411 = scalar_select %p1410, %s18, 1
      %p1412 = scmp.lt.s32.totalorder %s1409, 7
      %s1413 = scalar_select %p1412, %s1409, 7
      %s1414 = smul.addr %s1411, 8
      %s1415 = sadd.s32 %s1413, %s1414
      %s1416 = smul.addr %s1415, 2
      %s1417 = scalar_lea.vmem %s3, %s1416
      // Predicated region
      $region37: #{rnn_forward.3} parent=31 // pred_check
        %p1418 = pneg %p140
      $region38: #{rnn_forward.3} parent=31 // pred_check_branch
        %1420 = sbr.rel (%p1418) target = $region40
      $region39: #{rnn_forward.3} parent=31 // pred_region
        %s1421 = smul.u32 %s19, 2
        %s1422 = ssub.s32 0, %s1421
        %s1423 = smul.u32 %s18, %s1422
        %s1424 = sadd.s32 %s19, %s1423
        %s1425 = smul.u32 8, %s1424
      $region40: #{rnn_forward.3} parent=31 // pred_fallthru
        _
    $region32: #{rnn_forward.3} parent=5 // pred_fallthru
      _
    %p1426 = scmp.le.s32.totalorder 2, %s9
    // Predicated region
    $region41: #{rnn_forward.3} parent=5 // pred_check
      %p1427 = pneg %p1426
    $region42: #{rnn_forward.3} parent=5 // pred_check_branch
      %1429 = sbr.rel (%p1427) target = $region44
    $region43: #{rnn_forward.3} parent=5 // pred_region
      %s1430 = ssub.s32 %s9, 2
      // Predicated region
      $region45: #{rnn_forward.3} parent=43 // pred_check
        %p1431 = pneg %p146
      $region46: #{rnn_forward.3} parent=43 // pred_check_branch
        %1433 = sbr.rel (%p1431) target = $region48
      $region47: #{rnn_forward.3} parent=43 // pred_region
        %s1434 = smul.u32 %s21, 2
        %s1435 = ssub.s32 0, %s1434
        %s1436 = smul.u32 %s20, %s1435
        %s1437 = sadd.s32 %s21, %s1436
        %s1438 = smul.u32 8, %s1437
        %p1439 = scmp.lt.s32.totalorder %s20, 1
        %s1440 = scalar_select %p1439, %s20, 1
        %p1441 = scmp.lt.s32.totalorder %s1438, 7
        %s1442 = scalar_select %p1441, %s1438, 7
        %s1443 = smul.addr %s1440, 8
        %s1444 = sadd.s32 %s1442, %s1443
        %s1445 = smul.addr %s1444, 2
        %s1446 = scalar_lea.vmem %s3, %s1445
      $region48: #{rnn_forward.3} parent=43 // pred_fallthru
        _
    $region44: #{rnn_forward.3} parent=5 // pred_fallthru
      _
  $region6: #{rnn_forward.3} parent=0 // loop_footer
    %s13 = sadd.s32 1, %s9
  $region7: #{rnn_forward.3} parent=0 // loop_footer_branch
    %8 = sbr.rel target = $region3
  $region8: #{rnn_forward.3} parent=0 // loop_exit
    _

</llo_original>
